<compile_context>
chip_gen: v7x
topology: tpu7x:2x2x1
jax: 0.10.0
libtpu: 0.0.40
codegen_flags: <defaults>
</compile_context>

<pallas_src>
import functools

import jax
import jax.numpy as jnp
from jax.experimental import pallas as pl
from jax.experimental.pallas import tpu as pltpu


_MAXC = 32     # sublane-padded max Cout over all layers (24 -> 32)
_MAXK = 384    # lane-padded max K*K*Cin (+1 bias column) over all layers (301 -> 384)

# (kernel, tap-step-on-the-spread-grid, Cin, Cout, activation) for the 5 convs, in order.
_LAYERS = (
    (3, 1, 1, 24, "relu"),    # Conv2d(1, 24, 3)                      (encoder)
    (3, 2, 24, 12, "relu"),   # Conv2d(24, 12, 3)  -- reads the stride-2 pooled grid
    (5, 1, 12, 12, "relu"),   # ConvTranspose2d(12, 12, 5, stride=2)  as 5x5 conv
    (4, 1, 12, 24, "relu"),   # ConvTranspose2d(12, 24, 4)            as 4x4 conv
    (3, 1, 24, 1, "tanh"),    # ConvTranspose2d(24, 1, 3)             as 3x3 conv
)


# ----------------------------------------------------------------------------
# The fused forward kernel (one grid step == one lane-packed batch tile)
# ----------------------------------------------------------------------------
def _mnist_ae_kernel(x_ref, w_ref, m_ref, o_ref, *, wb, lanes):
    def shift(v, d):
        # y[..., p] = v[..., (p + d) % lanes]   (circular, whole lane axis)
        a = (-d) % lanes
        if a == 0:
            return v
        return pltpu.roll(v, a, axis=1)         # XLU rotate: free next to MXU/VALU

    def conv(v, layer):
        k, step, cin, cout, act = _LAYERS[layer]
        kkcin = k * k * cin
        # im2col slab: K*K shifted copies stacked along sublanes -> one matmul.
        pieces = []
        for ky in range(k):
            for kx in range(k):
                pieces.append(shift(v, step * (ky * wb + kx)))
        slab = jnp.concatenate(pieces, axis=0)                  # (k*k*cin, lanes)
        wfull = w_ref[layer]                                    # (32, 384) unmasked load
        wmat = wfull[0:cout, 0:kkcin]                           # (cout, k*k*cin)
        bias = wfull[0:cout, kkcin:kkcin + 1]                   # (cout, 1)
        acc = jnp.dot(wmat, slab, preferred_element_type=jnp.float32) + bias
        if act == "relu":
            return jnp.maximum(acc, 0.0)
        return jnp.tanh(acc)

    def maxpool(v, step):
        m = v
        for dy in range(2):
            for dx in range(2):
                if dy == 0 and dx == 0:
                    continue
                m = jnp.maximum(m, shift(v, step * (dy * wb + dx)))
        return m

    x = x_ref[...]                      # (1, lanes)
    masks = m_ref[...]                  # (3, lanes)

    # ---------------- encoder ----------------
    h = conv(x, 0)
    h = maxpool(h, step=1)              # MaxPool2d(2, s=2): stride handled by conv 1's step=2
    h = conv(h, 1)
    h = maxpool(h, step=2)              # MaxPool2d(2, s=1) on the 2x-spread grid

    # ---------------- decoder ----------------
    # ConvTranspose = mask(valid rectangle) -> shift into (K-1)-padded frame -> plain conv.
    h = shift(h * masks[0:1, :], -4 * (wb + 1))
    h = conv(h, 2)
    h = shift(h * masks[1:2, :], -3 * (wb + 1))
    h = conv(h, 3)
    h = shift(h * masks[2:3, :], -2 * (wb + 1))
    h = conv(h, 4)

    o_ref[...] = h                      # (1, lanes)


# ----------------------------------------------------------------------------
# One-time weight pre-packing: 5 layers -> single lane-dense (5, 32, 384) slab
# ----------------------------------------------------------------------------
def pack_params(p):
    def conv_mat(w):          # Conv2d OIHW -> (Cout, K*K*Cin); row order (ky, kx, cin)
        cout, cin, kh, kw = w.shape
        return jnp.transpose(w, (0, 2, 3, 1)).reshape(cout, kh * kw * cin)

    def convt_mat(wt):        # ConvTranspose2d (Cin, Cout, K, K) -> equivalent-conv matrix
        w = jnp.flip(wt, axis=(2, 3)).transpose(1, 0, 2, 3)
        return conv_mat(w)

    mats = [
        (conv_mat(p["enc_w1"]), p["enc_b1"]),
        (conv_mat(p["enc_w2"]), p["enc_b2"]),
        (convt_mat(p["dec_w1"]), p["dec_b1"]),
        (convt_mat(p["dec_w2"]), p["dec_b2"]),
        (convt_mat(p["dec_w3"]), p["dec_b3"]),
    ]
    slabs = []
    for w2d, b in mats:
        cout, kkcin = w2d.shape
        wb_ = jnp.concatenate([w2d, b.reshape(cout, 1)], axis=1).astype(jnp.float32)
        slabs.append(jnp.pad(wb_, ((0, _MAXC - cout), (0, _MAXK - kkcin - 1))))
    return jnp.stack(slabs)   # (5, 32, 384) f32; bias lives at column K*K*Cin of each slice


# ----------------------------------------------------------------------------
# Public forward: NCHW in / NCHW out, one fused pallas_call
# ----------------------------------------------------------------------------
def mnist_ae_forward(x_nchw, wpack, *, b_tile=None):
    n, c, h0, w0 = x_nchw.shape
    assert c == 1 and h0 == w0, "MnistAE expects single-channel square images"

    # static layer-size chain (PyTorch semantics, m = [24, 12])
    h1 = h0 - 2                        # Conv2d(1, 24, 3)
    p1 = (h1 - 2) // 2 + 1             # MaxPool2d(2, stride=2)
    h2 = p1 - 2                        # Conv2d(24, 12, 3)
    p2 = h2 - 1                        # MaxPool2d(2, stride=1)
    d1 = (p2 - 1) * 2 + 5              # ConvTranspose2d(12, 12, 5, stride=2)
    d2 = d1 + 3                        # ConvTranspose2d(12, 24, 4)
    d3 = d2 + 2                        # ConvTranspose2d(24, 1, 3)  (== h0)
    assert d3 == h0

    wb = h0 + 2                        # fixed row stride of the flattened frame
    s = wb * wb                        # 324 real lanes / image
    s_pad = ((s + 127) // 128) * 128   # 384: 3 full vregs / image

    if b_tile is None:
        # 16 images/step keeps the 5x5 im2col slab (~0.46 MB f32 / image) well
        # inside scoped VMEM on all of v5e/v6e/v7x; larger N still gives >=2
        # grid steps so v7x's 2 TensorCores both get work.
        b_tile = max(1, min(16, n))
    num_steps = pl.cdiv(n, b_tile)
    n_pad = num_steps * b_tile
    lanes = b_tile * s_pad

    # validity masks over ONE 384-lane image segment, tiled across the batch tile
    q = jnp.arange(s_pad, dtype=jnp.int32)
    hh, ww = q // wb, q % wb
    real = q < s
    m1 = real & (hh % 2 == 0) & (ww % 2 == 0) & (hh < 2 * p2) & (ww < 2 * p2)
    m2 = real & (hh < d1) & (ww < d1)
    m3 = real & (hh < d2) & (ww < d2)
    masks = jnp.tile(jnp.stack([m1, m2, m3]).astype(jnp.float32), (1, b_tile))  # (3, lanes)

    # input -> zero-padded, flattened, lane-packed (image-major) layout
    xi = x_nchw[:, 0].astype(jnp.float32)
    xi = jnp.pad(xi, ((0, n_pad - n), (0, wb - h0), (0, wb - w0)))   # (n_pad, wb, wb)
    xi = jnp.pad(xi.reshape(n_pad, s), ((0, 0), (0, s_pad - s)))     # (n_pad, 384)
    xi = xi.reshape(num_steps, 1, lanes)                             # (steps, 1, B*384)

    macs = sum(k * k * cin * cout for k, _, cin, cout, _ in _LAYERS)
    cost = pl.CostEstimate(
        flops=2 * n_pad * s_pad * macs,
        transcendentals=n_pad * s_pad,
        bytes_accessed=int(xi.size + wpack.size + masks.size + n_pad * s_pad) * 4)

    out = pl.pallas_call(
        functools.partial(_mnist_ae_kernel, wb=wb, lanes=lanes),
        grid=(num_steps,),
        in_specs=[
            pl.BlockSpec((None, 1, lanes), lambda i: (i, 0, 0)),   # batch tile
            pl.BlockSpec(wpack.shape, lambda i: (0, 0, 0)),        # packed weights+bias
            pl.BlockSpec(masks.shape, lambda i: (0, 0)),           # packed masks
        ],
        out_specs=pl.BlockSpec((None, 1, lanes), lambda i: (i, 0, 0)),
        out_shape=jax.ShapeDtypeStruct((num_steps, 1, lanes), jnp.float32),
        compiler_params=pltpu.CompilerParams(
            dimension_semantics=("parallel",),       # shards steps across v7x's 2 TCs
            vmem_limit_bytes=48 * 1024 * 1024),
        cost_estimate=cost,
    )(xi, wpack, masks)

    y = out.reshape(n_pad, s_pad)[:n, :s].reshape(n, wb, wb)[:, :d3, :d3]
    return y[:, None, :, :]


# ----------------------------------------------------------------------------
# Pure-JAX (XLA) reference of the PyTorch module, for verification
# ----------------------------------------------------------------------------
def _ref_forward(x, p):
    dn = ("NCHW", "OIHW", "NCHW")

    def conv(x, w, b):
        y = jax.lax.conv_general_dilated(x, w, (1, 1), "VALID", dimension_numbers=dn)
        return y + b.reshape(1, -1, 1, 1)

    def convT(x, wt, b, s):
        K = wt.shape[-1]
        w = jnp.flip(wt, axis=(2, 3)).transpose(1, 0, 2, 3)
        y = jax.lax.conv_general_dilated(
            x, w, (1, 1), [(K - 1, K - 1), (K - 1, K - 1)],
            lhs_dilation=(s, s), dimension_numbers=dn)
        return y + b.reshape(1, -1, 1, 1)

    def pool(x, s):
        return jax.lax.reduce_window(x, -jnp.inf, jax.lax.max,
                                     (1, 1, 2, 2), (1, 1, s, s), "VALID")

    h = jax.nn.relu(conv(x, p["enc_w1"], p["enc_b1"]))
    h = pool(h, 2)
    h = jax.nn.relu(conv(h, p["enc_w2"], p["enc_b2"]))
    h = pool(h, 1)
    h = jax.nn.relu(convT(h, p["dec_w1"], p["dec_b1"], 2))
    h = jax.nn.relu(convT(h, p["dec_w2"], p["dec_b2"], 1))
    return jnp.tanh(convT(h, p["dec_w3"], p["dec_b3"], 1))


# ----------------------------------------------------------------------------
# Deterministic synthetic parameters (shapes from the module __init__)
# ----------------------------------------------------------------------------
def init_params(key):
    ks = jax.random.split(key, 10)

    def u(k, shape, fan_in):
        bound = 1.0 / (float(fan_in) ** 0.5)
        return jax.random.uniform(k, shape, jnp.float32, -bound, bound)

    return {
        "enc_w1": u(ks[0], (24, 1, 3, 3), 1 * 9),    # Conv2d(1, 24, 3)
        "enc_b1": u(ks[1], (24,), 1 * 9),
        "enc_w2": u(ks[2], (12, 24, 3, 3), 24 * 9),  # Conv2d(24, 12, 3)
        "enc_b2": u(ks[3], (12,), 24 * 9),
        "dec_w1": u(ks[4], (12, 12, 5, 5), 12 * 25), # ConvTranspose2d(12, 12, 5, s=2)
        "dec_b1": u(ks[5], (12,), 12 * 25),
        "dec_w2": u(ks[6], (12, 24, 4, 4), 24 * 16), # ConvTranspose2d(12, 24, 4)
        "dec_b2": u(ks[7], (24,), 24 * 16),
        "dec_w3": u(ks[8], (24, 1, 3, 3), 1 * 9),    # ConvTranspose2d(24, 1, 3)
        "dec_b3": u(ks[9], (1,), 1 * 9),
    }


if __name__ == "__main__":
    key = jax.random.PRNGKey(0)
    kx, kp = jax.random.split(key)
    # small MNIST-like input (the AE reconstructs the same spatial size): N=2, C=1, 16x16
    x = jax.random.normal(kx, (2, 1, 16, 16), jnp.float32)
    params = init_params(kp)
    packed = pack_params(params)   # one-time weight re-pack (outside the hot path)

    fwd = jax.jit(mnist_ae_forward)
    y = jax.block_until_ready(fwd(x, packed))
    assert y.shape == (2, 1, 16, 16), y.shape

    y_ref = jax.block_until_ready(jax.jit(_ref_forward)(x, params))
    assert jnp.allclose(y, y_ref, rtol=1e-3, atol=1e-3), float(jnp.max(jnp.abs(y - y_ref)))

    print("KERNEL_OK")
</pallas_src>

<mosaic_0001>
module attributes {stable_mosaic.version = 11 : i64} {
  func.func @_mnist_ae_kernel(%arg0: i32, %arg1: memref<1x1x768xf32, #tpu.memory_space<vmem>>, %arg2: memref<5x32x384xf32, #tpu.memory_space<vmem>>, %arg3: memref<3x768xf32, #tpu.memory_space<vmem>>, %arg4: memref<1x1x768xf32, #tpu.memory_space<vmem>>) attributes {dimension_semantics = [#tpu.dimension_semantics<parallel>], iteration_bounds = array<i64: 1>, scalar_prefetch = 0 : i64, scratch_operands = 0 : i64, tpu.core_type = #tpu.core_type<tc>, window_params = [{transform_indices = @transform_0, window_bounds = array<i64: 1, 1, 768>}, {pipeline_mode = #tpu.pipeline_mode<synchronous>, transform_indices = @transform_1, window_bounds = array<i64: 5, 32, 384>}, {pipeline_mode = #tpu.pipeline_mode<synchronous>, transform_indices = @transform_2, window_bounds = array<i64: 3, 768>}, {transform_indices = @transform_3, window_bounds = array<i64: 1, 1, 768>}]} {
    %c0 = arith.constant 0 : index
    %c0_0 = arith.constant 0 : index
    %c0_1 = arith.constant 0 : index
    %0 = vector.load %arg1[%c0, %c0_0, %c0_1] : memref<1x1x768xf32, #tpu.memory_space<vmem>>, vector<1x1x768xf32>
    %1 = vector.shape_cast %0 : vector<1x1x768xf32> to vector<1x768xf32>
    %c0_2 = arith.constant 0 : index
    %c0_3 = arith.constant 0 : index
    %2 = vector.load %arg3[%c0_2, %c0_3] : memref<3x768xf32, #tpu.memory_space<vmem>>, vector<3x768xf32>
    %c767_i32 = arith.constant 767 : i32
    %3 = tpu.dynamic_rotate %1 by %c767_i32 dim 1 : vector<1x768xf32>, i32 -> vector<1x768xf32>
    %c766_i32 = arith.constant 766 : i32
    %4 = tpu.dynamic_rotate %1 by %c766_i32 dim 1 : vector<1x768xf32>, i32 -> vector<1x768xf32>
    %c750_i32 = arith.constant 750 : i32
    %5 = tpu.dynamic_rotate %1 by %c750_i32 dim 1 : vector<1x768xf32>, i32 -> vector<1x768xf32>
    %c749_i32 = arith.constant 749 : i32
    %6 = tpu.dynamic_rotate %1 by %c749_i32 dim 1 : vector<1x768xf32>, i32 -> vector<1x768xf32>
    %c748_i32 = arith.constant 748 : i32
    %7 = tpu.dynamic_rotate %1 by %c748_i32 dim 1 : vector<1x768xf32>, i32 -> vector<1x768xf32>
    %c732_i32 = arith.constant 732 : i32
    %8 = tpu.dynamic_rotate %1 by %c732_i32 dim 1 : vector<1x768xf32>, i32 -> vector<1x768xf32>
    %c731_i32 = arith.constant 731 : i32
    %9 = tpu.dynamic_rotate %1 by %c731_i32 dim 1 : vector<1x768xf32>, i32 -> vector<1x768xf32>
    %c730_i32 = arith.constant 730 : i32
    %10 = tpu.dynamic_rotate %1 by %c730_i32 dim 1 : vector<1x768xf32>, i32 -> vector<1x768xf32>
    %11 = tpu.concatenate %1, %3, %4, %5, %6, %7, %8, %9, %10 in 0 : vector<1x768xf32>, vector<1x768xf32>, vector<1x768xf32>, vector<1x768xf32>, vector<1x768xf32>, vector<1x768xf32>, vector<1x768xf32>, vector<1x768xf32>, vector<1x768xf32> -> vector<9x768xf32>
    %c0_4 = arith.constant 0 : index
    %c0_5 = arith.constant 0 : index
    %c0_6 = arith.constant 0 : index
    %12 = vector.load %arg2[%c0_4, %c0_5, %c0_6] : memref<5x32x384xf32, #tpu.memory_space<vmem>>, vector<1x32x384xf32>
    %13 = vector.shape_cast %12 : vector<1x32x384xf32> to vector<32x384xf32>
    %14 = vector.extract_strided_slice %13 {offsets = [0, 0], sizes = [24, 9], strides = [1, 1]} : vector<32x384xf32> to vector<24x9xf32>
    %15 = vector.extract_strided_slice %13 {offsets = [0, 9], sizes = [24, 1], strides = [1, 1]} : vector<32x384xf32> to vector<24x1xf32>
    %cst = arith.constant dense<0.000000e+00> : vector<24x768xf32>
    %16 = tpu.matmul %14, %11, %cst {dimension_numbers = #tpu.dot_dimension_numbers<[1], [0], [0], [1], [0, 0, 1, 1], [], []>} : vector<24x9xf32>, vector<9x768xf32>, vector<24x768xf32> -> vector<24x768xf32>
    %17 = vector.broadcast %15 : vector<24x1xf32> to vector<24x768xf32>
    %18 = arith.addf %16, %17 : vector<24x768xf32>
    %cst_7 = arith.constant 0.000000e+00 : f32
    %19 = vector.broadcast %cst_7 : f32 to vector<24x768xf32>
    %20 = arith.maximumf %18, %19 : vector<24x768xf32>
    %c767_i32_8 = arith.constant 767 : i32
    %21 = tpu.dynamic_rotate %20 by %c767_i32_8 dim 1 : vector<24x768xf32>, i32 -> vector<24x768xf32>
    %22 = arith.maximumf %20, %21 : vector<24x768xf32>
    %c750_i32_9 = arith.constant 750 : i32
    %23 = tpu.dynamic_rotate %20 by %c750_i32_9 dim 1 : vector<24x768xf32>, i32 -> vector<24x768xf32>
    %24 = arith.maximumf %22, %23 : vector<24x768xf32>
    %c749_i32_10 = arith.constant 749 : i32
    %25 = tpu.dynamic_rotate %20 by %c749_i32_10 dim 1 : vector<24x768xf32>, i32 -> vector<24x768xf32>
    %26 = arith.maximumf %24, %25 : vector<24x768xf32>
    %c766_i32_11 = arith.constant 766 : i32
    %27 = tpu.dynamic_rotate %26 by %c766_i32_11 dim 1 : vector<24x768xf32>, i32 -> vector<24x768xf32>
    %c764_i32 = arith.constant 764 : i32
    %28 = tpu.dynamic_rotate %26 by %c764_i32 dim 1 : vector<24x768xf32>, i32 -> vector<24x768xf32>
    %c732_i32_12 = arith.constant 732 : i32
    %29 = tpu.dynamic_rotate %26 by %c732_i32_12 dim 1 : vector<24x768xf32>, i32 -> vector<24x768xf32>
    %c730_i32_13 = arith.constant 730 : i32
    %30 = tpu.dynamic_rotate %26 by %c730_i32_13 dim 1 : vector<24x768xf32>, i32 -> vector<24x768xf32>
    %c728_i32 = arith.constant 728 : i32
    %31 = tpu.dynamic_rotate %26 by %c728_i32 dim 1 : vector<24x768xf32>, i32 -> vector<24x768xf32>
    %c696_i32 = arith.constant 696 : i32
    %32 = tpu.dynamic_rotate %26 by %c696_i32 dim 1 : vector<24x768xf32>, i32 -> vector<24x768xf32>
    %c694_i32 = arith.constant 694 : i32
    %33 = tpu.dynamic_rotate %26 by %c694_i32 dim 1 : vector<24x768xf32>, i32 -> vector<24x768xf32>
    %c692_i32 = arith.constant 692 : i32
    %34 = tpu.dynamic_rotate %26 by %c692_i32 dim 1 : vector<24x768xf32>, i32 -> vector<24x768xf32>
    %35 = tpu.concatenate %26, %27, %28, %29, %30, %31, %32, %33, %34 in 0 : vector<24x768xf32>, vector<24x768xf32>, vector<24x768xf32>, vector<24x768xf32>, vector<24x768xf32>, vector<24x768xf32>, vector<24x768xf32>, vector<24x768xf32>, vector<24x768xf32> -> vector<216x768xf32>
    %c1 = arith.constant 1 : index
    %c0_14 = arith.constant 0 : index
    %c0_15 = arith.constant 0 : index
    %36 = vector.load %arg2[%c1, %c0_14, %c0_15] : memref<5x32x384xf32, #tpu.memory_space<vmem>>, vector<1x32x384xf32>
    %37 = vector.shape_cast %36 : vector<1x32x384xf32> to vector<32x384xf32>
    %38 = vector.extract_strided_slice %37 {offsets = [0, 0], sizes = [12, 216], strides = [1, 1]} : vector<32x384xf32> to vector<12x216xf32>
    %39 = vector.extract_strided_slice %37 {offsets = [0, 216], sizes = [12, 1], strides = [1, 1]} : vector<32x384xf32> to vector<12x1xf32>
    %cst_16 = arith.constant dense<0.000000e+00> : vector<12x768xf32>
    %40 = tpu.matmul %38, %35, %cst_16 {dimension_numbers = #tpu.dot_dimension_numbers<[1], [0], [0], [1], [0, 0, 1, 1], [], []>} : vector<12x216xf32>, vector<216x768xf32>, vector<12x768xf32> -> vector<12x768xf32>
    %41 = vector.broadcast %39 : vector<12x1xf32> to vector<12x768xf32>
    %42 = arith.addf %40, %41 : vector<12x768xf32>
    %cst_17 = arith.constant 0.000000e+00 : f32
    %43 = vector.broadcast %cst_17 : f32 to vector<12x768xf32>
    %44 = arith.maximumf %42, %43 : vector<12x768xf32>
    %c766_i32_18 = arith.constant 766 : i32
    %45 = tpu.dynamic_rotate %44 by %c766_i32_18 dim 1 : vector<12x768xf32>, i32 -> vector<12x768xf32>
    %46 = arith.maximumf %44, %45 : vector<12x768xf32>
    %c732_i32_19 = arith.constant 732 : i32
    %47 = tpu.dynamic_rotate %44 by %c732_i32_19 dim 1 : vector<12x768xf32>, i32 -> vector<12x768xf32>
    %48 = arith.maximumf %46, %47 : vector<12x768xf32>
    %c730_i32_20 = arith.constant 730 : i32
    %49 = tpu.dynamic_rotate %44 by %c730_i32_20 dim 1 : vector<12x768xf32>, i32 -> vector<12x768xf32>
    %50 = arith.maximumf %48, %49 : vector<12x768xf32>
    %51 = vector.extract_strided_slice %2 {offsets = [0, 0], sizes = [1, 768], strides = [1, 1]} : vector<3x768xf32> to vector<1x768xf32>
    %52 = vector.broadcast %51 : vector<1x768xf32> to vector<12x768xf32>
    %53 = arith.mulf %50, %52 : vector<12x768xf32>
    %c76_i32 = arith.constant 76 : i32
    %54 = tpu.dynamic_rotate %53 by %c76_i32 dim 1 : vector<12x768xf32>, i32 -> vector<12x768xf32>
    %c767_i32_21 = arith.constant 767 : i32
    %55 = tpu.dynamic_rotate %54 by %c767_i32_21 dim 1 : vector<12x768xf32>, i32 -> vector<12x768xf32>
    %c766_i32_22 = arith.constant 766 : i32
    %56 = tpu.dynamic_rotate %54 by %c766_i32_22 dim 1 : vector<12x768xf32>, i32 -> vector<12x768xf32>
    %c765_i32 = arith.constant 765 : i32
    %57 = tpu.dynamic_rotate %54 by %c765_i32 dim 1 : vector<12x768xf32>, i32 -> vector<12x768xf32>
    %c764_i32_23 = arith.constant 764 : i32
    %58 = tpu.dynamic_rotate %54 by %c764_i32_23 dim 1 : vector<12x768xf32>, i32 -> vector<12x768xf32>
    %c750_i32_24 = arith.constant 750 : i32
    %59 = tpu.dynamic_rotate %54 by %c750_i32_24 dim 1 : vector<12x768xf32>, i32 -> vector<12x768xf32>
    %c749_i32_25 = arith.constant 749 : i32
    %60 = tpu.dynamic_rotate %54 by %c749_i32_25 dim 1 : vector<12x768xf32>, i32 -> vector<12x768xf32>
    %c748_i32_26 = arith.constant 748 : i32
    %61 = tpu.dynamic_rotate %54 by %c748_i32_26 dim 1 : vector<12x768xf32>, i32 -> vector<12x768xf32>
    %c747_i32 = arith.constant 747 : i32
    %62 = tpu.dynamic_rotate %54 by %c747_i32 dim 1 : vector<12x768xf32>, i32 -> vector<12x768xf32>
    %c746_i32 = arith.constant 746 : i32
    %63 = tpu.dynamic_rotate %54 by %c746_i32 dim 1 : vector<12x768xf32>, i32 -> vector<12x768xf32>
    %c732_i32_27 = arith.constant 732 : i32
    %64 = tpu.dynamic_rotate %54 by %c732_i32_27 dim 1 : vector<12x768xf32>, i32 -> vector<12x768xf32>
    %c731_i32_28 = arith.constant 731 : i32
    %65 = tpu.dynamic_rotate %54 by %c731_i32_28 dim 1 : vector<12x768xf32>, i32 -> vector<12x768xf32>
    %c730_i32_29 = arith.constant 730 : i32
    %66 = tpu.dynamic_rotate %54 by %c730_i32_29 dim 1 : vector<12x768xf32>, i32 -> vector<12x768xf32>
    %c729_i32 = arith.constant 729 : i32
    %67 = tpu.dynamic_rotate %54 by %c729_i32 dim 1 : vector<12x768xf32>, i32 -> vector<12x768xf32>
    %c728_i32_30 = arith.constant 728 : i32
    %68 = tpu.dynamic_rotate %54 by %c728_i32_30 dim 1 : vector<12x768xf32>, i32 -> vector<12x768xf32>
    %c714_i32 = arith.constant 714 : i32
    %69 = tpu.dynamic_rotate %54 by %c714_i32 dim 1 : vector<12x768xf32>, i32 -> vector<12x768xf32>
    %c713_i32 = arith.constant 713 : i32
    %70 = tpu.dynamic_rotate %54 by %c713_i32 dim 1 : vector<12x768xf32>, i32 -> vector<12x768xf32>
    %c712_i32 = arith.constant 712 : i32
    %71 = tpu.dynamic_rotate %54 by %c712_i32 dim 1 : vector<12x768xf32>, i32 -> vector<12x768xf32>
    %c711_i32 = arith.constant 711 : i32
    %72 = tpu.dynamic_rotate %54 by %c711_i32 dim 1 : vector<12x768xf32>, i32 -> vector<12x768xf32>
    %c710_i32 = arith.constant 710 : i32
    %73 = tpu.dynamic_rotate %54 by %c710_i32 dim 1 : vector<12x768xf32>, i32 -> vector<12x768xf32>
    %c696_i32_31 = arith.constant 696 : i32
    %74 = tpu.dynamic_rotate %54 by %c696_i32_31 dim 1 : vector<12x768xf32>, i32 -> vector<12x768xf32>
    %c695_i32 = arith.constant 695 : i32
    %75 = tpu.dynamic_rotate %54 by %c695_i32 dim 1 : vector<12x768xf32>, i32 -> vector<12x768xf32>
    %c694_i32_32 = arith.constant 694 : i32
    %76 = tpu.dynamic_rotate %54 by %c694_i32_32 dim 1 : vector<12x768xf32>, i32 -> vector<12x768xf32>
    %c693_i32 = arith.constant 693 : i32
    %77 = tpu.dynamic_rotate %54 by %c693_i32 dim 1 : vector<12x768xf32>, i32 -> vector<12x768xf32>
    %c692_i32_33 = arith.constant 692 : i32
    %78 = tpu.dynamic_rotate %54 by %c692_i32_33 dim 1 : vector<12x768xf32>, i32 -> vector<12x768xf32>
    %79 = tpu.concatenate %54, %55, %56, %57, %58, %59, %60, %61, %62, %63, %64, %65, %66, %67, %68, %69 in 0 : vector<12x768xf32>, vector<12x768xf32>, vector<12x768xf32>, vector<12x768xf32>, vector<12x768xf32>, vector<12x768xf32>, vector<12x768xf32>, vector<12x768xf32>, vector<12x768xf32>, vector<12x768xf32>, vector<12x768xf32>, vector<12x768xf32>, vector<12x768xf32>, vector<12x768xf32>, vector<12x768xf32>, vector<12x768xf32> -> vector<192x768xf32>
    %80 = tpu.concatenate %70, %71, %72, %73, %74, %75, %76, %77, %78 in 0 : vector<12x768xf32>, vector<12x768xf32>, vector<12x768xf32>, vector<12x768xf32>, vector<12x768xf32>, vector<12x768xf32>, vector<12x768xf32>, vector<12x768xf32>, vector<12x768xf32> -> vector<108x768xf32>
    %81 = tpu.concatenate %79, %80 in 0 : vector<192x768xf32>, vector<108x768xf32> -> vector<300x768xf32>
    %c2 = arith.constant 2 : index
    %c0_34 = arith.constant 0 : index
    %c0_35 = arith.constant 0 : index
    %82 = vector.load %arg2[%c2, %c0_34, %c0_35] : memref<5x32x384xf32, #tpu.memory_space<vmem>>, vector<1x32x384xf32>
    %83 = vector.shape_cast %82 : vector<1x32x384xf32> to vector<32x384xf32>
    %84 = vector.extract_strided_slice %83 {offsets = [0, 0], sizes = [12, 300], strides = [1, 1]} : vector<32x384xf32> to vector<12x300xf32>
    %85 = vector.extract_strided_slice %83 {offsets = [0, 300], sizes = [12, 1], strides = [1, 1]} : vector<32x384xf32> to vector<12x1xf32>
    %cst_36 = arith.constant dense<0.000000e+00> : vector<12x768xf32>
    %86 = tpu.matmul %84, %81, %cst_36 {dimension_numbers = #tpu.dot_dimension_numbers<[1], [0], [0], [1], [0, 0, 1, 1], [], []>} : vector<12x300xf32>, vector<300x768xf32>, vector<12x768xf32> -> vector<12x768xf32>
    %87 = vector.broadcast %85 : vector<12x1xf32> to vector<12x768xf32>
    %88 = arith.addf %86, %87 : vector<12x768xf32>
    %cst_37 = arith.constant 0.000000e+00 : f32
    %89 = vector.broadcast %cst_37 : f32 to vector<12x768xf32>
    %90 = arith.maximumf %88, %89 : vector<12x768xf32>
    %91 = vector.extract_strided_slice %2 {offsets = [1, 0], sizes = [1, 768], strides = [1, 1]} : vector<3x768xf32> to vector<1x768xf32>
    %92 = vector.broadcast %91 : vector<1x768xf32> to vector<12x768xf32>
    %93 = arith.mulf %90, %92 : vector<12x768xf32>
    %c57_i32 = arith.constant 57 : i32
    %94 = tpu.dynamic_rotate %93 by %c57_i32 dim 1 : vector<12x768xf32>, i32 -> vector<12x768xf32>
    %c767_i32_38 = arith.constant 767 : i32
    %95 = tpu.dynamic_rotate %94 by %c767_i32_38 dim 1 : vector<12x768xf32>, i32 -> vector<12x768xf32>
    %c766_i32_39 = arith.constant 766 : i32
    %96 = tpu.dynamic_rotate %94 by %c766_i32_39 dim 1 : vector<12x768xf32>, i32 -> vector<12x768xf32>
    %c765_i32_40 = arith.constant 765 : i32
    %97 = tpu.dynamic_rotate %94 by %c765_i32_40 dim 1 : vector<12x768xf32>, i32 -> vector<12x768xf32>
    %c750_i32_41 = arith.constant 750 : i32
    %98 = tpu.dynamic_rotate %94 by %c750_i32_41 dim 1 : vector<12x768xf32>, i32 -> vector<12x768xf32>
    %c749_i32_42 = arith.constant 749 : i32
    %99 = tpu.dynamic_rotate %94 by %c749_i32_42 dim 1 : vector<12x768xf32>, i32 -> vector<12x768xf32>
    %c748_i32_43 = arith.constant 748 : i32
    %100 = tpu.dynamic_rotate %94 by %c748_i32_43 dim 1 : vector<12x768xf32>, i32 -> vector<12x768xf32>
    %c747_i32_44 = arith.constant 747 : i32
    %101 = tpu.dynamic_rotate %94 by %c747_i32_44 dim 1 : vector<12x768xf32>, i32 -> vector<12x768xf32>
    %c732_i32_45 = arith.constant 732 : i32
    %102 = tpu.dynamic_rotate %94 by %c732_i32_45 dim 1 : vector<12x768xf32>, i32 -> vector<12x768xf32>
    %c731_i32_46 = arith.constant 731 : i32
    %103 = tpu.dynamic_rotate %94 by %c731_i32_46 dim 1 : vector<12x768xf32>, i32 -> vector<12x768xf32>
    %c730_i32_47 = arith.constant 730 : i32
    %104 = tpu.dynamic_rotate %94 by %c730_i32_47 dim 1 : vector<12x768xf32>, i32 -> vector<12x768xf32>
    %c729_i32_48 = arith.constant 729 : i32
    %105 = tpu.dynamic_rotate %94 by %c729_i32_48 dim 1 : vector<12x768xf32>, i32 -> vector<12x768xf32>
    %c714_i32_49 = arith.constant 714 : i32
    %106 = tpu.dynamic_rotate %94 by %c714_i32_49 dim 1 : vector<12x768xf32>, i32 -> vector<12x768xf32>
    %c713_i32_50 = arith.constant 713 : i32
    %107 = tpu.dynamic_rotate %94 by %c713_i32_50 dim 1 : vector<12x768xf32>, i32 -> vector<12x768xf32>
    %c712_i32_51 = arith.constant 712 : i32
    %108 = tpu.dynamic_rotate %94 by %c712_i32_51 dim 1 : vector<12x768xf32>, i32 -> vector<12x768xf32>
    %c711_i32_52 = arith.constant 711 : i32
    %109 = tpu.dynamic_rotate %94 by %c711_i32_52 dim 1 : vector<12x768xf32>, i32 -> vector<12x768xf32>
    %110 = tpu.concatenate %94, %95, %96, %97, %98, %99, %100, %101, %102, %103, %104, %105, %106, %107, %108, %109 in 0 : vector<12x768xf32>, vector<12x768xf32>, vector<12x768xf32>, vector<12x768xf32>, vector<12x768xf32>, vector<12x768xf32>, vector<12x768xf32>, vector<12x768xf32>, vector<12x768xf32>, vector<12x768xf32>, vector<12x768xf32>, vector<12x768xf32>, vector<12x768xf32>, vector<12x768xf32>, vector<12x768xf32>, vector<12x768xf32> -> vector<192x768xf32>
    %c3 = arith.constant 3 : index
    %c0_53 = arith.constant 0 : index
    %c0_54 = arith.constant 0 : index
    %111 = vector.load %arg2[%c3, %c0_53, %c0_54] : memref<5x32x384xf32, #tpu.memory_space<vmem>>, vector<1x32x384xf32>
    %112 = vector.shape_cast %111 : vector<1x32x384xf32> to vector<32x384xf32>
    %113 = vector.extract_strided_slice %112 {offsets = [0, 0], sizes = [24, 192], strides = [1, 1]} : vector<32x384xf32> to vector<24x192xf32>
    %114 = vector.extract_strided_slice %112 {offsets = [0, 192], sizes = [24, 1], strides = [1, 1]} : vector<32x384xf32> to vector<24x1xf32>
    %cst_55 = arith.constant dense<0.000000e+00> : vector<24x768xf32>
    %115 = tpu.matmul %113, %110, %cst_55 {dimension_numbers = #tpu.dot_dimension_numbers<[1], [0], [0], [1], [0, 0, 1, 1], [], []>} : vector<24x192xf32>, vector<192x768xf32>, vector<24x768xf32> -> vector<24x768xf32>
    %116 = vector.broadcast %114 : vector<24x1xf32> to vector<24x768xf32>
    %117 = arith.addf %115, %116 : vector<24x768xf32>
    %cst_56 = arith.constant 0.000000e+00 : f32
    %118 = vector.broadcast %cst_56 : f32 to vector<24x768xf32>
    %119 = arith.maximumf %117, %118 : vector<24x768xf32>
    %120 = vector.extract_strided_slice %2 {offsets = [2, 0], sizes = [1, 768], strides = [1, 1]} : vector<3x768xf32> to vector<1x768xf32>
    %121 = vector.broadcast %120 : vector<1x768xf32> to vector<24x768xf32>
    %122 = arith.mulf %119, %121 : vector<24x768xf32>
    %c38_i32 = arith.constant 38 : i32
    %123 = tpu.dynamic_rotate %122 by %c38_i32 dim 1 : vector<24x768xf32>, i32 -> vector<24x768xf32>
    %c767_i32_57 = arith.constant 767 : i32
    %124 = tpu.dynamic_rotate %123 by %c767_i32_57 dim 1 : vector<24x768xf32>, i32 -> vector<24x768xf32>
    %c766_i32_58 = arith.constant 766 : i32
    %125 = tpu.dynamic_rotate %123 by %c766_i32_58 dim 1 : vector<24x768xf32>, i32 -> vector<24x768xf32>
    %c750_i32_59 = arith.constant 750 : i32
    %126 = tpu.dynamic_rotate %123 by %c750_i32_59 dim 1 : vector<24x768xf32>, i32 -> vector<24x768xf32>
    %c749_i32_60 = arith.constant 749 : i32
    %127 = tpu.dynamic_rotate %123 by %c749_i32_60 dim 1 : vector<24x768xf32>, i32 -> vector<24x768xf32>
    %c748_i32_61 = arith.constant 748 : i32
    %128 = tpu.dynamic_rotate %123 by %c748_i32_61 dim 1 : vector<24x768xf32>, i32 -> vector<24x768xf32>
    %c732_i32_62 = arith.constant 732 : i32
    %129 = tpu.dynamic_rotate %123 by %c732_i32_62 dim 1 : vector<24x768xf32>, i32 -> vector<24x768xf32>
    %c731_i32_63 = arith.constant 731 : i32
    %130 = tpu.dynamic_rotate %123 by %c731_i32_63 dim 1 : vector<24x768xf32>, i32 -> vector<24x768xf32>
    %c730_i32_64 = arith.constant 730 : i32
    %131 = tpu.dynamic_rotate %123 by %c730_i32_64 dim 1 : vector<24x768xf32>, i32 -> vector<24x768xf32>
    %132 = tpu.concatenate %123, %124, %125, %126, %127, %128, %129, %130, %131 in 0 : vector<24x768xf32>, vector<24x768xf32>, vector<24x768xf32>, vector<24x768xf32>, vector<24x768xf32>, vector<24x768xf32>, vector<24x768xf32>, vector<24x768xf32>, vector<24x768xf32> -> vector<216x768xf32>
    %c4 = arith.constant 4 : index
    %c0_65 = arith.constant 0 : index
    %c0_66 = arith.constant 0 : index
    %133 = vector.load %arg2[%c4, %c0_65, %c0_66] : memref<5x32x384xf32, #tpu.memory_space<vmem>>, vector<1x32x384xf32>
    %134 = vector.shape_cast %133 : vector<1x32x384xf32> to vector<32x384xf32>
    %135 = vector.extract_strided_slice %134 {offsets = [0, 0], sizes = [1, 216], strides = [1, 1]} : vector<32x384xf32> to vector<1x216xf32>
    %136 = vector.extract_strided_slice %134 {offsets = [0, 216], sizes = [1, 1], strides = [1, 1]} : vector<32x384xf32> to vector<1x1xf32>
    %cst_67 = arith.constant dense<0.000000e+00> : vector<1x768xf32>
    %137 = tpu.matmul %135, %132, %cst_67 {dimension_numbers = #tpu.dot_dimension_numbers<[1], [0], [0], [1], [0, 0, 1, 1], [], []>} : vector<1x216xf32>, vector<216x768xf32>, vector<1x768xf32> -> vector<1x768xf32>
    %138 = vector.broadcast %136 : vector<1x1xf32> to vector<1x768xf32>
    %139 = arith.addf %137, %138 : vector<1x768xf32>
    %140 = math.tanh %139 : vector<1x768xf32>
    %c0_68 = arith.constant 0 : index
    %c0_69 = arith.constant 0 : index
    %c0_70 = arith.constant 0 : index
    %141 = vector.load %arg4[%c0_68, %c0_69, %c0_70] : memref<1x1x768xf32, #tpu.memory_space<vmem>>, vector<1x1x768xf32>
    %142 = vector.shape_cast %141 : vector<1x1x768xf32> to vector<1x768xf32>
    %143 = vector.shape_cast %140 : vector<1x768xf32> to vector<1x1x768xf32>
    tpu.vector_store %arg4[%c0_68, %c0_69, %c0_70], %143 {strides = array<i32>} : memref<1x1x768xf32, #tpu.memory_space<vmem>>, vector<1x1x768xf32>,
    return
  }
  func.func @transform_0(%arg0: i32) -> (i32, i32, i32) {
    %c0_i32 = arith.constant 0 : i32
    %c0_i32_0 = arith.constant 0 : i32
    %c0_i32_1 = arith.constant 0 : i32
    return %arg0, %c0_i32, %c0_i32_0 : i32, i32, i32
  }
  func.func @transform_1(%arg0: i32) -> (i32, i32, i32) {
    %c0_i32 = arith.constant 0 : i32
    %c0_i32_0 = arith.constant 0 : i32
    %c0_i32_1 = arith.constant 0 : i32
    %c0_i32_2 = arith.constant 0 : i32
    return %c0_i32, %c0_i32_0, %c0_i32_1 : i32, i32, i32
  }
  func.func @transform_2(%arg0: i32) -> (i32, i32) {
    %c0_i32 = arith.constant 0 : i32
    %c0_i32_0 = arith.constant 0 : i32
    %c0_i32_1 = arith.constant 0 : i32
    return %c0_i32, %c0_i32_0 : i32, i32
  }
  func.func @transform_3(%arg0: i32) -> (i32, i32, i32) {
    %c0_i32 = arith.constant 0 : i32
    %c0_i32_0 = arith.constant 0 : i32
    %c0_i32_1 = arith.constant 0 : i32
    return %arg0, %c0_i32, %c0_i32_0 : i32, i32, i32
  }
}

</mosaic_0001>

<llo_original>
// kernel: mnist_ae_forward.1
$region0: #{mnist_ae_forward.1}
  #allocation0 [shape = 'u32[]', space=smem, size = 0x4, offset = 0x4, fixed_abs, tag = 'smem constant byte address 0x4 - core index']
  #allocation1 [shape = 'u32[144,128]{1,0:T(1,128)}', space=vmem, size = 0x12000, scoped, tag = 'internal scratch']
  %s0 = inlined_call_operand.vmem [shape: f32[1,1,768], index: 0, kind: input, shape index: {}]
  %s1 = inlined_call_operand.hbm [shape: f32[5,32,384], index: 1, kind: input, shape index: {}]
  %s2 = inlined_call_operand.vmem [shape: f32[3,768], index: 2, kind: input, shape index: {}]
  %s3 = inlined_call_operand.vmem [shape: f32[1,1,768], index: 3, kind: output, shape index: {}]
  %s4 = sld [smem:[#allocation0]]
  $region26: #{mnist_ae_forward.1} parent=0
    _
  %s6 = ssub.s32 1, %s4
  %s7 = scalar_select 0, %s6, %s4
  $region1: #{mnist_ae_forward.1} parent=0
    #allocation2 [shape = 'u8[245760]{0}', space=vmem, size = 0x3c000, scoped, tag = 'input window, operand 1, single buffered']
    #allocation3 [shape = 's32[1]{0}', space=sflag, size = 0x4, scoped, tag = 'scoped memory for mnist_ae_forward.1']
    %8 = vsyncpa [#allocation3], 0
    // Predicated region
    $region2: #{mnist_ae_forward.1} parent=1 // pred_check
      _
    $region3: #{mnist_ae_forward.1} parent=1 // pred_check_branch
      %10 = sbr.rel (0) target = $region5
    $region4: #{mnist_ae_forward.1} parent=1 // pred_region
      _
    $region5: #{mnist_ae_forward.1} parent=1 // pred_fallthru
      _
    // Predicated region
    $region6: #{mnist_ae_forward.1} parent=1 // pred_check
      _
    $region7: #{mnist_ae_forward.1} parent=1 // pred_check_branch
      %12 = sbr.rel (0) target = $region9
    $region8: #{mnist_ae_forward.1} parent=1 // pred_region
      %s14 = ssub.s32 7680, 7680
      %15 = vsyncadd [#allocation3], %s14
      %s16 = sshll.u32 [#allocation2], 4
      %s17 = int_to_ptr.vmem [resolvable:$true] %s16
      %22 = dma.hbm_to_vmem [thread:$0]  %s1, 7680, %s17, [#allocation3], 384, 384, 24
    $region9: #{mnist_ae_forward.1} parent=1 // pred_fallthru
      _
    // Predicated region
    $region10: #{mnist_ae_forward.1} parent=1 // pred_check
      _
    $region11: #{mnist_ae_forward.1} parent=1 // pred_check_branch
      %24 = sbr.rel (0) target = $region13
    $region12: #{mnist_ae_forward.1} parent=1 // pred_region
      _
    $region13: #{mnist_ae_forward.1} parent=1 // pred_fallthru
      _
    // Predicated region
    $region14: #{mnist_ae_forward.1} parent=1 // pred_check
      _
    $region15: #{mnist_ae_forward.1} parent=1 // pred_check_branch
      %26 = sbr.rel (0) target = $region17
    $region16: #{mnist_ae_forward.1} parent=1 // pred_region
      %27 = dma.done [#allocation3], 7680
    $region17: #{mnist_ae_forward.1} parent=1 // pred_fallthru
      _
    %v28 = vld [vmem:[%s0] sm:$0x3f]
    %v29 = vld [vmem:[%s2] sm:$0x77]
    %v30 = vld [vmem:[%s2 + $0x8] sm:$0x77]
    %v31 = vld [vmem:[%s2 + $0x10] sm:$0x77]
    %v33 = vlaneseq
    %v34 = vshrl.u32 %v33, 7
    %v35 = vsub.s32 0, %v34
    %v36 = vrot.slane %v28, %v35
    %v37 = vlaneseq
    %v38 = vshrl.u32 %v37, 7
    %v39 = vsub.s32 1, %v38
    %v40 = vrot.slane %v28, %v39
    %v41 = vlaneseq
    %v42 = vshrl.u32 %v41, 7
    %v43 = vsub.s32 2, %v42
    %v44 = vrot.slane %v28, %v43
    %v45 = vlaneseq
    %v46 = vshrl.u32 %v45, 7
    %v47 = vsub.s32 3, %v46
    %v48 = vrot.slane %v28, %v47
    %v49 = vlaneseq
    %v50 = vshrl.u32 %v49, 7
    %v51 = vsub.s32 4, %v50
    %v52 = vrot.slane %v28, %v51
    %v53 = vlaneseq
    %v54 = vshrl.u32 %v53, 7
    %v55 = vsub.s32 5, %v54
    %v56 = vrot.slane %v28, %v55
    %63 = vrot.lane.b32.xlu0 %v36, 127
    %v64 = vpop.permute.xlu0 %63
    %65 = vrot.lane.b32.xlu0 %v40, 127
    %v66 = vpop.permute.xlu0 %65
    %67 = vrot.lane.b32.xlu0 %v44, 127
    %v68 = vpop.permute.xlu0 %67
    %69 = vrot.lane.b32.xlu0 %v48, 127
    %v70 = vpop.permute.xlu0 %69
    %71 = vrot.lane.b32.xlu0 %v52, 127
    %v72 = vpop.permute.xlu0 %71
    %73 = vrot.lane.b32.xlu0 %v56, 127
    %v74 = vpop.permute.xlu0 %73
    %v75 = vlaneseq
    %v76 = vand.u32 %v75, 127
    %vm77 = vcmp.lt.s32.totalorder %v76, 127
    %v78 = vsel %vm77, %v72, %v74
    %v79 = vsel %vm77, %v70, %v72
    %v80 = vsel %vm77, %v68, %v70
    %v81 = vsel %vm77, %v66, %v68
    %v82 = vsel %vm77, %v64, %v66
    %v83 = vsel %vm77, %v74, %v64
    %84 = vrot.lane.b32.xlu0 %v36, 126
    %v85 = vpop.permute.xlu0 %84
    %86 = vrot.lane.b32.xlu0 %v40, 126
    %v87 = vpop.permute.xlu0 %86
    %88 = vrot.lane.b32.xlu0 %v44, 126
    %v89 = vpop.permute.xlu0 %88
    %90 = vrot.lane.b32.xlu0 %v48, 126
    %v91 = vpop.permute.xlu0 %90
    %92 = vrot.lane.b32.xlu0 %v52, 126
    %v93 = vpop.permute.xlu0 %92
    %94 = vrot.lane.b32.xlu0 %v56, 126
    %v95 = vpop.permute.xlu0 %94
    %vm96 = vcmp.lt.s32.totalorder %v76, 126
    %v97 = vsel %vm96, %v93, %v95
    %v98 = vsel %vm96, %v91, %v93
    %v99 = vsel %vm96, %v89, %v91
    %v100 = vsel %vm96, %v87, %v89
    %v101 = vsel %vm96, %v85, %v87
    %v102 = vsel %vm96, %v95, %v85
    %103 = vrot.lane.b32.xlu0 %v36, 110
    %v104 = vpop.permute.xlu0 %103
    %105 = vrot.lane.b32.xlu0 %v40, 110
    %v106 = vpop.permute.xlu0 %105
    %107 = vrot.lane.b32.xlu0 %v44, 110
    %v108 = vpop.permute.xlu0 %107
    %109 = vrot.lane.b32.xlu0 %v48, 110
    %v110 = vpop.permute.xlu0 %109
    %111 = vrot.lane.b32.xlu0 %v52, 110
    %v112 = vpop.permute.xlu0 %111
    %113 = vrot.lane.b32.xlu0 %v56, 110
    %v114 = vpop.permute.xlu0 %113
    %vm115 = vcmp.lt.s32.totalorder %v76, 110
    %v116 = vsel %vm115, %v112, %v114
    %v117 = vsel %vm115, %v110, %v112
    %v118 = vsel %vm115, %v108, %v110
    %v119 = vsel %vm115, %v106, %v108
    %v120 = vsel %vm115, %v104, %v106
    %v121 = vsel %vm115, %v114, %v104
    %122 = vrot.lane.b32.xlu0 %v36, 109
    %v123 = vpop.permute.xlu0 %122
    %124 = vrot.lane.b32.xlu0 %v40, 109
    %v125 = vpop.permute.xlu0 %124
    %126 = vrot.lane.b32.xlu0 %v44, 109
    %v127 = vpop.permute.xlu0 %126
    %128 = vrot.lane.b32.xlu0 %v48, 109
    %v129 = vpop.permute.xlu0 %128
    %130 = vrot.lane.b32.xlu0 %v52, 109
    %v131 = vpop.permute.xlu0 %130
    %132 = vrot.lane.b32.xlu0 %v56, 109
    %v133 = vpop.permute.xlu0 %132
    %vm134 = vcmp.lt.s32.totalorder %v76, 109
    %v135 = vsel %vm134, %v131, %v133
    %v136 = vsel %vm134, %v129, %v131
    %v137 = vsel %vm134, %v127, %v129
    %v138 = vsel %vm134, %v125, %v127
    %v139 = vsel %vm134, %v123, %v125
    %v140 = vsel %vm134, %v133, %v123
    %141 = vrot.lane.b32.xlu0 %v36, 108
    %v142 = vpop.permute.xlu0 %141
    %143 = vrot.lane.b32.xlu0 %v40, 108
    %v144 = vpop.permute.xlu0 %143
    %145 = vrot.lane.b32.xlu0 %v44, 108
    %v146 = vpop.permute.xlu0 %145
    %147 = vrot.lane.b32.xlu0 %v48, 108
    %v148 = vpop.permute.xlu0 %147
    %149 = vrot.lane.b32.xlu0 %v52, 108
    %v150 = vpop.permute.xlu0 %149
    %151 = vrot.lane.b32.xlu0 %v56, 108
    %v152 = vpop.permute.xlu0 %151
    %vm153 = vcmp.lt.s32.totalorder %v76, 108
    %v154 = vsel %vm153, %v150, %v152
    %v155 = vsel %vm153, %v148, %v150
    %v156 = vsel %vm153, %v146, %v148
    %v157 = vsel %vm153, %v144, %v146
    %v158 = vsel %vm153, %v142, %v144
    %v159 = vsel %vm153, %v152, %v142
    %160 = vrot.lane.b32.xlu0 %v36, 92
    %v161 = vpop.permute.xlu0 %160
    %162 = vrot.lane.b32.xlu0 %v40, 92
    %v163 = vpop.permute.xlu0 %162
    %164 = vrot.lane.b32.xlu0 %v44, 92
    %v165 = vpop.permute.xlu0 %164
    %166 = vrot.lane.b32.xlu0 %v48, 92
    %v167 = vpop.permute.xlu0 %166
    %168 = vrot.lane.b32.xlu0 %v52, 92
    %v169 = vpop.permute.xlu0 %168
    %170 = vrot.lane.b32.xlu0 %v56, 92
    %v171 = vpop.permute.xlu0 %170
    %vm172 = vcmp.lt.s32.totalorder %v76, 92
    %v173 = vsel %vm172, %v169, %v171
    %v174 = vsel %vm172, %v167, %v169
    %v175 = vsel %vm172, %v165, %v167
    %v176 = vsel %vm172, %v163, %v165
    %v177 = vsel %vm172, %v161, %v163
    %v178 = vsel %vm172, %v171, %v161
    %179 = vrot.lane.b32.xlu0 %v36, 91
    %v180 = vpop.permute.xlu0 %179
    %181 = vrot.lane.b32.xlu0 %v40, 91
    %v182 = vpop.permute.xlu0 %181
    %183 = vrot.lane.b32.xlu0 %v44, 91
    %v184 = vpop.permute.xlu0 %183
    %185 = vrot.lane.b32.xlu0 %v48, 91
    %v186 = vpop.permute.xlu0 %185
    %187 = vrot.lane.b32.xlu0 %v52, 91
    %v188 = vpop.permute.xlu0 %187
    %189 = vrot.lane.b32.xlu0 %v56, 91
    %v190 = vpop.permute.xlu0 %189
    %vm191 = vcmp.lt.s32.totalorder %v76, 91
    %v192 = vsel %vm191, %v188, %v190
    %v193 = vsel %vm191, %v186, %v188
    %v194 = vsel %vm191, %v184, %v186
    %v195 = vsel %vm191, %v182, %v184
    %v196 = vsel %vm191, %v180, %v182
    %v197 = vsel %vm191, %v190, %v180
    %198 = vrot.lane.b32.xlu0 %v36, 90
    %v199 = vpop.permute.xlu0 %198
    %200 = vrot.lane.b32.xlu0 %v40, 90
    %v201 = vpop.permute.xlu0 %200
    %202 = vrot.lane.b32.xlu0 %v44, 90
    %v203 = vpop.permute.xlu0 %202
    %204 = vrot.lane.b32.xlu0 %v48, 90
    %v205 = vpop.permute.xlu0 %204
    %206 = vrot.lane.b32.xlu0 %v52, 90
    %v207 = vpop.permute.xlu0 %206
    %208 = vrot.lane.b32.xlu0 %v56, 90
    %v209 = vpop.permute.xlu0 %208
    %vm210 = vcmp.lt.s32.totalorder %v76, 90
    %v211 = vsel %vm210, %v207, %v209
    %v212 = vsel %vm210, %v205, %v207
    %v213 = vsel %vm210, %v203, %v205
    %v214 = vsel %vm210, %v201, %v203
    %v215 = vsel %vm210, %v199, %v201
    %v216 = vsel %vm210, %v209, %v199
    %v223 = vrot.slane %v82, 7
    %v224 = vrot.slane %v81, 7
    %v225 = vrot.slane %v80, 7
    %v226 = vrot.slane %v79, 7
    %v227 = vrot.slane %v78, 7
    %v228 = vrot.slane %v83, 7
    %v241 = vrot.slane %v101, 6
    %v242 = vrot.slane %v100, 6
    %v243 = vrot.slane %v99, 6
    %v244 = vrot.slane %v98, 6
    %v245 = vrot.slane %v97, 6
    %v246 = vrot.slane %v102, 6
    %v259 = vrot.slane %v120, 5
    %v260 = vrot.slane %v119, 5
    %v261 = vrot.slane %v118, 5
    %v262 = vrot.slane %v117, 5
    %v263 = vrot.slane %v116, 5
    %v264 = vrot.slane %v121, 5
    %v277 = vrot.slane %v139, 4
    %v278 = vrot.slane %v138, 4
    %v279 = vrot.slane %v137, 4
    %v280 = vrot.slane %v136, 4
    %v281 = vrot.slane %v135, 4
    %v282 = vrot.slane %v140, 4
    %v295 = vrot.slane %v158, 3
    %v296 = vrot.slane %v157, 3
    %v297 = vrot.slane %v156, 3
    %v298 = vrot.slane %v155, 3
    %v299 = vrot.slane %v154, 3
    %v300 = vrot.slane %v159, 3
    %v313 = vrot.slane %v177, 2
    %v314 = vrot.slane %v176, 2
    %v315 = vrot.slane %v175, 2
    %v316 = vrot.slane %v174, 2
    %v317 = vrot.slane %v173, 2
    %v318 = vrot.slane %v178, 2
    %v331 = vrot.slane %v196, 1
    %v332 = vrot.slane %v195, 1
    %v333 = vrot.slane %v194, 1
    %v334 = vrot.slane %v193, 1
    %v335 = vrot.slane %v192, 1
    %v336 = vrot.slane %v197, 1
    %vm343 = vcmask 1040384
    %v344 = vsel %vm343, %v36, %v223
    %v345 = vsel %vm343, %v40, %v224
    %v346 = vsel %vm343, %v44, %v225
    %v347 = vsel %vm343, %v48, %v226
    %v348 = vsel %vm343, %v52, %v227
    %v349 = vsel %vm343, %v56, %v228
    %vm350 = vcmask 1041408
    %v351 = vsel %vm350, %v344, %v241
    %v352 = vsel %vm350, %v345, %v242
    %v353 = vsel %vm350, %v346, %v243
    %v354 = vsel %vm350, %v347, %v244
    %v355 = vsel %vm350, %v348, %v245
    %v356 = vsel %vm350, %v349, %v246
    %vm357 = vcmask 1042432
    %v358 = vsel %vm357, %v351, %v259
    %v359 = vsel %vm357, %v352, %v260
    %v360 = vsel %vm357, %v353, %v261
    %v361 = vsel %vm357, %v354, %v262
    %v362 = vsel %vm357, %v355, %v263
    %v363 = vsel %vm357, %v356, %v264
    %vm364 = vcmask 1043456
    %v365 = vsel %vm364, %v358, %v277
    %v366 = vsel %vm364, %v359, %v278
    %v367 = vsel %vm364, %v360, %v279
    %v368 = vsel %vm364, %v361, %v280
    %v369 = vsel %vm364, %v362, %v281
    %v370 = vsel %vm364, %v363, %v282
    %vm371 = vcmask 1044480
    %v372 = vsel %vm371, %v365, %v295
    %v373 = vsel %vm371, %v366, %v296
    %v374 = vsel %vm371, %v367, %v297
    %v375 = vsel %vm371, %v368, %v298
    %v376 = vsel %vm371, %v369, %v299
    %v377 = vsel %vm371, %v370, %v300
    %vm378 = vcmask 1045504
    %v379 = vsel %vm378, %v372, %v313
    %v380 = vsel %vm378, %v373, %v314
    %v381 = vsel %vm378, %v374, %v315
    %v382 = vsel %vm378, %v375, %v316
    %v383 = vsel %vm378, %v376, %v317
    %v384 = vsel %vm378, %v377, %v318
    %vm385 = vcmask 1046528
    %v386 = vsel %vm385, %v379, %v331
    %v387 = vsel %vm385, %v380, %v332
    %v388 = vsel %vm385, %v381, %v333
    %v389 = vsel %vm385, %v382, %v334
    %v390 = vsel %vm385, %v383, %v335
    %v391 = vsel %vm385, %v384, %v336
    %v392 = vld [vmem:[#allocation2] sm:$0xff]
    %v393 = vld [vmem:[#allocation2 + $0x18] sm:$0xff]
    %v394 = vld [vmem:[#allocation2 + $0x30] sm:$0xff]
    %396 = vset.pattern.permute.xlu0 9
    %397 = vperm.xlu0 %396, %v392
    %v398 = vpop.permute.xlu0 %397
    %401 = vset.pattern.permute.xlu0 9
    %402 = vperm.xlu0 %401, %v393
    %v403 = vpop.permute.xlu0 %402
    %406 = vset.pattern.permute.xlu0 9
    %407 = vperm.xlu0 %406, %v394
    %v408 = vpop.permute.xlu0 %407
    %vm410 = vcmask 72704
    %v411 = vsel %vm410, %v392, 0
    %v413 = vsel %vm410, %v393, 0
    %v415 = vsel %vm410, %v394, 0
    %v418 = vsel %vm343, %v215, 0
    %v421 = vsel %vm343, %v214, 0
    %v424 = vsel %vm343, %v213, 0
    %v427 = vsel %vm343, %v212, 0
    %v430 = vsel %vm343, %v211, 0
    %v433 = vsel %vm343, %v216, 0
    %435 = vmatprep.subr.mxu0 %v387
    %436 = vmatpush1.msra.mxu0 %v386
    %437 = vmatprep.subr.mxu0 %v421
    %438 = vmatpush1.msra.mxu0 %v418
    %439 = vmatprep.subr.mxu0 0.0
    %440 = vmatpush1.msra.mxu0 0.0
    %441 = vmatprep.subr.mxu0 0.0
    %442 = vmatpush1.msra.mxu0 0.0
    %443 = vmatprep.subr.mxu0 0.0
    %444 = vmatpush1.msra.mxu0 0.0
    %445 = vmatprep.subr.mxu0 0.0
    %446 = vmatpush1.msra.mxu0 0.0
    %447 = vmatprep.subr.mxu0 0.0
    %448 = vmatpush1.msra.mxu0 0.0
    %449 = vmatprep.subr.mxu0 0.0
    %450 = vmatpush1.msra.mxu0 0.0
    %451 = vmatprep.subr.mxu0 0.0
    %452 = vmatpush1.msra.mxu0 0.0
    %453 = vmatprep.subr.mxu0 0.0
    %454 = vmatpush1.msra.mxu0 0.0
    %455 = vmatprep.subr.mxu0 0.0
    %456 = vmatpush1.msra.mxu0 0.0
    %457 = vmatprep.subr.mxu0 0.0
    %458 = vmatpush1.msra.mxu0 0.0
    %459 = vmatprep.subr.mxu0 0.0
    %460 = vmatpush1.msra.mxu0 0.0
    %461 = vmatprep.subr.mxu0 0.0
    %462 = vmatpush1.msra.mxu0 0.0
    %463 = vmatprep.subr.mxu0 0.0
    %464 = vmatpush1.msra.mxu0 0.0
    %465 = vmatprep.subr.mxu0 0.0
    %466 = vmatpush1.msra.mxu0 0.0
    %467 = vmatprep.subr.mxu0 0.0
    %468 = vmatpush1.msra.mxu0 0.0
    %469 = vmatprep.subr.mxu0 0.0
    %470 = vmatpush1.msra.mxu0 0.0
    %471 = vmatprep.subr.mxu0 0.0
    %472 = vmatpush1.msra.mxu0 0.0
    %473 = vmatprep.subr.mxu0 0.0
    %474 = vmatpush1.msra.mxu0 0.0
    %475 = vmatprep.subr.mxu0 0.0
    %476 = vmatpush1.msra.mxu0 0.0
    %477 = vmatprep.subr.mxu0 0.0
    %478 = vmatpush1.msra.mxu0 0.0
    %479 = vmatprep.subr.mxu0 0.0
    %480 = vmatpush1.msra.mxu0 0.0
    %481 = vmatprep.subr.mxu0 0.0
    %482 = vmatpush1.msra.mxu0 0.0
    %483 = vmatprep.subr.mxu0 0.0
    %484 = vmatpush1.msra.mxu0 0.0
    %485 = vmatprep.subr.mxu0 0.0
    %486 = vmatpush1.msra.mxu0 0.0
    %487 = vmatprep.subr.mxu0 0.0
    %488 = vmatpush1.msra.mxu0 0.0
    %489 = vmatprep.subr.mxu0 0.0
    %490 = vmatpush1.msra.mxu0 0.0
    %491 = vmatprep.subr.mxu0 0.0
    %492 = vmatpush1.msra.mxu0 0.0
    %493 = vmatprep.subr.mxu0 0.0
    %494 = vmatpush1.msra.mxu0 0.0
    %495 = vmatprep.subr.mxu0 0.0
    %496 = vmatpush1.msra.mxu0 0.0
    %497 = vmatprep.subr.mxu0 0.0
    %498 = vmatpush1.msra.mxu0 0.0
    %499 = vmatprep.mubr.f32.mxu0 0.0
    %500 = vmatmul.mubr.f32.gmra.mrb[0].mxu0 %v411
    %v501 = vpop.f32.mrb[0].mxu0
    %v502 = vadd.f32 %v398, %v501
    %v503 = vpop.f32.mrb[0].mxu0
    %v504 = vadd.f32 %v398, %v503
    %505 = vmatprep.mubr.f32.mxu0 0.0
    %506 = vmatmul.mubr.f32.gmra.mrb[0].mxu0 %v413
    %v507 = vpop.f32.mrb[0].mxu0
    %v508 = vadd.f32 %v403, %v507
    %v509 = vpop.f32.mrb[0].mxu0
    %v510 = vadd.f32 %v403, %v509
    %511 = vmatprep.mubr.f32.mxu0 0.0
    %512 = vmatmul.mubr.f32.gmra.mrb[0].mxu0 %v415
    %v513 = vpop.f32.mrb[0].mxu0
    %v514 = vadd.f32 %v408, %v513
    %v515 = vpop.f32.mrb[0].mxu0
    %v516 = vadd.f32 %v408, %v515
    %517 = vdwg.mxu0
    %518 = vmatprep.subr.mxu0 %v389
    %519 = vmatpush1.msra.mxu0 %v388
    %520 = vmatprep.subr.mxu0 %v427
    %521 = vmatpush1.msra.mxu0 %v424
    %522 = vmatprep.subr.mxu0 0.0
    %523 = vmatpush1.msra.mxu0 0.0
    %524 = vmatprep.subr.mxu0 0.0
    %525 = vmatpush1.msra.mxu0 0.0
    %526 = vmatprep.subr.mxu0 0.0
    %527 = vmatpush1.msra.mxu0 0.0
    %528 = vmatprep.subr.mxu0 0.0
    %529 = vmatpush1.msra.mxu0 0.0
    %530 = vmatprep.subr.mxu0 0.0
    %531 = vmatpush1.msra.mxu0 0.0
    %532 = vmatprep.subr.mxu0 0.0
    %533 = vmatpush1.msra.mxu0 0.0
    %534 = vmatprep.subr.mxu0 0.0
    %535 = vmatpush1.msra.mxu0 0.0
    %536 = vmatprep.subr.mxu0 0.0
    %537 = vmatpush1.msra.mxu0 0.0
    %538 = vmatprep.subr.mxu0 0.0
    %539 = vmatpush1.msra.mxu0 0.0
    %540 = vmatprep.subr.mxu0 0.0
    %541 = vmatpush1.msra.mxu0 0.0
    %542 = vmatprep.subr.mxu0 0.0
    %543 = vmatpush1.msra.mxu0 0.0
    %544 = vmatprep.subr.mxu0 0.0
    %545 = vmatpush1.msra.mxu0 0.0
    %546 = vmatprep.subr.mxu0 0.0
    %547 = vmatpush1.msra.mxu0 0.0
    %548 = vmatprep.subr.mxu0 0.0
    %549 = vmatpush1.msra.mxu0 0.0
    %550 = vmatprep.subr.mxu0 0.0
    %551 = vmatpush1.msra.mxu0 0.0
    %552 = vmatprep.subr.mxu0 0.0
    %553 = vmatpush1.msra.mxu0 0.0
    %554 = vmatprep.subr.mxu0 0.0
    %555 = vmatpush1.msra.mxu0 0.0
    %556 = vmatprep.subr.mxu0 0.0
    %557 = vmatpush1.msra.mxu0 0.0
    %558 = vmatprep.subr.mxu0 0.0
    %559 = vmatpush1.msra.mxu0 0.0
    %560 = vmatprep.subr.mxu0 0.0
    %561 = vmatpush1.msra.mxu0 0.0
    %562 = vmatprep.subr.mxu0 0.0
    %563 = vmatpush1.msra.mxu0 0.0
    %564 = vmatprep.subr.mxu0 0.0
    %565 = vmatpush1.msra.mxu0 0.0
    %566 = vmatprep.subr.mxu0 0.0
    %567 = vmatpush1.msra.mxu0 0.0
    %568 = vmatprep.subr.mxu0 0.0
    %569 = vmatpush1.msra.mxu0 0.0
    %570 = vmatprep.subr.mxu0 0.0
    %571 = vmatpush1.msra.mxu0 0.0
    %572 = vmatprep.subr.mxu0 0.0
    %573 = vmatpush1.msra.mxu0 0.0
    %574 = vmatprep.subr.mxu0 0.0
    %575 = vmatpush1.msra.mxu0 0.0
    %576 = vmatprep.subr.mxu0 0.0
    %577 = vmatpush1.msra.mxu0 0.0
    %578 = vmatprep.subr.mxu0 0.0
    %579 = vmatpush1.msra.mxu0 0.0
    %580 = vmatprep.subr.mxu0 0.0
    %581 = vmatpush1.msra.mxu0 0.0
    %582 = vmatprep.mubr.f32.mxu0 0.0
    %583 = vmatmul.mubr.f32.gmra.mrb[0].mxu0 %v411
    %v584 = vpop.f32.mrb[0].mxu0
    %v585 = vadd.f32 %v398, %v584
    %v586 = vpop.f32.mrb[0].mxu0
    %v587 = vadd.f32 %v398, %v586
    %588 = vmatprep.mubr.f32.mxu0 0.0
    %589 = vmatmul.mubr.f32.gmra.mrb[0].mxu0 %v413
    %v590 = vpop.f32.mrb[0].mxu0
    %v591 = vadd.f32 %v403, %v590
    %v592 = vpop.f32.mrb[0].mxu0
    %v593 = vadd.f32 %v403, %v592
    %594 = vmatprep.mubr.f32.mxu0 0.0
    %595 = vmatmul.mubr.f32.gmra.mrb[0].mxu0 %v415
    %v596 = vpop.f32.mrb[0].mxu0
    %v597 = vadd.f32 %v408, %v596
    %v598 = vpop.f32.mrb[0].mxu0
    %v599 = vadd.f32 %v408, %v598
    %600 = vdwg.mxu0
    %601 = vmatprep.subr.mxu0 %v391
    %602 = vmatpush1.msra.mxu0 %v390
    %603 = vmatprep.subr.mxu0 %v433
    %604 = vmatpush1.msra.mxu0 %v430
    %605 = vmatprep.subr.mxu0 0.0
    %606 = vmatpush1.msra.mxu0 0.0
    %607 = vmatprep.subr.mxu0 0.0
    %608 = vmatpush1.msra.mxu0 0.0
    %609 = vmatprep.subr.mxu0 0.0
    %610 = vmatpush1.msra.mxu0 0.0
    %611 = vmatprep.subr.mxu0 0.0
    %612 = vmatpush1.msra.mxu0 0.0
    %613 = vmatprep.subr.mxu0 0.0
    %614 = vmatpush1.msra.mxu0 0.0
    %615 = vmatprep.subr.mxu0 0.0
    %616 = vmatpush1.msra.mxu0 0.0
    %617 = vmatprep.subr.mxu0 0.0
    %618 = vmatpush1.msra.mxu0 0.0
    %619 = vmatprep.subr.mxu0 0.0
    %620 = vmatpush1.msra.mxu0 0.0
    %621 = vmatprep.subr.mxu0 0.0
    %622 = vmatpush1.msra.mxu0 0.0
    %623 = vmatprep.subr.mxu0 0.0
    %624 = vmatpush1.msra.mxu0 0.0
    %625 = vmatprep.subr.mxu0 0.0
    %626 = vmatpush1.msra.mxu0 0.0
    %627 = vmatprep.subr.mxu0 0.0
    %628 = vmatpush1.msra.mxu0 0.0
    %629 = vmatprep.subr.mxu0 0.0
    %630 = vmatpush1.msra.mxu0 0.0
    %631 = vmatprep.subr.mxu0 0.0
    %632 = vmatpush1.msra.mxu0 0.0
    %633 = vmatprep.subr.mxu0 0.0
    %634 = vmatpush1.msra.mxu0 0.0
    %635 = vmatprep.subr.mxu0 0.0
    %636 = vmatpush1.msra.mxu0 0.0
    %637 = vmatprep.subr.mxu0 0.0
    %638 = vmatpush1.msra.mxu0 0.0
    %639 = vmatprep.subr.mxu0 0.0
    %640 = vmatpush1.msra.mxu0 0.0
    %641 = vmatprep.subr.mxu0 0.0
    %642 = vmatpush1.msra.mxu0 0.0
    %643 = vmatprep.subr.mxu0 0.0
    %644 = vmatpush1.msra.mxu0 0.0
    %645 = vmatprep.subr.mxu0 0.0
    %646 = vmatpush1.msra.mxu0 0.0
    %647 = vmatprep.subr.mxu0 0.0
    %648 = vmatpush1.msra.mxu0 0.0
    %649 = vmatprep.subr.mxu0 0.0
    %650 = vmatpush1.msra.mxu0 0.0
    %651 = vmatprep.subr.mxu0 0.0
    %652 = vmatpush1.msra.mxu0 0.0
    %653 = vmatprep.subr.mxu0 0.0
    %654 = vmatpush1.msra.mxu0 0.0
    %655 = vmatprep.subr.mxu0 0.0
    %656 = vmatpush1.msra.mxu0 0.0
    %657 = vmatprep.subr.mxu0 0.0
    %658 = vmatpush1.msra.mxu0 0.0
    %659 = vmatprep.subr.mxu0 0.0
    %660 = vmatpush1.msra.mxu0 0.0
    %661 = vmatprep.subr.mxu0 0.0
    %662 = vmatpush1.msra.mxu0 0.0
    %663 = vmatprep.subr.mxu0 0.0
    %664 = vmatpush1.msra.mxu0 0.0
    %665 = vmatprep.mubr.f32.mxu0 0.0
    %666 = vmatmul.mubr.f32.gmra.mrb[0].mxu0 %v411
    %v667 = vpop.f32.mrb[0].mxu0
    %v668 = vadd.f32 %v398, %v667
    %v669 = vpop.f32.mrb[0].mxu0
    %v670 = vadd.f32 %v398, %v669
    %671 = vmatprep.mubr.f32.mxu0 0.0
    %672 = vmatmul.mubr.f32.gmra.mrb[0].mxu0 %v413
    %v673 = vpop.f32.mrb[0].mxu0
    %v674 = vadd.f32 %v403, %v673
    %v675 = vpop.f32.mrb[0].mxu0
    %v676 = vadd.f32 %v403, %v675
    %677 = vmatprep.mubr.f32.mxu0 0.0
    %678 = vmatmul.mubr.f32.gmra.mrb[0].mxu0 %v415
    %v679 = vpop.f32.mrb[0].mxu0
    %v680 = vadd.f32 %v408, %v679
    %v681 = vpop.f32.mrb[0].mxu0
    %v682 = vadd.f32 %v408, %v681
    %683 = vdwg.mxu0
    %v684 = vmax.f32 %v502, 0.0
    %v685 = vmax.f32 %v504, 0.0
    %v686 = vmax.f32 %v585, 0.0
    %v687 = vmax.f32 %v587, 0.0
    %v688 = vmax.f32 %v668, 0.0
    %v689 = vmax.f32 %v670, 0.0
    %v690 = vmax.f32 %v508, 0.0
    %v691 = vmax.f32 %v510, 0.0
    %v692 = vmax.f32 %v591, 0.0
    %v693 = vmax.f32 %v593, 0.0
    %v694 = vmax.f32 %v674, 0.0
    %v695 = vmax.f32 %v676, 0.0
    %v696 = vmax.f32 %v514, 0.0
    %v697 = vmax.f32 %v516, 0.0
    %v698 = vmax.f32 %v597, 0.0
    %v699 = vmax.f32 %v599, 0.0
    %v700 = vmax.f32 %v680, 0.0
    %v701 = vmax.f32 %v682, 0.0
    %702 = vrot.lane.b32.xlu0 %v684, 127
    %v703 = vpop.permute.xlu0 %702
    %704 = vrot.lane.b32.xlu0 %v690, 127
    %v705 = vpop.permute.xlu0 %704
    %706 = vrot.lane.b32.xlu0 %v696, 127
    %v707 = vpop.permute.xlu0 %706
    %708 = vrot.lane.b32.xlu0 %v685, 127
    %v709 = vpop.permute.xlu0 %708
    %710 = vrot.lane.b32.xlu0 %v691, 127
    %v711 = vpop.permute.xlu0 %710
    %712 = vrot.lane.b32.xlu0 %v697, 127
    %v713 = vpop.permute.xlu0 %712
    %714 = vrot.lane.b32.xlu0 %v686, 127
    %v715 = vpop.permute.xlu0 %714
    %716 = vrot.lane.b32.xlu0 %v692, 127
    %v717 = vpop.permute.xlu0 %716
    %718 = vrot.lane.b32.xlu0 %v698, 127
    %v719 = vpop.permute.xlu0 %718
    %720 = vrot.lane.b32.xlu0 %v687, 127
    %v721 = vpop.permute.xlu0 %720
    %722 = vrot.lane.b32.xlu0 %v693, 127
    %v723 = vpop.permute.xlu0 %722
    %724 = vrot.lane.b32.xlu0 %v699, 127
    %v725 = vpop.permute.xlu0 %724
    %726 = vrot.lane.b32.xlu0 %v688, 127
    %v727 = vpop.permute.xlu0 %726
    %728 = vrot.lane.b32.xlu0 %v694, 127
    %v729 = vpop.permute.xlu0 %728
    %730 = vrot.lane.b32.xlu0 %v700, 127
    %v731 = vpop.permute.xlu0 %730
    %732 = vrot.lane.b32.xlu0 %v689, 127
    %v733 = vpop.permute.xlu0 %732
    %734 = vrot.lane.b32.xlu0 %v695, 127
    %v735 = vpop.permute.xlu0 %734
    %736 = vrot.lane.b32.xlu0 %v701, 127
    %v737 = vpop.permute.xlu0 %736
    %v738 = vsel %vm77, %v727, %v733
    %v739 = vsel %vm77, %v729, %v735
    %v740 = vsel %vm77, %v731, %v737
    %v741 = vsel %vm77, %v721, %v727
    %v742 = vsel %vm77, %v723, %v729
    %v743 = vsel %vm77, %v725, %v731
    %v744 = vsel %vm77, %v715, %v721
    %v745 = vsel %vm77, %v717, %v723
    %v746 = vsel %vm77, %v719, %v725
    %v747 = vsel %vm77, %v709, %v715
    %v748 = vsel %vm77, %v711, %v717
    %v749 = vsel %vm77, %v713, %v719
    %v750 = vsel %vm77, %v703, %v709
    %v751 = vsel %vm77, %v705, %v711
    %v752 = vsel %vm77, %v707, %v713
    %v753 = vsel %vm77, %v733, %v703
    %v754 = vsel %vm77, %v735, %v705
    %v755 = vsel %vm77, %v737, %v707
    %v756 = vmax.f32 %v684, %v750
    %v757 = vmax.f32 %v685, %v747
    %v758 = vmax.f32 %v686, %v744
    %v759 = vmax.f32 %v687, %v741
    %v760 = vmax.f32 %v688, %v738
    %v761 = vmax.f32 %v689, %v753
    %v762 = vmax.f32 %v690, %v751
    %v763 = vmax.f32 %v691, %v748
    %v764 = vmax.f32 %v692, %v745
    %v765 = vmax.f32 %v693, %v742
    %v766 = vmax.f32 %v694, %v739
    %v767 = vmax.f32 %v695, %v754
    %v768 = vmax.f32 %v696, %v752
    %v769 = vmax.f32 %v697, %v749
    %v770 = vmax.f32 %v698, %v746
    %v771 = vmax.f32 %v699, %v743
    %v772 = vmax.f32 %v700, %v740
    %v773 = vmax.f32 %v701, %v755
    %774 = vrot.lane.b32.xlu0 %v684, 110
    %v775 = vpop.permute.xlu0 %774
    %776 = vrot.lane.b32.xlu0 %v690, 110
    %v777 = vpop.permute.xlu0 %776
    %778 = vrot.lane.b32.xlu0 %v696, 110
    %v779 = vpop.permute.xlu0 %778
    %780 = vrot.lane.b32.xlu0 %v685, 110
    %v781 = vpop.permute.xlu0 %780
    %782 = vrot.lane.b32.xlu0 %v691, 110
    %v783 = vpop.permute.xlu0 %782
    %784 = vrot.lane.b32.xlu0 %v697, 110
    %v785 = vpop.permute.xlu0 %784
    %786 = vrot.lane.b32.xlu0 %v686, 110
    %v787 = vpop.permute.xlu0 %786
    %788 = vrot.lane.b32.xlu0 %v692, 110
    %v789 = vpop.permute.xlu0 %788
    %790 = vrot.lane.b32.xlu0 %v698, 110
    %v791 = vpop.permute.xlu0 %790
    %792 = vrot.lane.b32.xlu0 %v687, 110
    %v793 = vpop.permute.xlu0 %792
    %794 = vrot.lane.b32.xlu0 %v693, 110
    %v795 = vpop.permute.xlu0 %794
    %796 = vrot.lane.b32.xlu0 %v699, 110
    %v797 = vpop.permute.xlu0 %796
    %798 = vrot.lane.b32.xlu0 %v688, 110
    %v799 = vpop.permute.xlu0 %798
    %800 = vrot.lane.b32.xlu0 %v694, 110
    %v801 = vpop.permute.xlu0 %800
    %802 = vrot.lane.b32.xlu0 %v700, 110
    %v803 = vpop.permute.xlu0 %802
    %804 = vrot.lane.b32.xlu0 %v689, 110
    %v805 = vpop.permute.xlu0 %804
    %806 = vrot.lane.b32.xlu0 %v695, 110
    %v807 = vpop.permute.xlu0 %806
    %808 = vrot.lane.b32.xlu0 %v701, 110
    %v809 = vpop.permute.xlu0 %808
    %v810 = vsel %vm115, %v799, %v805
    %v811 = vsel %vm115, %v801, %v807
    %v812 = vsel %vm115, %v803, %v809
    %v813 = vsel %vm115, %v793, %v799
    %v814 = vsel %vm115, %v795, %v801
    %v815 = vsel %vm115, %v797, %v803
    %v816 = vsel %vm115, %v787, %v793
    %v817 = vsel %vm115, %v789, %v795
    %v818 = vsel %vm115, %v791, %v797
    %v819 = vsel %vm115, %v781, %v787
    %v820 = vsel %vm115, %v783, %v789
    %v821 = vsel %vm115, %v785, %v791
    %v822 = vsel %vm115, %v775, %v781
    %v823 = vsel %vm115, %v777, %v783
    %v824 = vsel %vm115, %v779, %v785
    %v825 = vsel %vm115, %v805, %v775
    %v826 = vsel %vm115, %v807, %v777
    %v827 = vsel %vm115, %v809, %v779
    %v828 = vmax.f32 %v756, %v822
    %v829 = vmax.f32 %v757, %v819
    %v830 = vmax.f32 %v758, %v816
    %v831 = vmax.f32 %v759, %v813
    %v832 = vmax.f32 %v760, %v810
    %v833 = vmax.f32 %v761, %v825
    %v834 = vmax.f32 %v762, %v823
    %v835 = vmax.f32 %v763, %v820
    %v836 = vmax.f32 %v764, %v817
    %v837 = vmax.f32 %v765, %v814
    %v838 = vmax.f32 %v766, %v811
    %v839 = vmax.f32 %v767, %v826
    %v840 = vmax.f32 %v768, %v824
    %v841 = vmax.f32 %v769, %v821
    %v842 = vmax.f32 %v770, %v818
    %v843 = vmax.f32 %v771, %v815
    %v844 = vmax.f32 %v772, %v812
    %v845 = vmax.f32 %v773, %v827
    %846 = vrot.lane.b32.xlu0 %v684, 109
    %v847 = vpop.permute.xlu0 %846
    %848 = vrot.lane.b32.xlu0 %v690, 109
    %v849 = vpop.permute.xlu0 %848
    %850 = vrot.lane.b32.xlu0 %v696, 109
    %v851 = vpop.permute.xlu0 %850
    %852 = vrot.lane.b32.xlu0 %v685, 109
    %v853 = vpop.permute.xlu0 %852
    %854 = vrot.lane.b32.xlu0 %v691, 109
    %v855 = vpop.permute.xlu0 %854
    %856 = vrot.lane.b32.xlu0 %v697, 109
    %v857 = vpop.permute.xlu0 %856
    %858 = vrot.lane.b32.xlu0 %v686, 109
    %v859 = vpop.permute.xlu0 %858
    %860 = vrot.lane.b32.xlu0 %v692, 109
    %v861 = vpop.permute.xlu0 %860
    %862 = vrot.lane.b32.xlu0 %v698, 109
    %v863 = vpop.permute.xlu0 %862
    %864 = vrot.lane.b32.xlu0 %v687, 109
    %v865 = vpop.permute.xlu0 %864
    %866 = vrot.lane.b32.xlu0 %v693, 109
    %v867 = vpop.permute.xlu0 %866
    %868 = vrot.lane.b32.xlu0 %v699, 109
    %v869 = vpop.permute.xlu0 %868
    %870 = vrot.lane.b32.xlu0 %v688, 109
    %v871 = vpop.permute.xlu0 %870
    %872 = vrot.lane.b32.xlu0 %v694, 109
    %v873 = vpop.permute.xlu0 %872
    %874 = vrot.lane.b32.xlu0 %v700, 109
    %v875 = vpop.permute.xlu0 %874
    %876 = vrot.lane.b32.xlu0 %v689, 109
    %v877 = vpop.permute.xlu0 %876
    %878 = vrot.lane.b32.xlu0 %v695, 109
    %v879 = vpop.permute.xlu0 %878
    %880 = vrot.lane.b32.xlu0 %v701, 109
    %v881 = vpop.permute.xlu0 %880
    %v882 = vsel %vm134, %v871, %v877
    %v883 = vsel %vm134, %v873, %v879
    %v884 = vsel %vm134, %v875, %v881
    %v885 = vsel %vm134, %v865, %v871
    %v886 = vsel %vm134, %v867, %v873
    %v887 = vsel %vm134, %v869, %v875
    %v888 = vsel %vm134, %v859, %v865
    %v889 = vsel %vm134, %v861, %v867
    %v890 = vsel %vm134, %v863, %v869
    %v891 = vsel %vm134, %v853, %v859
    %v892 = vsel %vm134, %v855, %v861
    %v893 = vsel %vm134, %v857, %v863
    %v894 = vsel %vm134, %v847, %v853
    %v895 = vsel %vm134, %v849, %v855
    %v896 = vsel %vm134, %v851, %v857
    %v897 = vsel %vm134, %v877, %v847
    %v898 = vsel %vm134, %v879, %v849
    %v899 = vsel %vm134, %v881, %v851
    %v900 = vmax.f32 %v828, %v894
    %v901 = vmax.f32 %v829, %v891
    %v902 = vmax.f32 %v830, %v888
    %v903 = vmax.f32 %v831, %v885
    %v904 = vmax.f32 %v832, %v882
    %v905 = vmax.f32 %v833, %v897
    %v906 = vmax.f32 %v834, %v895
    %v907 = vmax.f32 %v835, %v892
    %v908 = vmax.f32 %v836, %v889
    %v909 = vmax.f32 %v837, %v886
    %v910 = vmax.f32 %v838, %v883
    %v911 = vmax.f32 %v839, %v898
    %v912 = vmax.f32 %v840, %v896
    %v913 = vmax.f32 %v841, %v893
    %v914 = vmax.f32 %v842, %v890
    %v915 = vmax.f32 %v843, %v887
    %v916 = vmax.f32 %v844, %v884
    %v917 = vmax.f32 %v845, %v899
    %918 = vrot.lane.b32.xlu0 %v900, 126
    %v919 = vpop.permute.xlu0 %918
    %920 = vrot.lane.b32.xlu0 %v906, 126
    %v921 = vpop.permute.xlu0 %920
    %922 = vrot.lane.b32.xlu0 %v912, 126
    %v923 = vpop.permute.xlu0 %922
    %924 = vrot.lane.b32.xlu0 %v901, 126
    %v925 = vpop.permute.xlu0 %924
    %926 = vrot.lane.b32.xlu0 %v907, 126
    %v927 = vpop.permute.xlu0 %926
    %928 = vrot.lane.b32.xlu0 %v913, 126
    %v929 = vpop.permute.xlu0 %928
    %930 = vrot.lane.b32.xlu0 %v902, 126
    %v931 = vpop.permute.xlu0 %930
    %932 = vrot.lane.b32.xlu0 %v908, 126
    %v933 = vpop.permute.xlu0 %932
    %934 = vrot.lane.b32.xlu0 %v914, 126
    %v935 = vpop.permute.xlu0 %934
    %936 = vrot.lane.b32.xlu0 %v903, 126
    %v937 = vpop.permute.xlu0 %936
    %938 = vrot.lane.b32.xlu0 %v909, 126
    %v939 = vpop.permute.xlu0 %938
    %940 = vrot.lane.b32.xlu0 %v915, 126
    %v941 = vpop.permute.xlu0 %940
    %942 = vrot.lane.b32.xlu0 %v904, 126
    %v943 = vpop.permute.xlu0 %942
    %944 = vrot.lane.b32.xlu0 %v910, 126
    %v945 = vpop.permute.xlu0 %944
    %946 = vrot.lane.b32.xlu0 %v916, 126
    %v947 = vpop.permute.xlu0 %946
    %948 = vrot.lane.b32.xlu0 %v905, 126
    %v949 = vpop.permute.xlu0 %948
    %950 = vrot.lane.b32.xlu0 %v911, 126
    %v951 = vpop.permute.xlu0 %950
    %952 = vrot.lane.b32.xlu0 %v917, 126
    %v953 = vpop.permute.xlu0 %952
    %v954 = vsel %vm96, %v943, %v949
    %v955 = vsel %vm96, %v945, %v951
    %v956 = vsel %vm96, %v947, %v953
    %v957 = vsel %vm96, %v937, %v943
    %v958 = vsel %vm96, %v939, %v945
    %v959 = vsel %vm96, %v941, %v947
    %v960 = vsel %vm96, %v931, %v937
    %v961 = vsel %vm96, %v933, %v939
    %v962 = vsel %vm96, %v935, %v941
    %v963 = vsel %vm96, %v925, %v931
    %v964 = vsel %vm96, %v927, %v933
    %v965 = vsel %vm96, %v929, %v935
    %v966 = vsel %vm96, %v919, %v925
    %v967 = vsel %vm96, %v921, %v927
    %v968 = vsel %vm96, %v923, %v929
    %v969 = vsel %vm96, %v949, %v919
    %v970 = vsel %vm96, %v951, %v921
    %v971 = vsel %vm96, %v953, %v923
    %972 = vrot.lane.b32.xlu0 %v900, 124
    %v973 = vpop.permute.xlu0 %972
    %974 = vrot.lane.b32.xlu0 %v906, 124
    %v975 = vpop.permute.xlu0 %974
    %976 = vrot.lane.b32.xlu0 %v912, 124
    %v977 = vpop.permute.xlu0 %976
    %978 = vrot.lane.b32.xlu0 %v901, 124
    %v979 = vpop.permute.xlu0 %978
    %980 = vrot.lane.b32.xlu0 %v907, 124
    %v981 = vpop.permute.xlu0 %980
    %982 = vrot.lane.b32.xlu0 %v913, 124
    %v983 = vpop.permute.xlu0 %982
    %984 = vrot.lane.b32.xlu0 %v902, 124
    %v985 = vpop.permute.xlu0 %984
    %986 = vrot.lane.b32.xlu0 %v908, 124
    %v987 = vpop.permute.xlu0 %986
    %988 = vrot.lane.b32.xlu0 %v914, 124
    %v989 = vpop.permute.xlu0 %988
    %990 = vrot.lane.b32.xlu0 %v903, 124
    %v991 = vpop.permute.xlu0 %990
    %992 = vrot.lane.b32.xlu0 %v909, 124
    %v993 = vpop.permute.xlu0 %992
    %994 = vrot.lane.b32.xlu0 %v915, 124
    %v995 = vpop.permute.xlu0 %994
    %996 = vrot.lane.b32.xlu0 %v904, 124
    %v997 = vpop.permute.xlu0 %996
    %998 = vrot.lane.b32.xlu0 %v910, 124
    %v999 = vpop.permute.xlu0 %998
    %1000 = vrot.lane.b32.xlu0 %v916, 124
    %v1001 = vpop.permute.xlu0 %1000
    %1002 = vrot.lane.b32.xlu0 %v905, 124
    %v1003 = vpop.permute.xlu0 %1002
    %1004 = vrot.lane.b32.xlu0 %v911, 124
    %v1005 = vpop.permute.xlu0 %1004
    %1006 = vrot.lane.b32.xlu0 %v917, 124
    %v1007 = vpop.permute.xlu0 %1006
    %vm1008 = vcmp.lt.s32.totalorder %v76, 124
    %v1009 = vsel %vm1008, %v997, %v1003
    %v1010 = vsel %vm1008, %v999, %v1005
    %v1011 = vsel %vm1008, %v1001, %v1007
    %v1012 = vsel %vm1008, %v991, %v997
    %v1013 = vsel %vm1008, %v993, %v999
    %v1014 = vsel %vm1008, %v995, %v1001
    %v1015 = vsel %vm1008, %v985, %v991
    %v1016 = vsel %vm1008, %v987, %v993
    %v1017 = vsel %vm1008, %v989, %v995
    %v1018 = vsel %vm1008, %v979, %v985
    %v1019 = vsel %vm1008, %v981, %v987
    %v1020 = vsel %vm1008, %v983, %v989
    %v1021 = vsel %vm1008, %v973, %v979
    %v1022 = vsel %vm1008, %v975, %v981
    %v1023 = vsel %vm1008, %v977, %v983
    %v1024 = vsel %vm1008, %v1003, %v973
    %v1025 = vsel %vm1008, %v1005, %v975
    %v1026 = vsel %vm1008, %v1007, %v977
    %1027 = vrot.lane.b32.xlu0 %v900, 92
    %v1028 = vpop.permute.xlu0 %1027
    %1029 = vrot.lane.b32.xlu0 %v906, 92
    %v1030 = vpop.permute.xlu0 %1029
    %1031 = vrot.lane.b32.xlu0 %v912, 92
    %v1032 = vpop.permute.xlu0 %1031
    %1033 = vrot.lane.b32.xlu0 %v901, 92
    %v1034 = vpop.permute.xlu0 %1033
    %1035 = vrot.lane.b32.xlu0 %v907, 92
    %v1036 = vpop.permute.xlu0 %1035
    %1037 = vrot.lane.b32.xlu0 %v913, 92
    %v1038 = vpop.permute.xlu0 %1037
    %1039 = vrot.lane.b32.xlu0 %v902, 92
    %v1040 = vpop.permute.xlu0 %1039
    %1041 = vrot.lane.b32.xlu0 %v908, 92
    %v1042 = vpop.permute.xlu0 %1041
    %1043 = vrot.lane.b32.xlu0 %v914, 92
    %v1044 = vpop.permute.xlu0 %1043
    %1045 = vrot.lane.b32.xlu0 %v903, 92
    %v1046 = vpop.permute.xlu0 %1045
    %1047 = vrot.lane.b32.xlu0 %v909, 92
    %v1048 = vpop.permute.xlu0 %1047
    %1049 = vrot.lane.b32.xlu0 %v915, 92
    %v1050 = vpop.permute.xlu0 %1049
    %1051 = vrot.lane.b32.xlu0 %v904, 92
    %v1052 = vpop.permute.xlu0 %1051
    %1053 = vrot.lane.b32.xlu0 %v910, 92
    %v1054 = vpop.permute.xlu0 %1053
    %1055 = vrot.lane.b32.xlu0 %v916, 92
    %v1056 = vpop.permute.xlu0 %1055
    %1057 = vrot.lane.b32.xlu0 %v905, 92
    %v1058 = vpop.permute.xlu0 %1057
    %1059 = vrot.lane.b32.xlu0 %v911, 92
    %v1060 = vpop.permute.xlu0 %1059
    %1061 = vrot.lane.b32.xlu0 %v917, 92
    %v1062 = vpop.permute.xlu0 %1061
    %v1063 = vsel %vm172, %v1052, %v1058
    %v1064 = vsel %vm172, %v1054, %v1060
    %v1065 = vsel %vm172, %v1056, %v1062
    %v1066 = vsel %vm172, %v1046, %v1052
    %v1067 = vsel %vm172, %v1048, %v1054
    %v1068 = vsel %vm172, %v1050, %v1056
    %v1069 = vsel %vm172, %v1040, %v1046
    %v1070 = vsel %vm172, %v1042, %v1048
    %v1071 = vsel %vm172, %v1044, %v1050
    %v1072 = vsel %vm172, %v1034, %v1040
    %v1073 = vsel %vm172, %v1036, %v1042
    %v1074 = vsel %vm172, %v1038, %v1044
    %v1075 = vsel %vm172, %v1028, %v1034
    %v1076 = vsel %vm172, %v1030, %v1036
    %v1077 = vsel %vm172, %v1032, %v1038
    %v1078 = vsel %vm172, %v1058, %v1028
    %v1079 = vsel %vm172, %v1060, %v1030
    %v1080 = vsel %vm172, %v1062, %v1032
    %1081 = vrot.lane.b32.xlu0 %v900, 90
    %v1082 = vpop.permute.xlu0 %1081
    %1083 = vrot.lane.b32.xlu0 %v906, 90
    %v1084 = vpop.permute.xlu0 %1083
    %1085 = vrot.lane.b32.xlu0 %v912, 90
    %v1086 = vpop.permute.xlu0 %1085
    %1087 = vrot.lane.b32.xlu0 %v901, 90
    %v1088 = vpop.permute.xlu0 %1087
    %1089 = vrot.lane.b32.xlu0 %v907, 90
    %v1090 = vpop.permute.xlu0 %1089
    %1091 = vrot.lane.b32.xlu0 %v913, 90
    %v1092 = vpop.permute.xlu0 %1091
    %1093 = vrot.lane.b32.xlu0 %v902, 90
    %v1094 = vpop.permute.xlu0 %1093
    %1095 = vrot.lane.b32.xlu0 %v908, 90
    %v1096 = vpop.permute.xlu0 %1095
    %1097 = vrot.lane.b32.xlu0 %v914, 90
    %v1098 = vpop.permute.xlu0 %1097
    %1099 = vrot.lane.b32.xlu0 %v903, 90
    %v1100 = vpop.permute.xlu0 %1099
    %1101 = vrot.lane.b32.xlu0 %v909, 90
    %v1102 = vpop.permute.xlu0 %1101
    %1103 = vrot.lane.b32.xlu0 %v915, 90
    %v1104 = vpop.permute.xlu0 %1103
    %1105 = vrot.lane.b32.xlu0 %v904, 90
    %v1106 = vpop.permute.xlu0 %1105
    %1107 = vrot.lane.b32.xlu0 %v910, 90
    %v1108 = vpop.permute.xlu0 %1107
    %1109 = vrot.lane.b32.xlu0 %v916, 90
    %v1110 = vpop.permute.xlu0 %1109
    %1111 = vrot.lane.b32.xlu0 %v905, 90
    %v1112 = vpop.permute.xlu0 %1111
    %1113 = vrot.lane.b32.xlu0 %v911, 90
    %v1114 = vpop.permute.xlu0 %1113
    %1115 = vrot.lane.b32.xlu0 %v917, 90
    %v1116 = vpop.permute.xlu0 %1115
    %v1117 = vsel %vm210, %v1106, %v1112
    %v1118 = vsel %vm210, %v1108, %v1114
    %v1119 = vsel %vm210, %v1110, %v1116
    %v1120 = vsel %vm210, %v1100, %v1106
    %v1121 = vsel %vm210, %v1102, %v1108
    %v1122 = vsel %vm210, %v1104, %v1110
    %v1123 = vsel %vm210, %v1094, %v1100
    %v1124 = vsel %vm210, %v1096, %v1102
    %v1125 = vsel %vm210, %v1098, %v1104
    %v1126 = vsel %vm210, %v1088, %v1094
    %v1127 = vsel %vm210, %v1090, %v1096
    %v1128 = vsel %vm210, %v1092, %v1098
    %v1129 = vsel %vm210, %v1082, %v1088
    %v1130 = vsel %vm210, %v1084, %v1090
    %v1131 = vsel %vm210, %v1086, %v1092
    %v1132 = vsel %vm210, %v1112, %v1082
    %v1133 = vsel %vm210, %v1114, %v1084
    %v1134 = vsel %vm210, %v1116, %v1086
    %1135 = vrot.lane.b32.xlu0 %v900, 88
    %v1136 = vpop.permute.xlu0 %1135
    %1137 = vrot.lane.b32.xlu0 %v906, 88
    %v1138 = vpop.permute.xlu0 %1137
    %1139 = vrot.lane.b32.xlu0 %v912, 88
    %v1140 = vpop.permute.xlu0 %1139
    %1141 = vrot.lane.b32.xlu0 %v901, 88
    %v1142 = vpop.permute.xlu0 %1141
    %1143 = vrot.lane.b32.xlu0 %v907, 88
    %v1144 = vpop.permute.xlu0 %1143
    %1145 = vrot.lane.b32.xlu0 %v913, 88
    %v1146 = vpop.permute.xlu0 %1145
    %1147 = vrot.lane.b32.xlu0 %v902, 88
    %v1148 = vpop.permute.xlu0 %1147
    %1149 = vrot.lane.b32.xlu0 %v908, 88
    %v1150 = vpop.permute.xlu0 %1149
    %1151 = vrot.lane.b32.xlu0 %v914, 88
    %v1152 = vpop.permute.xlu0 %1151
    %1153 = vrot.lane.b32.xlu0 %v903, 88
    %v1154 = vpop.permute.xlu0 %1153
    %1155 = vrot.lane.b32.xlu0 %v909, 88
    %v1156 = vpop.permute.xlu0 %1155
    %1157 = vrot.lane.b32.xlu0 %v915, 88
    %v1158 = vpop.permute.xlu0 %1157
    %1159 = vrot.lane.b32.xlu0 %v904, 88
    %v1160 = vpop.permute.xlu0 %1159
    %1161 = vrot.lane.b32.xlu0 %v910, 88
    %v1162 = vpop.permute.xlu0 %1161
    %1163 = vrot.lane.b32.xlu0 %v916, 88
    %v1164 = vpop.permute.xlu0 %1163
    %1165 = vrot.lane.b32.xlu0 %v905, 88
    %v1166 = vpop.permute.xlu0 %1165
    %1167 = vrot.lane.b32.xlu0 %v911, 88
    %v1168 = vpop.permute.xlu0 %1167
    %1169 = vrot.lane.b32.xlu0 %v917, 88
    %v1170 = vpop.permute.xlu0 %1169
    %vm1171 = vcmp.lt.s32.totalorder %v76, 88
    %v1172 = vsel %vm1171, %v1160, %v1166
    %v1173 = vsel %vm1171, %v1162, %v1168
    %v1174 = vsel %vm1171, %v1164, %v1170
    %v1175 = vsel %vm1171, %v1154, %v1160
    %v1176 = vsel %vm1171, %v1156, %v1162
    %v1177 = vsel %vm1171, %v1158, %v1164
    %v1178 = vsel %vm1171, %v1148, %v1154
    %v1179 = vsel %vm1171, %v1150, %v1156
    %v1180 = vsel %vm1171, %v1152, %v1158
    %v1181 = vsel %vm1171, %v1142, %v1148
    %v1182 = vsel %vm1171, %v1144, %v1150
    %v1183 = vsel %vm1171, %v1146, %v1152
    %v1184 = vsel %vm1171, %v1136, %v1142
    %v1185 = vsel %vm1171, %v1138, %v1144
    %v1186 = vsel %vm1171, %v1140, %v1146
    %v1187 = vsel %vm1171, %v1166, %v1136
    %v1188 = vsel %vm1171, %v1168, %v1138
    %v1189 = vsel %vm1171, %v1170, %v1140
    %1190 = vrot.lane.b32.xlu0 %v900, 56
    %v1191 = vpop.permute.xlu0 %1190
    %1192 = vrot.lane.b32.xlu0 %v906, 56
    %v1193 = vpop.permute.xlu0 %1192
    %1194 = vrot.lane.b32.xlu0 %v912, 56
    %v1195 = vpop.permute.xlu0 %1194
    %1196 = vrot.lane.b32.xlu0 %v901, 56
    %v1197 = vpop.permute.xlu0 %1196
    %1198 = vrot.lane.b32.xlu0 %v907, 56
    %v1199 = vpop.permute.xlu0 %1198
    %1200 = vrot.lane.b32.xlu0 %v913, 56
    %v1201 = vpop.permute.xlu0 %1200
    %1202 = vrot.lane.b32.xlu0 %v902, 56
    %v1203 = vpop.permute.xlu0 %1202
    %1204 = vrot.lane.b32.xlu0 %v908, 56
    %v1205 = vpop.permute.xlu0 %1204
    %1206 = vrot.lane.b32.xlu0 %v914, 56
    %v1207 = vpop.permute.xlu0 %1206
    %1208 = vrot.lane.b32.xlu0 %v903, 56
    %v1209 = vpop.permute.xlu0 %1208
    %1210 = vrot.lane.b32.xlu0 %v909, 56
    %v1211 = vpop.permute.xlu0 %1210
    %1212 = vrot.lane.b32.xlu0 %v915, 56
    %v1213 = vpop.permute.xlu0 %1212
    %1214 = vrot.lane.b32.xlu0 %v904, 56
    %v1215 = vpop.permute.xlu0 %1214
    %1216 = vrot.lane.b32.xlu0 %v910, 56
    %v1217 = vpop.permute.xlu0 %1216
    %1218 = vrot.lane.b32.xlu0 %v916, 56
    %v1219 = vpop.permute.xlu0 %1218
    %1220 = vrot.lane.b32.xlu0 %v905, 56
    %v1221 = vpop.permute.xlu0 %1220
    %1222 = vrot.lane.b32.xlu0 %v911, 56
    %v1223 = vpop.permute.xlu0 %1222
    %1224 = vrot.lane.b32.xlu0 %v917, 56
    %v1225 = vpop.permute.xlu0 %1224
    %vm1226 = vcmp.lt.s32.totalorder %v76, 56
    %v1227 = vsel %vm1226, %v1215, %v1221
    %v1228 = vsel %vm1226, %v1217, %v1223
    %v1229 = vsel %vm1226, %v1219, %v1225
    %v1230 = vsel %vm1226, %v1209, %v1215
    %v1231 = vsel %vm1226, %v1211, %v1217
    %v1232 = vsel %vm1226, %v1213, %v1219
    %v1233 = vsel %vm1226, %v1203, %v1209
    %v1234 = vsel %vm1226, %v1205, %v1211
    %v1235 = vsel %vm1226, %v1207, %v1213
    %v1236 = vsel %vm1226, %v1197, %v1203
    %v1237 = vsel %vm1226, %v1199, %v1205
    %v1238 = vsel %vm1226, %v1201, %v1207
    %v1239 = vsel %vm1226, %v1191, %v1197
    %v1240 = vsel %vm1226, %v1193, %v1199
    %v1241 = vsel %vm1226, %v1195, %v1201
    %v1242 = vsel %vm1226, %v1221, %v1191
    %v1243 = vsel %vm1226, %v1223, %v1193
    %v1244 = vsel %vm1226, %v1225, %v1195
    %1245 = vrot.lane.b32.xlu0 %v900, 54
    %v1246 = vpop.permute.xlu0 %1245
    %1247 = vrot.lane.b32.xlu0 %v906, 54
    %v1248 = vpop.permute.xlu0 %1247
    %1249 = vrot.lane.b32.xlu0 %v912, 54
    %v1250 = vpop.permute.xlu0 %1249
    %1251 = vrot.lane.b32.xlu0 %v901, 54
    %v1252 = vpop.permute.xlu0 %1251
    %1253 = vrot.lane.b32.xlu0 %v907, 54
    %v1254 = vpop.permute.xlu0 %1253
    %1255 = vrot.lane.b32.xlu0 %v913, 54
    %v1256 = vpop.permute.xlu0 %1255
    %1257 = vrot.lane.b32.xlu0 %v902, 54
    %v1258 = vpop.permute.xlu0 %1257
    %1259 = vrot.lane.b32.xlu0 %v908, 54
    %v1260 = vpop.permute.xlu0 %1259
    %1261 = vrot.lane.b32.xlu0 %v914, 54
    %v1262 = vpop.permute.xlu0 %1261
    %1263 = vrot.lane.b32.xlu0 %v903, 54
    %v1264 = vpop.permute.xlu0 %1263
    %1265 = vrot.lane.b32.xlu0 %v909, 54
    %v1266 = vpop.permute.xlu0 %1265
    %1267 = vrot.lane.b32.xlu0 %v915, 54
    %v1268 = vpop.permute.xlu0 %1267
    %1269 = vrot.lane.b32.xlu0 %v904, 54
    %v1270 = vpop.permute.xlu0 %1269
    %1271 = vrot.lane.b32.xlu0 %v910, 54
    %v1272 = vpop.permute.xlu0 %1271
    %1273 = vrot.lane.b32.xlu0 %v916, 54
    %v1274 = vpop.permute.xlu0 %1273
    %1275 = vrot.lane.b32.xlu0 %v905, 54
    %v1276 = vpop.permute.xlu0 %1275
    %1277 = vrot.lane.b32.xlu0 %v911, 54
    %v1278 = vpop.permute.xlu0 %1277
    %1279 = vrot.lane.b32.xlu0 %v917, 54
    %v1280 = vpop.permute.xlu0 %1279
    %vm1281 = vcmp.lt.s32.totalorder %v76, 54
    %v1282 = vsel %vm1281, %v1270, %v1276
    %v1283 = vsel %vm1281, %v1272, %v1278
    %v1284 = vsel %vm1281, %v1274, %v1280
    %v1285 = vsel %vm1281, %v1264, %v1270
    %v1286 = vsel %vm1281, %v1266, %v1272
    %v1287 = vsel %vm1281, %v1268, %v1274
    %v1288 = vsel %vm1281, %v1258, %v1264
    %v1289 = vsel %vm1281, %v1260, %v1266
    %v1290 = vsel %vm1281, %v1262, %v1268
    %v1291 = vsel %vm1281, %v1252, %v1258
    %v1292 = vsel %vm1281, %v1254, %v1260
    %v1293 = vsel %vm1281, %v1256, %v1262
    %v1294 = vsel %vm1281, %v1246, %v1252
    %v1295 = vsel %vm1281, %v1248, %v1254
    %v1296 = vsel %vm1281, %v1250, %v1256
    %v1297 = vsel %vm1281, %v1276, %v1246
    %v1298 = vsel %vm1281, %v1278, %v1248
    %v1299 = vsel %vm1281, %v1280, %v1250
    %1300 = vrot.lane.b32.xlu0 %v900, 52
    %v1301 = vpop.permute.xlu0 %1300
    %1302 = vrot.lane.b32.xlu0 %v906, 52
    %v1303 = vpop.permute.xlu0 %1302
    %1304 = vrot.lane.b32.xlu0 %v912, 52
    %v1305 = vpop.permute.xlu0 %1304
    %1306 = vrot.lane.b32.xlu0 %v901, 52
    %v1307 = vpop.permute.xlu0 %1306
    %1308 = vrot.lane.b32.xlu0 %v907, 52
    %v1309 = vpop.permute.xlu0 %1308
    %1310 = vrot.lane.b32.xlu0 %v913, 52
    %v1311 = vpop.permute.xlu0 %1310
    %1312 = vrot.lane.b32.xlu0 %v902, 52
    %v1313 = vpop.permute.xlu0 %1312
    %1314 = vrot.lane.b32.xlu0 %v908, 52
    %v1315 = vpop.permute.xlu0 %1314
    %1316 = vrot.lane.b32.xlu0 %v914, 52
    %v1317 = vpop.permute.xlu0 %1316
    %1318 = vrot.lane.b32.xlu0 %v903, 52
    %v1319 = vpop.permute.xlu0 %1318
    %1320 = vrot.lane.b32.xlu0 %v909, 52
    %v1321 = vpop.permute.xlu0 %1320
    %1322 = vrot.lane.b32.xlu0 %v915, 52
    %v1323 = vpop.permute.xlu0 %1322
    %1324 = vrot.lane.b32.xlu0 %v904, 52
    %v1325 = vpop.permute.xlu0 %1324
    %1326 = vrot.lane.b32.xlu0 %v910, 52
    %v1327 = vpop.permute.xlu0 %1326
    %1328 = vrot.lane.b32.xlu0 %v916, 52
    %v1329 = vpop.permute.xlu0 %1328
    %1330 = vrot.lane.b32.xlu0 %v905, 52
    %v1331 = vpop.permute.xlu0 %1330
    %1332 = vrot.lane.b32.xlu0 %v911, 52
    %v1333 = vpop.permute.xlu0 %1332
    %1334 = vrot.lane.b32.xlu0 %v917, 52
    %v1335 = vpop.permute.xlu0 %1334
    %vm1336 = vcmp.lt.s32.totalorder %v76, 52
    %v1337 = vsel %vm1336, %v1325, %v1331
    %v1338 = vsel %vm1336, %v1327, %v1333
    %v1339 = vsel %vm1336, %v1329, %v1335
    %v1340 = vsel %vm1336, %v1319, %v1325
    %v1341 = vsel %vm1336, %v1321, %v1327
    %v1342 = vsel %vm1336, %v1323, %v1329
    %v1343 = vsel %vm1336, %v1313, %v1319
    %v1344 = vsel %vm1336, %v1315, %v1321
    %v1345 = vsel %vm1336, %v1317, %v1323
    %v1346 = vsel %vm1336, %v1307, %v1313
    %v1347 = vsel %vm1336, %v1309, %v1315
    %v1348 = vsel %vm1336, %v1311, %v1317
    %v1349 = vsel %vm1336, %v1301, %v1307
    %v1350 = vsel %vm1336, %v1303, %v1309
    %v1351 = vsel %vm1336, %v1305, %v1311
    %v1352 = vsel %vm1336, %v1331, %v1301
    %v1353 = vsel %vm1336, %v1333, %v1303
    %v1354 = vsel %vm1336, %v1335, %v1305
    %s1355 = scalar_lea.vmem [#allocation2], 96
    %v1356 = vld [vmem:[%s1355] sm:$0xff]
    %v1357 = vld [vmem:[%s1355 + $0x8] sm:$0xff]
    %v1358 = vld [vmem:[%s1355 + $0x18] sm:$0xff]
    %v1359 = vld [vmem:[%s1355 + $0x20] sm:$0xff]
    %1361 = vset.pattern.permute.xlu0 88
    %1362 = vperm.xlu0 %1361, %v1357
    %v1363 = vpop.permute.xlu0 %1362
    %1366 = vset.pattern.permute.xlu0 88
    %1367 = vperm.xlu0 %1366, %v1359
    %v1368 = vpop.permute.xlu0 %1367
    %vm1370 = vcmask 719872
    %v1371 = vsel %vm1370, %v1357, 0
    %v1373 = vsel %vm1370, %v1359, 0
    %1375 = vmatprep.subr.mxu0 %v901
    %1376 = vmatpush1.msra.mxu0 %v900
    %1377 = vmatprep.subr.mxu0 %v907
    %1378 = vmatpush1.msra.mxu0 %v906
    %1379 = vmatprep.subr.mxu0 %v913
    %1380 = vmatpush1.msra.mxu0 %v912
    %1381 = vmatprep.subr.mxu0 %v963
    %1382 = vmatpush1.msra.mxu0 %v966
    %1383 = vmatprep.subr.mxu0 %v964
    %1384 = vmatpush1.msra.mxu0 %v967
    %1385 = vmatprep.subr.mxu0 %v965
    %1386 = vmatpush1.msra.mxu0 %v968
    %1387 = vmatprep.subr.mxu0 %v1018
    %1388 = vmatpush1.msra.mxu0 %v1021
    %1389 = vmatprep.subr.mxu0 %v1019
    %1390 = vmatpush1.msra.mxu0 %v1022
    %1391 = vmatprep.subr.mxu0 %v1020
    %1392 = vmatpush1.msra.mxu0 %v1023
    %1393 = vmatprep.subr.mxu0 %v1072
    %1394 = vmatpush1.msra.mxu0 %v1075
    %1395 = vmatprep.subr.mxu0 %v1073
    %1396 = vmatpush1.msra.mxu0 %v1076
    %1397 = vmatprep.subr.mxu0 %v1074
    %1398 = vmatpush1.msra.mxu0 %v1077
    %1399 = vmatprep.subr.mxu0 %v1126
    %1400 = vmatpush1.msra.mxu0 %v1129
    %1401 = vmatprep.subr.mxu0 %v1127
    %1402 = vmatpush1.msra.mxu0 %v1130
    %1403 = vmatprep.subr.mxu0 %v1128
    %1404 = vmatpush1.msra.mxu0 %v1131
    %1405 = vmatprep.subr.mxu0 %v1181
    %1406 = vmatpush1.msra.mxu0 %v1184
    %1407 = vmatprep.subr.mxu0 %v1182
    %1408 = vmatpush1.msra.mxu0 %v1185
    %1409 = vmatprep.subr.mxu0 %v1183
    %1410 = vmatpush1.msra.mxu0 %v1186
    %1411 = vmatprep.subr.mxu0 %v1236
    %1412 = vmatpush1.msra.mxu0 %v1239
    %1413 = vmatprep.subr.mxu0 %v1237
    %1414 = vmatpush1.msra.mxu0 %v1240
    %1415 = vmatprep.subr.mxu0 %v1238
    %1416 = vmatpush1.msra.mxu0 %v1241
    %1417 = vmatprep.subr.mxu0 %v1291
    %1418 = vmatpush1.msra.mxu0 %v1294
    %1419 = vmatprep.subr.mxu0 %v1292
    %1420 = vmatpush1.msra.mxu0 %v1295
    %1421 = vmatprep.subr.mxu0 %v1293
    %1422 = vmatpush1.msra.mxu0 %v1296
    %1423 = vmatprep.subr.mxu0 %v1346
    %1424 = vmatpush1.msra.mxu0 %v1349
    %1425 = vmatprep.subr.mxu0 %v1347
    %1426 = vmatpush1.msra.mxu0 %v1350
    %1427 = vmatprep.subr.mxu0 %v1348
    %1428 = vmatpush1.msra.mxu0 %v1351
    %1429 = vmatprep.subr.mxu0 0.0
    %1430 = vmatpush1.msra.mxu0 0.0
    %1431 = vmatprep.subr.mxu0 0.0
    %1432 = vmatpush1.msra.mxu0 0.0
    %1433 = vmatprep.subr.mxu0 0.0
    %1434 = vmatpush1.msra.mxu0 0.0
    %1435 = vmatprep.subr.mxu0 0.0
    %1436 = vmatpush1.msra.mxu0 0.0
    %1437 = vmatprep.subr.mxu0 0.0
    %1438 = vmatpush1.msra.mxu0 0.0
    %1439 = vmatprep.mubr.f32.mxu0 %v1371
    %1440 = vmatmul.mubr.f32.gmra.mrb[0].mxu0 %v1356
    %v1441 = vpop.f32.mrb[0].mxu0
    %v1442 = vadd.f32 %v1363, %v1441
    %v1443 = vpop.f32.mrb[0].mxu0
    %v1444 = vadd.f32 %v1363, %v1443
    %1445 = vmatprep.mubr.f32.mxu0 %v1373
    %1446 = vmatmul.mubr.f32.gmra.mrb[0].mxu0 %v1358
    %v1447 = vpop.f32.mrb[0].mxu0
    %v1448 = vadd.f32 %v1368, %v1447
    %v1449 = vpop.f32.mrb[0].mxu0
    %v1450 = vadd.f32 %v1368, %v1449
    %1451 = vdwg.mxu0
    %1452 = vmatprep.subr.mxu0 %v903
    %1453 = vmatpush1.msra.mxu0 %v902
    %1454 = vmatprep.subr.mxu0 %v909
    %1455 = vmatpush1.msra.mxu0 %v908
    %1456 = vmatprep.subr.mxu0 %v915
    %1457 = vmatpush1.msra.mxu0 %v914
    %1458 = vmatprep.subr.mxu0 %v957
    %1459 = vmatpush1.msra.mxu0 %v960
    %1460 = vmatprep.subr.mxu0 %v958
    %1461 = vmatpush1.msra.mxu0 %v961
    %1462 = vmatprep.subr.mxu0 %v959
    %1463 = vmatpush1.msra.mxu0 %v962
    %1464 = vmatprep.subr.mxu0 %v1012
    %1465 = vmatpush1.msra.mxu0 %v1015
    %1466 = vmatprep.subr.mxu0 %v1013
    %1467 = vmatpush1.msra.mxu0 %v1016
    %1468 = vmatprep.subr.mxu0 %v1014
    %1469 = vmatpush1.msra.mxu0 %v1017
    %1470 = vmatprep.subr.mxu0 %v1066
    %1471 = vmatpush1.msra.mxu0 %v1069
    %1472 = vmatprep.subr.mxu0 %v1067
    %1473 = vmatpush1.msra.mxu0 %v1070
    %1474 = vmatprep.subr.mxu0 %v1068
    %1475 = vmatpush1.msra.mxu0 %v1071
    %1476 = vmatprep.subr.mxu0 %v1120
    %1477 = vmatpush1.msra.mxu0 %v1123
    %1478 = vmatprep.subr.mxu0 %v1121
    %1479 = vmatpush1.msra.mxu0 %v1124
    %1480 = vmatprep.subr.mxu0 %v1122
    %1481 = vmatpush1.msra.mxu0 %v1125
    %1482 = vmatprep.subr.mxu0 %v1175
    %1483 = vmatpush1.msra.mxu0 %v1178
    %1484 = vmatprep.subr.mxu0 %v1176
    %1485 = vmatpush1.msra.mxu0 %v1179
    %1486 = vmatprep.subr.mxu0 %v1177
    %1487 = vmatpush1.msra.mxu0 %v1180
    %1488 = vmatprep.subr.mxu0 %v1230
    %1489 = vmatpush1.msra.mxu0 %v1233
    %1490 = vmatprep.subr.mxu0 %v1231
    %1491 = vmatpush1.msra.mxu0 %v1234
    %1492 = vmatprep.subr.mxu0 %v1232
    %1493 = vmatpush1.msra.mxu0 %v1235
    %1494 = vmatprep.subr.mxu0 %v1285
    %1495 = vmatpush1.msra.mxu0 %v1288
    %1496 = vmatprep.subr.mxu0 %v1286
    %1497 = vmatpush1.msra.mxu0 %v1289
    %1498 = vmatprep.subr.mxu0 %v1287
    %1499 = vmatpush1.msra.mxu0 %v1290
    %1500 = vmatprep.subr.mxu0 %v1340
    %1501 = vmatpush1.msra.mxu0 %v1343
    %1502 = vmatprep.subr.mxu0 %v1341
    %1503 = vmatpush1.msra.mxu0 %v1344
    %1504 = vmatprep.subr.mxu0 %v1342
    %1505 = vmatpush1.msra.mxu0 %v1345
    %1506 = vmatprep.subr.mxu0 0.0
    %1507 = vmatpush1.msra.mxu0 0.0
    %1508 = vmatprep.subr.mxu0 0.0
    %1509 = vmatpush1.msra.mxu0 0.0
    %1510 = vmatprep.subr.mxu0 0.0
    %1511 = vmatpush1.msra.mxu0 0.0
    %1512 = vmatprep.subr.mxu0 0.0
    %1513 = vmatpush1.msra.mxu0 0.0
    %1514 = vmatprep.subr.mxu0 0.0
    %1515 = vmatpush1.msra.mxu0 0.0
    %1516 = vmatprep.mubr.f32.mxu0 %v1371
    %1517 = vmatmul.mubr.f32.gmra.mrb[0].mxu0 %v1356
    %v1518 = vpop.f32.mrb[0].mxu0
    %v1519 = vadd.f32 %v1363, %v1518
    %v1520 = vpop.f32.mrb[0].mxu0
    %v1521 = vadd.f32 %v1363, %v1520
    %1522 = vmatprep.mubr.f32.mxu0 %v1373
    %1523 = vmatmul.mubr.f32.gmra.mrb[0].mxu0 %v1358
    %v1524 = vpop.f32.mrb[0].mxu0
    %v1525 = vadd.f32 %v1368, %v1524
    %v1526 = vpop.f32.mrb[0].mxu0
    %v1527 = vadd.f32 %v1368, %v1526
    %1528 = vdwg.mxu0
    %1529 = vmatprep.subr.mxu0 %v905
    %1530 = vmatpush1.msra.mxu0 %v904
    %1531 = vmatprep.subr.mxu0 %v911
    %1532 = vmatpush1.msra.mxu0 %v910
    %1533 = vmatprep.subr.mxu0 %v917
    %1534 = vmatpush1.msra.mxu0 %v916
    %1535 = vmatprep.subr.mxu0 %v969
    %1536 = vmatpush1.msra.mxu0 %v954
    %1537 = vmatprep.subr.mxu0 %v970
    %1538 = vmatpush1.msra.mxu0 %v955
    %1539 = vmatprep.subr.mxu0 %v971
    %1540 = vmatpush1.msra.mxu0 %v956
    %1541 = vmatprep.subr.mxu0 %v1024
    %1542 = vmatpush1.msra.mxu0 %v1009
    %1543 = vmatprep.subr.mxu0 %v1025
    %1544 = vmatpush1.msra.mxu0 %v1010
    %1545 = vmatprep.subr.mxu0 %v1026
    %1546 = vmatpush1.msra.mxu0 %v1011
    %1547 = vmatprep.subr.mxu0 %v1078
    %1548 = vmatpush1.msra.mxu0 %v1063
    %1549 = vmatprep.subr.mxu0 %v1079
    %1550 = vmatpush1.msra.mxu0 %v1064
    %1551 = vmatprep.subr.mxu0 %v1080
    %1552 = vmatpush1.msra.mxu0 %v1065
    %1553 = vmatprep.subr.mxu0 %v1132
    %1554 = vmatpush1.msra.mxu0 %v1117
    %1555 = vmatprep.subr.mxu0 %v1133
    %1556 = vmatpush1.msra.mxu0 %v1118
    %1557 = vmatprep.subr.mxu0 %v1134
    %1558 = vmatpush1.msra.mxu0 %v1119
    %1559 = vmatprep.subr.mxu0 %v1187
    %1560 = vmatpush1.msra.mxu0 %v1172
    %1561 = vmatprep.subr.mxu0 %v1188
    %1562 = vmatpush1.msra.mxu0 %v1173
    %1563 = vmatprep.subr.mxu0 %v1189
    %1564 = vmatpush1.msra.mxu0 %v1174
    %1565 = vmatprep.subr.mxu0 %v1242
    %1566 = vmatpush1.msra.mxu0 %v1227
    %1567 = vmatprep.subr.mxu0 %v1243
    %1568 = vmatpush1.msra.mxu0 %v1228
    %1569 = vmatprep.subr.mxu0 %v1244
    %1570 = vmatpush1.msra.mxu0 %v1229
    %1571 = vmatprep.subr.mxu0 %v1297
    %1572 = vmatpush1.msra.mxu0 %v1282
    %1573 = vmatprep.subr.mxu0 %v1298
    %1574 = vmatpush1.msra.mxu0 %v1283
    %1575 = vmatprep.subr.mxu0 %v1299
    %1576 = vmatpush1.msra.mxu0 %v1284
    %1577 = vmatprep.subr.mxu0 %v1352
    %1578 = vmatpush1.msra.mxu0 %v1337
    %1579 = vmatprep.subr.mxu0 %v1353
    %1580 = vmatpush1.msra.mxu0 %v1338
    %1581 = vmatprep.subr.mxu0 %v1354
    %1582 = vmatpush1.msra.mxu0 %v1339
    %1583 = vmatprep.subr.mxu0 0.0
    %1584 = vmatpush1.msra.mxu0 0.0
    %1585 = vmatprep.subr.mxu0 0.0
    %1586 = vmatpush1.msra.mxu0 0.0
    %1587 = vmatprep.subr.mxu0 0.0
    %1588 = vmatpush1.msra.mxu0 0.0
    %1589 = vmatprep.subr.mxu0 0.0
    %1590 = vmatpush1.msra.mxu0 0.0
    %1591 = vmatprep.subr.mxu0 0.0
    %1592 = vmatpush1.msra.mxu0 0.0
    %1593 = vmatprep.mubr.f32.mxu0 %v1371
    %1594 = vmatmul.mubr.f32.gmra.mrb[0].mxu0 %v1356
    %v1595 = vpop.f32.mrb[0].mxu0
    %v1596 = vadd.f32 %v1363, %v1595
    %v1597 = vpop.f32.mrb[0].mxu0
    %v1598 = vadd.f32 %v1363, %v1597
    %1599 = vmatprep.mubr.f32.mxu0 %v1373
    %1600 = vmatmul.mubr.f32.gmra.mrb[0].mxu0 %v1358
    %v1601 = vpop.f32.mrb[0].mxu0
    %v1602 = vadd.f32 %v1368, %v1601
    %v1603 = vpop.f32.mrb[0].mxu0
    %v1604 = vadd.f32 %v1368, %v1603
    %1605 = vdwg.mxu0
    %v1606 = vmax.f32 %v1442, 0.0
    %v1607 = vmax.f32 %v1444, 0.0
    %v1608 = vmax.f32 %v1519, 0.0
    %v1609 = vmax.f32 %v1521, 0.0
    %v1610 = vmax.f32 %v1596, 0.0
    %v1611 = vmax.f32 %v1598, 0.0
    %v1612 = vmax.f32 %v1448, 0.0
    %v1613 = vmax.f32 %v1450, 0.0
    %v1614 = vmax.f32 %v1525, 0.0
    %v1615 = vmax.f32 %v1527, 0.0
    %v1616 = vmax.f32 %v1602, 0.0
    %v1617 = vmax.f32 %v1604, 0.0
    %1618 = vrot.lane.b32.xlu0 %v1606, 126
    %v1619 = vpop.permute.xlu0 %1618
    %1620 = vrot.lane.b32.xlu0 %v1612, 126
    %v1621 = vpop.permute.xlu0 %1620
    %1622 = vrot.lane.b32.xlu0 %v1607, 126
    %v1623 = vpop.permute.xlu0 %1622
    %1624 = vrot.lane.b32.xlu0 %v1613, 126
    %v1625 = vpop.permute.xlu0 %1624
    %1626 = vrot.lane.b32.xlu0 %v1608, 126
    %v1627 = vpop.permute.xlu0 %1626
    %1628 = vrot.lane.b32.xlu0 %v1614, 126
    %v1629 = vpop.permute.xlu0 %1628
    %1630 = vrot.lane.b32.xlu0 %v1609, 126
    %v1631 = vpop.permute.xlu0 %1630
    %1632 = vrot.lane.b32.xlu0 %v1615, 126
    %v1633 = vpop.permute.xlu0 %1632
    %1634 = vrot.lane.b32.xlu0 %v1610, 126
    %v1635 = vpop.permute.xlu0 %1634
    %1636 = vrot.lane.b32.xlu0 %v1616, 126
    %v1637 = vpop.permute.xlu0 %1636
    %1638 = vrot.lane.b32.xlu0 %v1611, 126
    %v1639 = vpop.permute.xlu0 %1638
    %1640 = vrot.lane.b32.xlu0 %v1617, 126
    %v1641 = vpop.permute.xlu0 %1640
    %v1642 = vsel %vm96, %v1635, %v1639
    %v1643 = vsel %vm96, %v1637, %v1641
    %v1644 = vsel %vm96, %v1631, %v1635
    %v1645 = vsel %vm96, %v1633, %v1637
    %v1646 = vsel %vm96, %v1627, %v1631
    %v1647 = vsel %vm96, %v1629, %v1633
    %v1648 = vsel %vm96, %v1623, %v1627
    %v1649 = vsel %vm96, %v1625, %v1629
    %v1650 = vsel %vm96, %v1619, %v1623
    %v1651 = vsel %vm96, %v1621, %v1625
    %v1652 = vsel %vm96, %v1639, %v1619
    %v1653 = vsel %vm96, %v1641, %v1621
    %v1654 = vmax.f32 %v1606, %v1650
    %v1655 = vmax.f32 %v1607, %v1648
    %v1656 = vmax.f32 %v1608, %v1646
    %v1657 = vmax.f32 %v1609, %v1644
    %v1658 = vmax.f32 %v1610, %v1642
    %v1659 = vmax.f32 %v1611, %v1652
    %v1660 = vmax.f32 %v1612, %v1651
    %v1661 = vmax.f32 %v1613, %v1649
    %v1662 = vmax.f32 %v1614, %v1647
    %v1663 = vmax.f32 %v1615, %v1645
    %v1664 = vmax.f32 %v1616, %v1643
    %v1665 = vmax.f32 %v1617, %v1653
    %1666 = vrot.lane.b32.xlu0 %v1606, 92
    %v1667 = vpop.permute.xlu0 %1666
    %1668 = vrot.lane.b32.xlu0 %v1612, 92
    %v1669 = vpop.permute.xlu0 %1668
    %1670 = vrot.lane.b32.xlu0 %v1607, 92
    %v1671 = vpop.permute.xlu0 %1670
    %1672 = vrot.lane.b32.xlu0 %v1613, 92
    %v1673 = vpop.permute.xlu0 %1672
    %1674 = vrot.lane.b32.xlu0 %v1608, 92
    %v1675 = vpop.permute.xlu0 %1674
    %1676 = vrot.lane.b32.xlu0 %v1614, 92
    %v1677 = vpop.permute.xlu0 %1676
    %1678 = vrot.lane.b32.xlu0 %v1609, 92
    %v1679 = vpop.permute.xlu0 %1678
    %1680 = vrot.lane.b32.xlu0 %v1615, 92
    %v1681 = vpop.permute.xlu0 %1680
    %1682 = vrot.lane.b32.xlu0 %v1610, 92
    %v1683 = vpop.permute.xlu0 %1682
    %1684 = vrot.lane.b32.xlu0 %v1616, 92
    %v1685 = vpop.permute.xlu0 %1684
    %1686 = vrot.lane.b32.xlu0 %v1611, 92
    %v1687 = vpop.permute.xlu0 %1686
    %1688 = vrot.lane.b32.xlu0 %v1617, 92
    %v1689 = vpop.permute.xlu0 %1688
    %v1690 = vsel %vm172, %v1683, %v1687
    %v1691 = vsel %vm172, %v1685, %v1689
    %v1692 = vsel %vm172, %v1679, %v1683
    %v1693 = vsel %vm172, %v1681, %v1685
    %v1694 = vsel %vm172, %v1675, %v1679
    %v1695 = vsel %vm172, %v1677, %v1681
    %v1696 = vsel %vm172, %v1671, %v1675
    %v1697 = vsel %vm172, %v1673, %v1677
    %v1698 = vsel %vm172, %v1667, %v1671
    %v1699 = vsel %vm172, %v1669, %v1673
    %v1700 = vsel %vm172, %v1687, %v1667
    %v1701 = vsel %vm172, %v1689, %v1669
    %v1702 = vmax.f32 %v1654, %v1698
    %v1703 = vmax.f32 %v1655, %v1696
    %v1704 = vmax.f32 %v1656, %v1694
    %v1705 = vmax.f32 %v1657, %v1692
    %v1706 = vmax.f32 %v1658, %v1690
    %v1707 = vmax.f32 %v1659, %v1700
    %v1708 = vmax.f32 %v1660, %v1699
    %v1709 = vmax.f32 %v1661, %v1697
    %v1710 = vmax.f32 %v1662, %v1695
    %v1711 = vmax.f32 %v1663, %v1693
    %v1712 = vmax.f32 %v1664, %v1691
    %v1713 = vmax.f32 %v1665, %v1701
    %1714 = vrot.lane.b32.xlu0 %v1606, 90
    %v1715 = vpop.permute.xlu0 %1714
    %1716 = vrot.lane.b32.xlu0 %v1612, 90
    %v1717 = vpop.permute.xlu0 %1716
    %1718 = vrot.lane.b32.xlu0 %v1607, 90
    %v1719 = vpop.permute.xlu0 %1718
    %1720 = vrot.lane.b32.xlu0 %v1613, 90
    %v1721 = vpop.permute.xlu0 %1720
    %1722 = vrot.lane.b32.xlu0 %v1608, 90
    %v1723 = vpop.permute.xlu0 %1722
    %1724 = vrot.lane.b32.xlu0 %v1614, 90
    %v1725 = vpop.permute.xlu0 %1724
    %1726 = vrot.lane.b32.xlu0 %v1609, 90
    %v1727 = vpop.permute.xlu0 %1726
    %1728 = vrot.lane.b32.xlu0 %v1615, 90
    %v1729 = vpop.permute.xlu0 %1728
    %1730 = vrot.lane.b32.xlu0 %v1610, 90
    %v1731 = vpop.permute.xlu0 %1730
    %1732 = vrot.lane.b32.xlu0 %v1616, 90
    %v1733 = vpop.permute.xlu0 %1732
    %1734 = vrot.lane.b32.xlu0 %v1611, 90
    %v1735 = vpop.permute.xlu0 %1734
    %1736 = vrot.lane.b32.xlu0 %v1617, 90
    %v1737 = vpop.permute.xlu0 %1736
    %v1738 = vsel %vm210, %v1731, %v1735
    %v1739 = vsel %vm210, %v1733, %v1737
    %v1740 = vsel %vm210, %v1727, %v1731
    %v1741 = vsel %vm210, %v1729, %v1733
    %v1742 = vsel %vm210, %v1723, %v1727
    %v1743 = vsel %vm210, %v1725, %v1729
    %v1744 = vsel %vm210, %v1719, %v1723
    %v1745 = vsel %vm210, %v1721, %v1725
    %v1746 = vsel %vm210, %v1715, %v1719
    %v1747 = vsel %vm210, %v1717, %v1721
    %v1748 = vsel %vm210, %v1735, %v1715
    %v1749 = vsel %vm210, %v1737, %v1717
    %v1750 = vmax.f32 %v1702, %v1746
    %v1751 = vmax.f32 %v1703, %v1744
    %v1752 = vmax.f32 %v1704, %v1742
    %v1753 = vmax.f32 %v1705, %v1740
    %v1754 = vmax.f32 %v1706, %v1738
    %v1755 = vmax.f32 %v1707, %v1748
    %v1756 = vmax.f32 %v1708, %v1747
    %v1757 = vmax.f32 %v1709, %v1745
    %v1758 = vmax.f32 %v1710, %v1743
    %v1759 = vmax.f32 %v1711, %v1741
    %v1760 = vmax.f32 %v1712, %v1739
    %v1761 = vmax.f32 %v1713, %v1749
    %v1765 = vlaneseq
    %v1766 = vshrl.u32 %v1765, 7
    %v1767 = vsub.s32 0, %v1766
    %v1768 = vrot.slane %v29, %v1767
    %v1769 = vlaneseq
    %v1770 = vshrl.u32 %v1769, 7
    %v1771 = vsub.s32 4, %v1770
    %v1772 = vrot.slane %v29, %v1771
    %v1773 = vlaneseq
    %v1774 = vshrl.u32 %v1773, 7
    %v1775 = vsub.s32 0, %v1774
    %v1776 = vrot.slane %v30, %v1775
    %v1777 = vlaneseq
    %v1778 = vshrl.u32 %v1777, 7
    %v1779 = vsub.s32 4, %v1778
    %v1780 = vrot.slane %v30, %v1779
    %v1781 = vlaneseq
    %v1782 = vshrl.u32 %v1781, 7
    %v1783 = vsub.s32 0, %v1782
    %v1784 = vrot.slane %v31, %v1783
    %v1785 = vlaneseq
    %v1786 = vshrl.u32 %v1785, 7
    %v1787 = vsub.s32 4, %v1786
    %v1788 = vrot.slane %v31, %v1787
    %v1795 = vlaneseq
    %v1796 = vshrl.u32 %v1795, 7
    %v1797 = vsub.s32 0, %v1796
    %v1798 = vrot.slane %v1768, %v1797
    %v1799 = vlaneseq
    %v1800 = vshrl.u32 %v1799, 7
    %v1801 = vsub.s32 0, %v1800
    %v1802 = vrot.slane %v1772, %v1801
    %v1803 = vlaneseq
    %v1804 = vshrl.u32 %v1803, 7
    %v1805 = vsub.s32 0, %v1804
    %v1806 = vrot.slane %v1776, %v1805
    %v1807 = vlaneseq
    %v1808 = vshrl.u32 %v1807, 7
    %v1809 = vsub.s32 0, %v1808
    %v1810 = vrot.slane %v1780, %v1809
    %v1811 = vlaneseq
    %v1812 = vshrl.u32 %v1811, 7
    %v1813 = vsub.s32 0, %v1812
    %v1814 = vrot.slane %v1784, %v1813
    %v1815 = vlaneseq
    %v1816 = vshrl.u32 %v1815, 7
    %v1817 = vsub.s32 0, %v1816
    %v1818 = vrot.slane %v1788, %v1817
    %v1819 = vmul.f32 %v1750, %v1798
    %v1820 = vmul.f32 %v1751, %v1802
    %v1821 = vmul.f32 %v1752, %v1806
    %v1822 = vmul.f32 %v1753, %v1810
    %v1823 = vmul.f32 %v1754, %v1814
    %v1824 = vmul.f32 %v1755, %v1818
    %v1825 = vmul.f32 %v1756, %v1798
    %v1826 = vmul.f32 %v1757, %v1802
    %v1827 = vmul.f32 %v1758, %v1806
    %v1828 = vmul.f32 %v1759, %v1810
    %v1829 = vmul.f32 %v1760, %v1814
    %v1830 = vmul.f32 %v1761, %v1818
    %1831 = vrot.lane.b32.xlu0 %v1819, 76
    %v1832 = vpop.permute.xlu0 %1831
    %1833 = vrot.lane.b32.xlu0 %v1825, 76
    %v1834 = vpop.permute.xlu0 %1833
    %1835 = vrot.lane.b32.xlu0 %v1820, 76
    %v1836 = vpop.permute.xlu0 %1835
    %1837 = vrot.lane.b32.xlu0 %v1826, 76
    %v1838 = vpop.permute.xlu0 %1837
    %1839 = vrot.lane.b32.xlu0 %v1821, 76
    %v1840 = vpop.permute.xlu0 %1839
    %1841 = vrot.lane.b32.xlu0 %v1827, 76
    %v1842 = vpop.permute.xlu0 %1841
    %1843 = vrot.lane.b32.xlu0 %v1822, 76
    %v1844 = vpop.permute.xlu0 %1843
    %1845 = vrot.lane.b32.xlu0 %v1828, 76
    %v1846 = vpop.permute.xlu0 %1845
    %1847 = vrot.lane.b32.xlu0 %v1823, 76
    %v1848 = vpop.permute.xlu0 %1847
    %1849 = vrot.lane.b32.xlu0 %v1829, 76
    %v1850 = vpop.permute.xlu0 %1849
    %1851 = vrot.lane.b32.xlu0 %v1824, 76
    %v1852 = vpop.permute.xlu0 %1851
    %1853 = vrot.lane.b32.xlu0 %v1830, 76
    %v1854 = vpop.permute.xlu0 %1853
    %vm1855 = vcmp.lt.s32.totalorder %v76, 76
    %v1856 = vsel %vm1855, %v1848, %v1852
    %v1857 = vsel %vm1855, %v1850, %v1854
    %v1858 = vsel %vm1855, %v1844, %v1848
    %v1859 = vsel %vm1855, %v1846, %v1850
    %v1860 = vsel %vm1855, %v1840, %v1844
    %v1861 = vsel %vm1855, %v1842, %v1846
    %v1862 = vsel %vm1855, %v1836, %v1840
    %v1863 = vsel %vm1855, %v1838, %v1842
    %v1864 = vsel %vm1855, %v1832, %v1836
    %v1865 = vsel %vm1855, %v1834, %v1838
    %v1866 = vsel %vm1855, %v1852, %v1832
    %v1867 = vsel %vm1855, %v1854, %v1834
    %1868 = vrot.lane.b32.xlu0 %v1866, 127
    %v1869 = vpop.permute.xlu0 %1868
    %1870 = vrot.lane.b32.xlu0 %v1867, 127
    %v1871 = vpop.permute.xlu0 %1870
    %1872 = vrot.lane.b32.xlu0 %v1864, 127
    %v1873 = vpop.permute.xlu0 %1872
    %1874 = vrot.lane.b32.xlu0 %v1865, 127
    %v1875 = vpop.permute.xlu0 %1874
    %1876 = vrot.lane.b32.xlu0 %v1862, 127
    %v1877 = vpop.permute.xlu0 %1876
    %1878 = vrot.lane.b32.xlu0 %v1863, 127
    %v1879 = vpop.permute.xlu0 %1878
    %1880 = vrot.lane.b32.xlu0 %v1860, 127
    %v1881 = vpop.permute.xlu0 %1880
    %1882 = vrot.lane.b32.xlu0 %v1861, 127
    %v1883 = vpop.permute.xlu0 %1882
    %1884 = vrot.lane.b32.xlu0 %v1858, 127
    %v1885 = vpop.permute.xlu0 %1884
    %1886 = vrot.lane.b32.xlu0 %v1859, 127
    %v1887 = vpop.permute.xlu0 %1886
    %1888 = vrot.lane.b32.xlu0 %v1856, 127
    %v1889 = vpop.permute.xlu0 %1888
    %1890 = vrot.lane.b32.xlu0 %v1857, 127
    %v1891 = vpop.permute.xlu0 %1890
    %v1892 = vsel %vm77, %v1885, %v1889
    %v1893 = vsel %vm77, %v1887, %v1891
    %v1894 = vsel %vm77, %v1881, %v1885
    %v1895 = vsel %vm77, %v1883, %v1887
    %v1896 = vsel %vm77, %v1877, %v1881
    %v1897 = vsel %vm77, %v1879, %v1883
    %v1898 = vsel %vm77, %v1873, %v1877
    %v1899 = vsel %vm77, %v1875, %v1879
    %v1900 = vsel %vm77, %v1869, %v1873
    %v1901 = vsel %vm77, %v1871, %v1875
    %v1902 = vsel %vm77, %v1889, %v1869
    %v1903 = vsel %vm77, %v1891, %v1871
    %1904 = vrot.lane.b32.xlu0 %v1866, 126
    %v1905 = vpop.permute.xlu0 %1904
    %1906 = vrot.lane.b32.xlu0 %v1867, 126
    %v1907 = vpop.permute.xlu0 %1906
    %1908 = vrot.lane.b32.xlu0 %v1864, 126
    %v1909 = vpop.permute.xlu0 %1908
    %1910 = vrot.lane.b32.xlu0 %v1865, 126
    %v1911 = vpop.permute.xlu0 %1910
    %1912 = vrot.lane.b32.xlu0 %v1862, 126
    %v1913 = vpop.permute.xlu0 %1912
    %1914 = vrot.lane.b32.xlu0 %v1863, 126
    %v1915 = vpop.permute.xlu0 %1914
    %1916 = vrot.lane.b32.xlu0 %v1860, 126
    %v1917 = vpop.permute.xlu0 %1916
    %1918 = vrot.lane.b32.xlu0 %v1861, 126
    %v1919 = vpop.permute.xlu0 %1918
    %1920 = vrot.lane.b32.xlu0 %v1858, 126
    %v1921 = vpop.permute.xlu0 %1920
    %1922 = vrot.lane.b32.xlu0 %v1859, 126
    %v1923 = vpop.permute.xlu0 %1922
    %1924 = vrot.lane.b32.xlu0 %v1856, 126
    %v1925 = vpop.permute.xlu0 %1924
    %1926 = vrot.lane.b32.xlu0 %v1857, 126
    %v1927 = vpop.permute.xlu0 %1926
    %v1928 = vsel %vm96, %v1921, %v1925
    %v1929 = vsel %vm96, %v1923, %v1927
    %v1930 = vsel %vm96, %v1917, %v1921
    %v1931 = vsel %vm96, %v1919, %v1923
    %v1932 = vsel %vm96, %v1913, %v1917
    %v1933 = vsel %vm96, %v1915, %v1919
    %v1934 = vsel %vm96, %v1909, %v1913
    %v1935 = vsel %vm96, %v1911, %v1915
    %v1936 = vsel %vm96, %v1905, %v1909
    %v1937 = vsel %vm96, %v1907, %v1911
    %v1938 = vsel %vm96, %v1925, %v1905
    %v1939 = vsel %vm96, %v1927, %v1907
    %1940 = vrot.lane.b32.xlu0 %v1866, 125
    %v1941 = vpop.permute.xlu0 %1940
    %1942 = vrot.lane.b32.xlu0 %v1867, 125
    %v1943 = vpop.permute.xlu0 %1942
    %1944 = vrot.lane.b32.xlu0 %v1864, 125
    %v1945 = vpop.permute.xlu0 %1944
    %1946 = vrot.lane.b32.xlu0 %v1865, 125
    %v1947 = vpop.permute.xlu0 %1946
    %1948 = vrot.lane.b32.xlu0 %v1862, 125
    %v1949 = vpop.permute.xlu0 %1948
    %1950 = vrot.lane.b32.xlu0 %v1863, 125
    %v1951 = vpop.permute.xlu0 %1950
    %1952 = vrot.lane.b32.xlu0 %v1860, 125
    %v1953 = vpop.permute.xlu0 %1952
    %1954 = vrot.lane.b32.xlu0 %v1861, 125
    %v1955 = vpop.permute.xlu0 %1954
    %1956 = vrot.lane.b32.xlu0 %v1858, 125
    %v1957 = vpop.permute.xlu0 %1956
    %1958 = vrot.lane.b32.xlu0 %v1859, 125
    %v1959 = vpop.permute.xlu0 %1958
    %1960 = vrot.lane.b32.xlu0 %v1856, 125
    %v1961 = vpop.permute.xlu0 %1960
    %1962 = vrot.lane.b32.xlu0 %v1857, 125
    %v1963 = vpop.permute.xlu0 %1962
    %vm1964 = vcmp.lt.s32.totalorder %v76, 125
    %v1965 = vsel %vm1964, %v1957, %v1961
    %v1966 = vsel %vm1964, %v1959, %v1963
    %v1967 = vsel %vm1964, %v1953, %v1957
    %v1968 = vsel %vm1964, %v1955, %v1959
    %v1969 = vsel %vm1964, %v1949, %v1953
    %v1970 = vsel %vm1964, %v1951, %v1955
    %v1971 = vsel %vm1964, %v1945, %v1949
    %v1972 = vsel %vm1964, %v1947, %v1951
    %v1973 = vsel %vm1964, %v1941, %v1945
    %v1974 = vsel %vm1964, %v1943, %v1947
    %v1975 = vsel %vm1964, %v1961, %v1941
    %v1976 = vsel %vm1964, %v1963, %v1943
    %1977 = vrot.lane.b32.xlu0 %v1866, 124
    %v1978 = vpop.permute.xlu0 %1977
    %1979 = vrot.lane.b32.xlu0 %v1867, 124
    %v1980 = vpop.permute.xlu0 %1979
    %1981 = vrot.lane.b32.xlu0 %v1864, 124
    %v1982 = vpop.permute.xlu0 %1981
    %1983 = vrot.lane.b32.xlu0 %v1865, 124
    %v1984 = vpop.permute.xlu0 %1983
    %1985 = vrot.lane.b32.xlu0 %v1862, 124
    %v1986 = vpop.permute.xlu0 %1985
    %1987 = vrot.lane.b32.xlu0 %v1863, 124
    %v1988 = vpop.permute.xlu0 %1987
    %1989 = vrot.lane.b32.xlu0 %v1860, 124
    %v1990 = vpop.permute.xlu0 %1989
    %1991 = vrot.lane.b32.xlu0 %v1861, 124
    %v1992 = vpop.permute.xlu0 %1991
    %1993 = vrot.lane.b32.xlu0 %v1858, 124
    %v1994 = vpop.permute.xlu0 %1993
    %1995 = vrot.lane.b32.xlu0 %v1859, 124
    %v1996 = vpop.permute.xlu0 %1995
    %1997 = vrot.lane.b32.xlu0 %v1856, 124
    %v1998 = vpop.permute.xlu0 %1997
    %1999 = vrot.lane.b32.xlu0 %v1857, 124
    %v2000 = vpop.permute.xlu0 %1999
    %v2001 = vsel %vm1008, %v1994, %v1998
    %v2002 = vsel %vm1008, %v1996, %v2000
    %v2003 = vsel %vm1008, %v1990, %v1994
    %v2004 = vsel %vm1008, %v1992, %v1996
    %v2005 = vsel %vm1008, %v1986, %v1990
    %v2006 = vsel %vm1008, %v1988, %v1992
    %v2007 = vsel %vm1008, %v1982, %v1986
    %v2008 = vsel %vm1008, %v1984, %v1988
    %v2009 = vsel %vm1008, %v1978, %v1982
    %v2010 = vsel %vm1008, %v1980, %v1984
    %v2011 = vsel %vm1008, %v1998, %v1978
    %v2012 = vsel %vm1008, %v2000, %v1980
    %2013 = vrot.lane.b32.xlu0 %v1866, 110
    %v2014 = vpop.permute.xlu0 %2013
    %2015 = vrot.lane.b32.xlu0 %v1867, 110
    %v2016 = vpop.permute.xlu0 %2015
    %2017 = vrot.lane.b32.xlu0 %v1864, 110
    %v2018 = vpop.permute.xlu0 %2017
    %2019 = vrot.lane.b32.xlu0 %v1865, 110
    %v2020 = vpop.permute.xlu0 %2019
    %2021 = vrot.lane.b32.xlu0 %v1862, 110
    %v2022 = vpop.permute.xlu0 %2021
    %2023 = vrot.lane.b32.xlu0 %v1863, 110
    %v2024 = vpop.permute.xlu0 %2023
    %2025 = vrot.lane.b32.xlu0 %v1860, 110
    %v2026 = vpop.permute.xlu0 %2025
    %2027 = vrot.lane.b32.xlu0 %v1861, 110
    %v2028 = vpop.permute.xlu0 %2027
    %2029 = vrot.lane.b32.xlu0 %v1858, 110
    %v2030 = vpop.permute.xlu0 %2029
    %2031 = vrot.lane.b32.xlu0 %v1859, 110
    %v2032 = vpop.permute.xlu0 %2031
    %2033 = vrot.lane.b32.xlu0 %v1856, 110
    %v2034 = vpop.permute.xlu0 %2033
    %2035 = vrot.lane.b32.xlu0 %v1857, 110
    %v2036 = vpop.permute.xlu0 %2035
    %v2037 = vsel %vm115, %v2030, %v2034
    %v2038 = vsel %vm115, %v2032, %v2036
    %v2039 = vsel %vm115, %v2026, %v2030
    %v2040 = vsel %vm115, %v2028, %v2032
    %v2041 = vsel %vm115, %v2022, %v2026
    %v2042 = vsel %vm115, %v2024, %v2028
    %v2043 = vsel %vm115, %v2018, %v2022
    %v2044 = vsel %vm115, %v2020, %v2024
    %v2045 = vsel %vm115, %v2014, %v2018
    %v2046 = vsel %vm115, %v2016, %v2020
    %v2047 = vsel %vm115, %v2034, %v2014
    %v2048 = vsel %vm115, %v2036, %v2016
    %2049 = vrot.lane.b32.xlu0 %v1866, 109
    %v2050 = vpop.permute.xlu0 %2049
    %2051 = vrot.lane.b32.xlu0 %v1867, 109
    %v2052 = vpop.permute.xlu0 %2051
    %2053 = vrot.lane.b32.xlu0 %v1864, 109
    %v2054 = vpop.permute.xlu0 %2053
    %2055 = vrot.lane.b32.xlu0 %v1865, 109
    %v2056 = vpop.permute.xlu0 %2055
    %2057 = vrot.lane.b32.xlu0 %v1862, 109
    %v2058 = vpop.permute.xlu0 %2057
    %2059 = vrot.lane.b32.xlu0 %v1863, 109
    %v2060 = vpop.permute.xlu0 %2059
    %2061 = vrot.lane.b32.xlu0 %v1860, 109
    %v2062 = vpop.permute.xlu0 %2061
    %2063 = vrot.lane.b32.xlu0 %v1861, 109
    %v2064 = vpop.permute.xlu0 %2063
    %2065 = vrot.lane.b32.xlu0 %v1858, 109
    %v2066 = vpop.permute.xlu0 %2065
    %2067 = vrot.lane.b32.xlu0 %v1859, 109
    %v2068 = vpop.permute.xlu0 %2067
    %2069 = vrot.lane.b32.xlu0 %v1856, 109
    %v2070 = vpop.permute.xlu0 %2069
    %2071 = vrot.lane.b32.xlu0 %v1857, 109
    %v2072 = vpop.permute.xlu0 %2071
    %v2073 = vsel %vm134, %v2066, %v2070
    %v2074 = vsel %vm134, %v2068, %v2072
    %v2075 = vsel %vm134, %v2062, %v2066
    %v2076 = vsel %vm134, %v2064, %v2068
    %v2077 = vsel %vm134, %v2058, %v2062
    %v2078 = vsel %vm134, %v2060, %v2064
    %v2079 = vsel %vm134, %v2054, %v2058
    %v2080 = vsel %vm134, %v2056, %v2060
    %v2081 = vsel %vm134, %v2050, %v2054
    %v2082 = vsel %vm134, %v2052, %v2056
    %v2083 = vsel %vm134, %v2070, %v2050
    %v2084 = vsel %vm134, %v2072, %v2052
    %2085 = vrot.lane.b32.xlu0 %v1866, 108
    %v2086 = vpop.permute.xlu0 %2085
    %2087 = vrot.lane.b32.xlu0 %v1867, 108
    %v2088 = vpop.permute.xlu0 %2087
    %2089 = vrot.lane.b32.xlu0 %v1864, 108
    %v2090 = vpop.permute.xlu0 %2089
    %2091 = vrot.lane.b32.xlu0 %v1865, 108
    %v2092 = vpop.permute.xlu0 %2091
    %2093 = vrot.lane.b32.xlu0 %v1862, 108
    %v2094 = vpop.permute.xlu0 %2093
    %2095 = vrot.lane.b32.xlu0 %v1863, 108
    %v2096 = vpop.permute.xlu0 %2095
    %2097 = vrot.lane.b32.xlu0 %v1860, 108
    %v2098 = vpop.permute.xlu0 %2097
    %2099 = vrot.lane.b32.xlu0 %v1861, 108
    %v2100 = vpop.permute.xlu0 %2099
    %2101 = vrot.lane.b32.xlu0 %v1858, 108
    %v2102 = vpop.permute.xlu0 %2101
    %2103 = vrot.lane.b32.xlu0 %v1859, 108
    %v2104 = vpop.permute.xlu0 %2103
    %2105 = vrot.lane.b32.xlu0 %v1856, 108
    %v2106 = vpop.permute.xlu0 %2105
    %2107 = vrot.lane.b32.xlu0 %v1857, 108
    %v2108 = vpop.permute.xlu0 %2107
    %v2109 = vsel %vm153, %v2102, %v2106
    %v2110 = vsel %vm153, %v2104, %v2108
    %v2111 = vsel %vm153, %v2098, %v2102
    %v2112 = vsel %vm153, %v2100, %v2104
    %v2113 = vsel %vm153, %v2094, %v2098
    %v2114 = vsel %vm153, %v2096, %v2100
    %v2115 = vsel %vm153, %v2090, %v2094
    %v2116 = vsel %vm153, %v2092, %v2096
    %v2117 = vsel %vm153, %v2086, %v2090
    %v2118 = vsel %vm153, %v2088, %v2092
    %v2119 = vsel %vm153, %v2106, %v2086
    %v2120 = vsel %vm153, %v2108, %v2088
    %2121 = vrot.lane.b32.xlu0 %v1866, 107
    %v2122 = vpop.permute.xlu0 %2121
    %2123 = vrot.lane.b32.xlu0 %v1867, 107
    %v2124 = vpop.permute.xlu0 %2123
    %2125 = vrot.lane.b32.xlu0 %v1864, 107
    %v2126 = vpop.permute.xlu0 %2125
    %2127 = vrot.lane.b32.xlu0 %v1865, 107
    %v2128 = vpop.permute.xlu0 %2127
    %2129 = vrot.lane.b32.xlu0 %v1862, 107
    %v2130 = vpop.permute.xlu0 %2129
    %2131 = vrot.lane.b32.xlu0 %v1863, 107
    %v2132 = vpop.permute.xlu0 %2131
    %2133 = vrot.lane.b32.xlu0 %v1860, 107
    %v2134 = vpop.permute.xlu0 %2133
    %2135 = vrot.lane.b32.xlu0 %v1861, 107
    %v2136 = vpop.permute.xlu0 %2135
    %2137 = vrot.lane.b32.xlu0 %v1858, 107
    %v2138 = vpop.permute.xlu0 %2137
    %2139 = vrot.lane.b32.xlu0 %v1859, 107
    %v2140 = vpop.permute.xlu0 %2139
    %2141 = vrot.lane.b32.xlu0 %v1856, 107
    %v2142 = vpop.permute.xlu0 %2141
    %2143 = vrot.lane.b32.xlu0 %v1857, 107
    %v2144 = vpop.permute.xlu0 %2143
    %vm2145 = vcmp.lt.s32.totalorder %v76, 107
    %v2146 = vsel %vm2145, %v2138, %v2142
    %v2147 = vsel %vm2145, %v2140, %v2144
    %v2148 = vsel %vm2145, %v2134, %v2138
    %v2149 = vsel %vm2145, %v2136, %v2140
    %v2150 = vsel %vm2145, %v2130, %v2134
    %v2151 = vsel %vm2145, %v2132, %v2136
    %v2152 = vsel %vm2145, %v2126, %v2130
    %v2153 = vsel %vm2145, %v2128, %v2132
    %v2154 = vsel %vm2145, %v2122, %v2126
    %v2155 = vsel %vm2145, %v2124, %v2128
    %v2156 = vsel %vm2145, %v2142, %v2122
    %v2157 = vsel %vm2145, %v2144, %v2124
    %2158 = vrot.lane.b32.xlu0 %v1866, 106
    %v2159 = vpop.permute.xlu0 %2158
    %2160 = vrot.lane.b32.xlu0 %v1867, 106
    %v2161 = vpop.permute.xlu0 %2160
    %2162 = vrot.lane.b32.xlu0 %v1864, 106
    %v2163 = vpop.permute.xlu0 %2162
    %2164 = vrot.lane.b32.xlu0 %v1865, 106
    %v2165 = vpop.permute.xlu0 %2164
    %2166 = vrot.lane.b32.xlu0 %v1862, 106
    %v2167 = vpop.permute.xlu0 %2166
    %2168 = vrot.lane.b32.xlu0 %v1863, 106
    %v2169 = vpop.permute.xlu0 %2168
    %2170 = vrot.lane.b32.xlu0 %v1860, 106
    %v2171 = vpop.permute.xlu0 %2170
    %2172 = vrot.lane.b32.xlu0 %v1861, 106
    %v2173 = vpop.permute.xlu0 %2172
    %2174 = vrot.lane.b32.xlu0 %v1858, 106
    %v2175 = vpop.permute.xlu0 %2174
    %2176 = vrot.lane.b32.xlu0 %v1859, 106
    %v2177 = vpop.permute.xlu0 %2176
    %2178 = vrot.lane.b32.xlu0 %v1856, 106
    %v2179 = vpop.permute.xlu0 %2178
    %2180 = vrot.lane.b32.xlu0 %v1857, 106
    %v2181 = vpop.permute.xlu0 %2180
    %vm2182 = vcmp.lt.s32.totalorder %v76, 106
    %v2183 = vsel %vm2182, %v2175, %v2179
    %v2184 = vsel %vm2182, %v2177, %v2181
    %v2185 = vsel %vm2182, %v2171, %v2175
    %v2186 = vsel %vm2182, %v2173, %v2177
    %v2187 = vsel %vm2182, %v2167, %v2171
    %v2188 = vsel %vm2182, %v2169, %v2173
    %v2189 = vsel %vm2182, %v2163, %v2167
    %v2190 = vsel %vm2182, %v2165, %v2169
    %v2191 = vsel %vm2182, %v2159, %v2163
    %v2192 = vsel %vm2182, %v2161, %v2165
    %v2193 = vsel %vm2182, %v2179, %v2159
    %v2194 = vsel %vm2182, %v2181, %v2161
    %2195 = vrot.lane.b32.xlu0 %v1866, 92
    %v2196 = vpop.permute.xlu0 %2195
    %2197 = vrot.lane.b32.xlu0 %v1867, 92
    %v2198 = vpop.permute.xlu0 %2197
    %2199 = vrot.lane.b32.xlu0 %v1864, 92
    %v2200 = vpop.permute.xlu0 %2199
    %2201 = vrot.lane.b32.xlu0 %v1865, 92
    %v2202 = vpop.permute.xlu0 %2201
    %2203 = vrot.lane.b32.xlu0 %v1862, 92
    %v2204 = vpop.permute.xlu0 %2203
    %2205 = vrot.lane.b32.xlu0 %v1863, 92
    %v2206 = vpop.permute.xlu0 %2205
    %2207 = vrot.lane.b32.xlu0 %v1860, 92
    %v2208 = vpop.permute.xlu0 %2207
    %2209 = vrot.lane.b32.xlu0 %v1861, 92
    %v2210 = vpop.permute.xlu0 %2209
    %2211 = vrot.lane.b32.xlu0 %v1858, 92
    %v2212 = vpop.permute.xlu0 %2211
    %2213 = vrot.lane.b32.xlu0 %v1859, 92
    %v2214 = vpop.permute.xlu0 %2213
    %2215 = vrot.lane.b32.xlu0 %v1856, 92
    %v2216 = vpop.permute.xlu0 %2215
    %2217 = vrot.lane.b32.xlu0 %v1857, 92
    %v2218 = vpop.permute.xlu0 %2217
    %v2219 = vsel %vm172, %v2212, %v2216
    %v2220 = vsel %vm172, %v2214, %v2218
    %v2221 = vsel %vm172, %v2208, %v2212
    %v2222 = vsel %vm172, %v2210, %v2214
    %v2223 = vsel %vm172, %v2204, %v2208
    %v2224 = vsel %vm172, %v2206, %v2210
    %v2225 = vsel %vm172, %v2200, %v2204
    %v2226 = vsel %vm172, %v2202, %v2206
    %v2227 = vsel %vm172, %v2196, %v2200
    %v2228 = vsel %vm172, %v2198, %v2202
    %v2229 = vsel %vm172, %v2216, %v2196
    %v2230 = vsel %vm172, %v2218, %v2198
    %2231 = vrot.lane.b32.xlu0 %v1866, 91
    %v2232 = vpop.permute.xlu0 %2231
    %2233 = vrot.lane.b32.xlu0 %v1867, 91
    %v2234 = vpop.permute.xlu0 %2233
    %2235 = vrot.lane.b32.xlu0 %v1864, 91
    %v2236 = vpop.permute.xlu0 %2235
    %2237 = vrot.lane.b32.xlu0 %v1865, 91
    %v2238 = vpop.permute.xlu0 %2237
    %2239 = vrot.lane.b32.xlu0 %v1862, 91
    %v2240 = vpop.permute.xlu0 %2239
    %2241 = vrot.lane.b32.xlu0 %v1863, 91
    %v2242 = vpop.permute.xlu0 %2241
    %2243 = vrot.lane.b32.xlu0 %v1860, 91
    %v2244 = vpop.permute.xlu0 %2243
    %2245 = vrot.lane.b32.xlu0 %v1861, 91
    %v2246 = vpop.permute.xlu0 %2245
    %2247 = vrot.lane.b32.xlu0 %v1858, 91
    %v2248 = vpop.permute.xlu0 %2247
    %2249 = vrot.lane.b32.xlu0 %v1859, 91
    %v2250 = vpop.permute.xlu0 %2249
    %2251 = vrot.lane.b32.xlu0 %v1856, 91
    %v2252 = vpop.permute.xlu0 %2251
    %2253 = vrot.lane.b32.xlu0 %v1857, 91
    %v2254 = vpop.permute.xlu0 %2253
    %v2255 = vsel %vm191, %v2248, %v2252
    %v2256 = vsel %vm191, %v2250, %v2254
    %v2257 = vsel %vm191, %v2244, %v2248
    %v2258 = vsel %vm191, %v2246, %v2250
    %v2259 = vsel %vm191, %v2240, %v2244
    %v2260 = vsel %vm191, %v2242, %v2246
    %v2261 = vsel %vm191, %v2236, %v2240
    %v2262 = vsel %vm191, %v2238, %v2242
    %v2263 = vsel %vm191, %v2232, %v2236
    %v2264 = vsel %vm191, %v2234, %v2238
    %v2265 = vsel %vm191, %v2252, %v2232
    %v2266 = vsel %vm191, %v2254, %v2234
    %2267 = vrot.lane.b32.xlu0 %v1866, 90
    %v2268 = vpop.permute.xlu0 %2267
    %2269 = vrot.lane.b32.xlu0 %v1867, 90
    %v2270 = vpop.permute.xlu0 %2269
    %2271 = vrot.lane.b32.xlu0 %v1864, 90
    %v2272 = vpop.permute.xlu0 %2271
    %2273 = vrot.lane.b32.xlu0 %v1865, 90
    %v2274 = vpop.permute.xlu0 %2273
    %2275 = vrot.lane.b32.xlu0 %v1862, 90
    %v2276 = vpop.permute.xlu0 %2275
    %2277 = vrot.lane.b32.xlu0 %v1863, 90
    %v2278 = vpop.permute.xlu0 %2277
    %2279 = vrot.lane.b32.xlu0 %v1860, 90
    %v2280 = vpop.permute.xlu0 %2279
    %2281 = vrot.lane.b32.xlu0 %v1861, 90
    %v2282 = vpop.permute.xlu0 %2281
    %2283 = vrot.lane.b32.xlu0 %v1858, 90
    %v2284 = vpop.permute.xlu0 %2283
    %2285 = vrot.lane.b32.xlu0 %v1859, 90
    %v2286 = vpop.permute.xlu0 %2285
    %2287 = vrot.lane.b32.xlu0 %v1856, 90
    %v2288 = vpop.permute.xlu0 %2287
    %2289 = vrot.lane.b32.xlu0 %v1857, 90
    %v2290 = vpop.permute.xlu0 %2289
    %v2291 = vsel %vm210, %v2284, %v2288
    %v2292 = vsel %vm210, %v2286, %v2290
    %v2293 = vsel %vm210, %v2280, %v2284
    %v2294 = vsel %vm210, %v2282, %v2286
    %v2295 = vsel %vm210, %v2276, %v2280
    %v2296 = vsel %vm210, %v2278, %v2282
    %v2297 = vsel %vm210, %v2272, %v2276
    %v2298 = vsel %vm210, %v2274, %v2278
    %v2299 = vsel %vm210, %v2268, %v2272
    %v2300 = vsel %vm210, %v2270, %v2274
    %v2301 = vsel %vm210, %v2288, %v2268
    %v2302 = vsel %vm210, %v2290, %v2270
    %2303 = vrot.lane.b32.xlu0 %v1866, 89
    %v2304 = vpop.permute.xlu0 %2303
    %2305 = vrot.lane.b32.xlu0 %v1867, 89
    %v2306 = vpop.permute.xlu0 %2305
    %2307 = vrot.lane.b32.xlu0 %v1864, 89
    %v2308 = vpop.permute.xlu0 %2307
    %2309 = vrot.lane.b32.xlu0 %v1865, 89
    %v2310 = vpop.permute.xlu0 %2309
    %2311 = vrot.lane.b32.xlu0 %v1862, 89
    %v2312 = vpop.permute.xlu0 %2311
    %2313 = vrot.lane.b32.xlu0 %v1863, 89
    %v2314 = vpop.permute.xlu0 %2313
    %2315 = vrot.lane.b32.xlu0 %v1860, 89
    %v2316 = vpop.permute.xlu0 %2315
    %2317 = vrot.lane.b32.xlu0 %v1861, 89
    %v2318 = vpop.permute.xlu0 %2317
    %2319 = vrot.lane.b32.xlu0 %v1858, 89
    %v2320 = vpop.permute.xlu0 %2319
    %2321 = vrot.lane.b32.xlu0 %v1859, 89
    %v2322 = vpop.permute.xlu0 %2321
    %2323 = vrot.lane.b32.xlu0 %v1856, 89
    %v2324 = vpop.permute.xlu0 %2323
    %2325 = vrot.lane.b32.xlu0 %v1857, 89
    %v2326 = vpop.permute.xlu0 %2325
    %vm2327 = vcmp.lt.s32.totalorder %v76, 89
    %v2328 = vsel %vm2327, %v2320, %v2324
    %v2329 = vsel %vm2327, %v2322, %v2326
    %v2330 = vsel %vm2327, %v2316, %v2320
    %v2331 = vsel %vm2327, %v2318, %v2322
    %v2332 = vsel %vm2327, %v2312, %v2316
    %v2333 = vsel %vm2327, %v2314, %v2318
    %v2334 = vsel %vm2327, %v2308, %v2312
    %v2335 = vsel %vm2327, %v2310, %v2314
    %v2336 = vsel %vm2327, %v2304, %v2308
    %v2337 = vsel %vm2327, %v2306, %v2310
    %v2338 = vsel %vm2327, %v2324, %v2304
    %v2339 = vsel %vm2327, %v2326, %v2306
    %2340 = vrot.lane.b32.xlu0 %v1866, 88
    %v2341 = vpop.permute.xlu0 %2340
    %2342 = vrot.lane.b32.xlu0 %v1867, 88
    %v2343 = vpop.permute.xlu0 %2342
    %2344 = vrot.lane.b32.xlu0 %v1864, 88
    %v2345 = vpop.permute.xlu0 %2344
    %2346 = vrot.lane.b32.xlu0 %v1865, 88
    %v2347 = vpop.permute.xlu0 %2346
    %2348 = vrot.lane.b32.xlu0 %v1862, 88
    %v2349 = vpop.permute.xlu0 %2348
    %2350 = vrot.lane.b32.xlu0 %v1863, 88
    %v2351 = vpop.permute.xlu0 %2350
    %2352 = vrot.lane.b32.xlu0 %v1860, 88
    %v2353 = vpop.permute.xlu0 %2352
    %2354 = vrot.lane.b32.xlu0 %v1861, 88
    %v2355 = vpop.permute.xlu0 %2354
    %2356 = vrot.lane.b32.xlu0 %v1858, 88
    %v2357 = vpop.permute.xlu0 %2356
    %2358 = vrot.lane.b32.xlu0 %v1859, 88
    %v2359 = vpop.permute.xlu0 %2358
    %2360 = vrot.lane.b32.xlu0 %v1856, 88
    %v2361 = vpop.permute.xlu0 %2360
    %2362 = vrot.lane.b32.xlu0 %v1857, 88
    %v2363 = vpop.permute.xlu0 %2362
    %v2364 = vsel %vm1171, %v2357, %v2361
    %v2365 = vsel %vm1171, %v2359, %v2363
    %v2366 = vsel %vm1171, %v2353, %v2357
    %v2367 = vsel %vm1171, %v2355, %v2359
    %v2368 = vsel %vm1171, %v2349, %v2353
    %v2369 = vsel %vm1171, %v2351, %v2355
    %v2370 = vsel %vm1171, %v2345, %v2349
    %v2371 = vsel %vm1171, %v2347, %v2351
    %v2372 = vsel %vm1171, %v2341, %v2345
    %v2373 = vsel %vm1171, %v2343, %v2347
    %v2374 = vsel %vm1171, %v2361, %v2341
    %v2375 = vsel %vm1171, %v2363, %v2343
    %2376 = vrot.lane.b32.xlu0 %v1866, 74
    %v2377 = vpop.permute.xlu0 %2376
    %2378 = vrot.lane.b32.xlu0 %v1867, 74
    %v2379 = vpop.permute.xlu0 %2378
    %2380 = vrot.lane.b32.xlu0 %v1864, 74
    %v2381 = vpop.permute.xlu0 %2380
    %2382 = vrot.lane.b32.xlu0 %v1865, 74
    %v2383 = vpop.permute.xlu0 %2382
    %2384 = vrot.lane.b32.xlu0 %v1862, 74
    %v2385 = vpop.permute.xlu0 %2384
    %2386 = vrot.lane.b32.xlu0 %v1863, 74
    %v2387 = vpop.permute.xlu0 %2386
    %2388 = vrot.lane.b32.xlu0 %v1860, 74
    %v2389 = vpop.permute.xlu0 %2388
    %2390 = vrot.lane.b32.xlu0 %v1861, 74
    %v2391 = vpop.permute.xlu0 %2390
    %2392 = vrot.lane.b32.xlu0 %v1858, 74
    %v2393 = vpop.permute.xlu0 %2392
    %2394 = vrot.lane.b32.xlu0 %v1859, 74
    %v2395 = vpop.permute.xlu0 %2394
    %2396 = vrot.lane.b32.xlu0 %v1856, 74
    %v2397 = vpop.permute.xlu0 %2396
    %2398 = vrot.lane.b32.xlu0 %v1857, 74
    %v2399 = vpop.permute.xlu0 %2398
    %vm2400 = vcmp.lt.s32.totalorder %v76, 74
    %v2401 = vsel %vm2400, %v2393, %v2397
    %v2402 = vsel %vm2400, %v2395, %v2399
    %v2403 = vsel %vm2400, %v2389, %v2393
    %v2404 = vsel %vm2400, %v2391, %v2395
    %v2405 = vsel %vm2400, %v2385, %v2389
    %v2406 = vsel %vm2400, %v2387, %v2391
    %v2407 = vsel %vm2400, %v2381, %v2385
    %v2408 = vsel %vm2400, %v2383, %v2387
    %v2409 = vsel %vm2400, %v2377, %v2381
    %v2410 = vsel %vm2400, %v2379, %v2383
    %v2411 = vsel %vm2400, %v2397, %v2377
    %v2412 = vsel %vm2400, %v2399, %v2379
    %2413 = vrot.lane.b32.xlu0 %v1866, 73
    %v2414 = vpop.permute.xlu0 %2413
    %2415 = vrot.lane.b32.xlu0 %v1867, 73
    %v2416 = vpop.permute.xlu0 %2415
    %2417 = vrot.lane.b32.xlu0 %v1864, 73
    %v2418 = vpop.permute.xlu0 %2417
    %2419 = vrot.lane.b32.xlu0 %v1865, 73
    %v2420 = vpop.permute.xlu0 %2419
    %2421 = vrot.lane.b32.xlu0 %v1862, 73
    %v2422 = vpop.permute.xlu0 %2421
    %2423 = vrot.lane.b32.xlu0 %v1863, 73
    %v2424 = vpop.permute.xlu0 %2423
    %2425 = vrot.lane.b32.xlu0 %v1860, 73
    %v2426 = vpop.permute.xlu0 %2425
    %2427 = vrot.lane.b32.xlu0 %v1861, 73
    %v2428 = vpop.permute.xlu0 %2427
    %2429 = vrot.lane.b32.xlu0 %v1858, 73
    %v2430 = vpop.permute.xlu0 %2429
    %2431 = vrot.lane.b32.xlu0 %v1859, 73
    %v2432 = vpop.permute.xlu0 %2431
    %2433 = vrot.lane.b32.xlu0 %v1856, 73
    %v2434 = vpop.permute.xlu0 %2433
    %2435 = vrot.lane.b32.xlu0 %v1857, 73
    %v2436 = vpop.permute.xlu0 %2435
    %vm2437 = vcmp.lt.s32.totalorder %v76, 73
    %v2438 = vsel %vm2437, %v2430, %v2434
    %v2439 = vsel %vm2437, %v2432, %v2436
    %v2440 = vsel %vm2437, %v2426, %v2430
    %v2441 = vsel %vm2437, %v2428, %v2432
    %v2442 = vsel %vm2437, %v2422, %v2426
    %v2443 = vsel %vm2437, %v2424, %v2428
    %v2444 = vsel %vm2437, %v2418, %v2422
    %v2445 = vsel %vm2437, %v2420, %v2424
    %v2446 = vsel %vm2437, %v2414, %v2418
    %v2447 = vsel %vm2437, %v2416, %v2420
    %v2448 = vsel %vm2437, %v2434, %v2414
    %v2449 = vsel %vm2437, %v2436, %v2416
    %2450 = vrot.lane.b32.xlu0 %v1866, 72
    %v2451 = vpop.permute.xlu0 %2450
    %2452 = vrot.lane.b32.xlu0 %v1867, 72
    %v2453 = vpop.permute.xlu0 %2452
    %2454 = vrot.lane.b32.xlu0 %v1864, 72
    %v2455 = vpop.permute.xlu0 %2454
    %2456 = vrot.lane.b32.xlu0 %v1865, 72
    %v2457 = vpop.permute.xlu0 %2456
    %2458 = vrot.lane.b32.xlu0 %v1862, 72
    %v2459 = vpop.permute.xlu0 %2458
    %2460 = vrot.lane.b32.xlu0 %v1863, 72
    %v2461 = vpop.permute.xlu0 %2460
    %2462 = vrot.lane.b32.xlu0 %v1860, 72
    %v2463 = vpop.permute.xlu0 %2462
    %2464 = vrot.lane.b32.xlu0 %v1861, 72
    %v2465 = vpop.permute.xlu0 %2464
    %2466 = vrot.lane.b32.xlu0 %v1858, 72
    %v2467 = vpop.permute.xlu0 %2466
    %2468 = vrot.lane.b32.xlu0 %v1859, 72
    %v2469 = vpop.permute.xlu0 %2468
    %2470 = vrot.lane.b32.xlu0 %v1856, 72
    %v2471 = vpop.permute.xlu0 %2470
    %2472 = vrot.lane.b32.xlu0 %v1857, 72
    %v2473 = vpop.permute.xlu0 %2472
    %vm2474 = vcmp.lt.s32.totalorder %v76, 72
    %v2475 = vsel %vm2474, %v2467, %v2471
    %v2476 = vsel %vm2474, %v2469, %v2473
    %v2477 = vsel %vm2474, %v2463, %v2467
    %v2478 = vsel %vm2474, %v2465, %v2469
    %v2479 = vsel %vm2474, %v2459, %v2463
    %v2480 = vsel %vm2474, %v2461, %v2465
    %v2481 = vsel %vm2474, %v2455, %v2459
    %v2482 = vsel %vm2474, %v2457, %v2461
    %v2483 = vsel %vm2474, %v2451, %v2455
    %v2484 = vsel %vm2474, %v2453, %v2457
    %v2485 = vsel %vm2474, %v2471, %v2451
    %v2486 = vsel %vm2474, %v2473, %v2453
    %2487 = vrot.lane.b32.xlu0 %v1866, 71
    %v2488 = vpop.permute.xlu0 %2487
    %2489 = vrot.lane.b32.xlu0 %v1867, 71
    %v2490 = vpop.permute.xlu0 %2489
    %2491 = vrot.lane.b32.xlu0 %v1864, 71
    %v2492 = vpop.permute.xlu0 %2491
    %2493 = vrot.lane.b32.xlu0 %v1865, 71
    %v2494 = vpop.permute.xlu0 %2493
    %2495 = vrot.lane.b32.xlu0 %v1862, 71
    %v2496 = vpop.permute.xlu0 %2495
    %2497 = vrot.lane.b32.xlu0 %v1863, 71
    %v2498 = vpop.permute.xlu0 %2497
    %2499 = vrot.lane.b32.xlu0 %v1860, 71
    %v2500 = vpop.permute.xlu0 %2499
    %2501 = vrot.lane.b32.xlu0 %v1861, 71
    %v2502 = vpop.permute.xlu0 %2501
    %2503 = vrot.lane.b32.xlu0 %v1858, 71
    %v2504 = vpop.permute.xlu0 %2503
    %2505 = vrot.lane.b32.xlu0 %v1859, 71
    %v2506 = vpop.permute.xlu0 %2505
    %2507 = vrot.lane.b32.xlu0 %v1856, 71
    %v2508 = vpop.permute.xlu0 %2507
    %2509 = vrot.lane.b32.xlu0 %v1857, 71
    %v2510 = vpop.permute.xlu0 %2509
    %vm2511 = vcmp.lt.s32.totalorder %v76, 71
    %v2512 = vsel %vm2511, %v2504, %v2508
    %v2513 = vsel %vm2511, %v2506, %v2510
    %v2514 = vsel %vm2511, %v2500, %v2504
    %v2515 = vsel %vm2511, %v2502, %v2506
    %v2516 = vsel %vm2511, %v2496, %v2500
    %v2517 = vsel %vm2511, %v2498, %v2502
    %v2518 = vsel %vm2511, %v2492, %v2496
    %v2519 = vsel %vm2511, %v2494, %v2498
    %v2520 = vsel %vm2511, %v2488, %v2492
    %v2521 = vsel %vm2511, %v2490, %v2494
    %v2522 = vsel %vm2511, %v2508, %v2488
    %v2523 = vsel %vm2511, %v2510, %v2490
    %2524 = vrot.lane.b32.xlu0 %v1866, 70
    %v2525 = vpop.permute.xlu0 %2524
    %2526 = vrot.lane.b32.xlu0 %v1867, 70
    %v2527 = vpop.permute.xlu0 %2526
    %2528 = vrot.lane.b32.xlu0 %v1864, 70
    %v2529 = vpop.permute.xlu0 %2528
    %2530 = vrot.lane.b32.xlu0 %v1865, 70
    %v2531 = vpop.permute.xlu0 %2530
    %2532 = vrot.lane.b32.xlu0 %v1862, 70
    %v2533 = vpop.permute.xlu0 %2532
    %2534 = vrot.lane.b32.xlu0 %v1863, 70
    %v2535 = vpop.permute.xlu0 %2534
    %2536 = vrot.lane.b32.xlu0 %v1860, 70
    %v2537 = vpop.permute.xlu0 %2536
    %2538 = vrot.lane.b32.xlu0 %v1861, 70
    %v2539 = vpop.permute.xlu0 %2538
    %2540 = vrot.lane.b32.xlu0 %v1858, 70
    %v2541 = vpop.permute.xlu0 %2540
    %2542 = vrot.lane.b32.xlu0 %v1859, 70
    %v2543 = vpop.permute.xlu0 %2542
    %2544 = vrot.lane.b32.xlu0 %v1856, 70
    %v2545 = vpop.permute.xlu0 %2544
    %2546 = vrot.lane.b32.xlu0 %v1857, 70
    %v2547 = vpop.permute.xlu0 %2546
    %vm2548 = vcmp.lt.s32.totalorder %v76, 70
    %v2549 = vsel %vm2548, %v2541, %v2545
    %v2550 = vsel %vm2548, %v2543, %v2547
    %v2551 = vsel %vm2548, %v2537, %v2541
    %v2552 = vsel %vm2548, %v2539, %v2543
    %v2553 = vsel %vm2548, %v2533, %v2537
    %v2554 = vsel %vm2548, %v2535, %v2539
    %v2555 = vsel %vm2548, %v2529, %v2533
    %v2556 = vsel %vm2548, %v2531, %v2535
    %v2557 = vsel %vm2548, %v2525, %v2529
    %v2558 = vsel %vm2548, %v2527, %v2531
    %v2559 = vsel %vm2548, %v2545, %v2525
    %v2560 = vsel %vm2548, %v2547, %v2527
    %2561 = vrot.lane.b32.xlu0 %v1866, 56
    %v2562 = vpop.permute.xlu0 %2561
    %2563 = vrot.lane.b32.xlu0 %v1867, 56
    %v2564 = vpop.permute.xlu0 %2563
    %2565 = vrot.lane.b32.xlu0 %v1864, 56
    %v2566 = vpop.permute.xlu0 %2565
    %2567 = vrot.lane.b32.xlu0 %v1865, 56
    %v2568 = vpop.permute.xlu0 %2567
    %2569 = vrot.lane.b32.xlu0 %v1862, 56
    %v2570 = vpop.permute.xlu0 %2569
    %2571 = vrot.lane.b32.xlu0 %v1863, 56
    %v2572 = vpop.permute.xlu0 %2571
    %2573 = vrot.lane.b32.xlu0 %v1860, 56
    %v2574 = vpop.permute.xlu0 %2573
    %2575 = vrot.lane.b32.xlu0 %v1861, 56
    %v2576 = vpop.permute.xlu0 %2575
    %2577 = vrot.lane.b32.xlu0 %v1858, 56
    %v2578 = vpop.permute.xlu0 %2577
    %2579 = vrot.lane.b32.xlu0 %v1859, 56
    %v2580 = vpop.permute.xlu0 %2579
    %2581 = vrot.lane.b32.xlu0 %v1856, 56
    %v2582 = vpop.permute.xlu0 %2581
    %2583 = vrot.lane.b32.xlu0 %v1857, 56
    %v2584 = vpop.permute.xlu0 %2583
    %v2585 = vsel %vm1226, %v2578, %v2582
    %v2586 = vsel %vm1226, %v2580, %v2584
    %v2587 = vsel %vm1226, %v2574, %v2578
    %v2588 = vsel %vm1226, %v2576, %v2580
    %v2589 = vsel %vm1226, %v2570, %v2574
    %v2590 = vsel %vm1226, %v2572, %v2576
    %v2591 = vsel %vm1226, %v2566, %v2570
    %v2592 = vsel %vm1226, %v2568, %v2572
    %v2593 = vsel %vm1226, %v2562, %v2566
    %v2594 = vsel %vm1226, %v2564, %v2568
    %v2595 = vsel %vm1226, %v2582, %v2562
    %v2596 = vsel %vm1226, %v2584, %v2564
    %2597 = vrot.lane.b32.xlu0 %v1866, 55
    %v2598 = vpop.permute.xlu0 %2597
    %2599 = vrot.lane.b32.xlu0 %v1867, 55
    %v2600 = vpop.permute.xlu0 %2599
    %2601 = vrot.lane.b32.xlu0 %v1864, 55
    %v2602 = vpop.permute.xlu0 %2601
    %2603 = vrot.lane.b32.xlu0 %v1865, 55
    %v2604 = vpop.permute.xlu0 %2603
    %2605 = vrot.lane.b32.xlu0 %v1862, 55
    %v2606 = vpop.permute.xlu0 %2605
    %2607 = vrot.lane.b32.xlu0 %v1863, 55
    %v2608 = vpop.permute.xlu0 %2607
    %2609 = vrot.lane.b32.xlu0 %v1860, 55
    %v2610 = vpop.permute.xlu0 %2609
    %2611 = vrot.lane.b32.xlu0 %v1861, 55
    %v2612 = vpop.permute.xlu0 %2611
    %2613 = vrot.lane.b32.xlu0 %v1858, 55
    %v2614 = vpop.permute.xlu0 %2613
    %2615 = vrot.lane.b32.xlu0 %v1859, 55
    %v2616 = vpop.permute.xlu0 %2615
    %2617 = vrot.lane.b32.xlu0 %v1856, 55
    %v2618 = vpop.permute.xlu0 %2617
    %2619 = vrot.lane.b32.xlu0 %v1857, 55
    %v2620 = vpop.permute.xlu0 %2619
    %vm2621 = vcmp.lt.s32.totalorder %v76, 55
    %v2622 = vsel %vm2621, %v2614, %v2618
    %v2623 = vsel %vm2621, %v2616, %v2620
    %v2624 = vsel %vm2621, %v2610, %v2614
    %v2625 = vsel %vm2621, %v2612, %v2616
    %v2626 = vsel %vm2621, %v2606, %v2610
    %v2627 = vsel %vm2621, %v2608, %v2612
    %v2628 = vsel %vm2621, %v2602, %v2606
    %v2629 = vsel %vm2621, %v2604, %v2608
    %v2630 = vsel %vm2621, %v2598, %v2602
    %v2631 = vsel %vm2621, %v2600, %v2604
    %v2632 = vsel %vm2621, %v2618, %v2598
    %v2633 = vsel %vm2621, %v2620, %v2600
    %2634 = vrot.lane.b32.xlu0 %v1866, 54
    %v2635 = vpop.permute.xlu0 %2634
    %2636 = vrot.lane.b32.xlu0 %v1867, 54
    %v2637 = vpop.permute.xlu0 %2636
    %2638 = vrot.lane.b32.xlu0 %v1864, 54
    %v2639 = vpop.permute.xlu0 %2638
    %2640 = vrot.lane.b32.xlu0 %v1865, 54
    %v2641 = vpop.permute.xlu0 %2640
    %2642 = vrot.lane.b32.xlu0 %v1862, 54
    %v2643 = vpop.permute.xlu0 %2642
    %2644 = vrot.lane.b32.xlu0 %v1863, 54
    %v2645 = vpop.permute.xlu0 %2644
    %2646 = vrot.lane.b32.xlu0 %v1860, 54
    %v2647 = vpop.permute.xlu0 %2646
    %2648 = vrot.lane.b32.xlu0 %v1861, 54
    %v2649 = vpop.permute.xlu0 %2648
    %2650 = vrot.lane.b32.xlu0 %v1858, 54
    %v2651 = vpop.permute.xlu0 %2650
    %2652 = vrot.lane.b32.xlu0 %v1859, 54
    %v2653 = vpop.permute.xlu0 %2652
    %2654 = vrot.lane.b32.xlu0 %v1856, 54
    %v2655 = vpop.permute.xlu0 %2654
    %2656 = vrot.lane.b32.xlu0 %v1857, 54
    %v2657 = vpop.permute.xlu0 %2656
    %v2658 = vsel %vm1281, %v2651, %v2655
    %v2659 = vsel %vm1281, %v2653, %v2657
    %v2660 = vsel %vm1281, %v2647, %v2651
    %v2661 = vsel %vm1281, %v2649, %v2653
    %v2662 = vsel %vm1281, %v2643, %v2647
    %v2663 = vsel %vm1281, %v2645, %v2649
    %v2664 = vsel %vm1281, %v2639, %v2643
    %v2665 = vsel %vm1281, %v2641, %v2645
    %v2666 = vsel %vm1281, %v2635, %v2639
    %v2667 = vsel %vm1281, %v2637, %v2641
    %v2668 = vsel %vm1281, %v2655, %v2635
    %v2669 = vsel %vm1281, %v2657, %v2637
    %2670 = vrot.lane.b32.xlu0 %v1866, 53
    %v2671 = vpop.permute.xlu0 %2670
    %2672 = vrot.lane.b32.xlu0 %v1867, 53
    %v2673 = vpop.permute.xlu0 %2672
    %2674 = vrot.lane.b32.xlu0 %v1864, 53
    %v2675 = vpop.permute.xlu0 %2674
    %2676 = vrot.lane.b32.xlu0 %v1865, 53
    %v2677 = vpop.permute.xlu0 %2676
    %2678 = vrot.lane.b32.xlu0 %v1862, 53
    %v2679 = vpop.permute.xlu0 %2678
    %2680 = vrot.lane.b32.xlu0 %v1863, 53
    %v2681 = vpop.permute.xlu0 %2680
    %2682 = vrot.lane.b32.xlu0 %v1860, 53
    %v2683 = vpop.permute.xlu0 %2682
    %2684 = vrot.lane.b32.xlu0 %v1861, 53
    %v2685 = vpop.permute.xlu0 %2684
    %2686 = vrot.lane.b32.xlu0 %v1858, 53
    %v2687 = vpop.permute.xlu0 %2686
    %2688 = vrot.lane.b32.xlu0 %v1859, 53
    %v2689 = vpop.permute.xlu0 %2688
    %2690 = vrot.lane.b32.xlu0 %v1856, 53
    %v2691 = vpop.permute.xlu0 %2690
    %2692 = vrot.lane.b32.xlu0 %v1857, 53
    %v2693 = vpop.permute.xlu0 %2692
    %vm2694 = vcmp.lt.s32.totalorder %v76, 53
    %v2695 = vsel %vm2694, %v2687, %v2691
    %v2696 = vsel %vm2694, %v2689, %v2693
    %v2697 = vsel %vm2694, %v2683, %v2687
    %v2698 = vsel %vm2694, %v2685, %v2689
    %v2699 = vsel %vm2694, %v2679, %v2683
    %v2700 = vsel %vm2694, %v2681, %v2685
    %v2701 = vsel %vm2694, %v2675, %v2679
    %v2702 = vsel %vm2694, %v2677, %v2681
    %v2703 = vsel %vm2694, %v2671, %v2675
    %v2704 = vsel %vm2694, %v2673, %v2677
    %v2705 = vsel %vm2694, %v2691, %v2671
    %v2706 = vsel %vm2694, %v2693, %v2673
    %2707 = vrot.lane.b32.xlu0 %v1866, 52
    %v2708 = vpop.permute.xlu0 %2707
    %2709 = vrot.lane.b32.xlu0 %v1867, 52
    %v2710 = vpop.permute.xlu0 %2709
    %2711 = vrot.lane.b32.xlu0 %v1864, 52
    %v2712 = vpop.permute.xlu0 %2711
    %2713 = vrot.lane.b32.xlu0 %v1865, 52
    %v2714 = vpop.permute.xlu0 %2713
    %2715 = vrot.lane.b32.xlu0 %v1862, 52
    %v2716 = vpop.permute.xlu0 %2715
    %2717 = vrot.lane.b32.xlu0 %v1863, 52
    %v2718 = vpop.permute.xlu0 %2717
    %2719 = vrot.lane.b32.xlu0 %v1860, 52
    %v2720 = vpop.permute.xlu0 %2719
    %2721 = vrot.lane.b32.xlu0 %v1861, 52
    %v2722 = vpop.permute.xlu0 %2721
    %2723 = vrot.lane.b32.xlu0 %v1858, 52
    %v2724 = vpop.permute.xlu0 %2723
    %2725 = vrot.lane.b32.xlu0 %v1859, 52
    %v2726 = vpop.permute.xlu0 %2725
    %2727 = vrot.lane.b32.xlu0 %v1856, 52
    %v2728 = vpop.permute.xlu0 %2727
    %2729 = vrot.lane.b32.xlu0 %v1857, 52
    %v2730 = vpop.permute.xlu0 %2729
    %v2731 = vsel %vm1336, %v2724, %v2728
    %v2732 = vsel %vm1336, %v2726, %v2730
    %v2733 = vsel %vm1336, %v2720, %v2724
    %v2734 = vsel %vm1336, %v2722, %v2726
    %v2735 = vsel %vm1336, %v2716, %v2720
    %v2736 = vsel %vm1336, %v2718, %v2722
    %v2737 = vsel %vm1336, %v2712, %v2716
    %v2738 = vsel %vm1336, %v2714, %v2718
    %v2739 = vsel %vm1336, %v2708, %v2712
    %v2740 = vsel %vm1336, %v2710, %v2714
    %v2741 = vsel %vm1336, %v2728, %v2708
    %v2742 = vsel %vm1336, %v2730, %v2710
    %v2755 = vrot.slane %v1900, 4
    %v2756 = vrot.slane %v1898, 4
    %v2757 = vrot.slane %v1896, 4
    %v2758 = vrot.slane %v1894, 4
    %v2759 = vrot.slane %v1892, 4
    %v2760 = vrot.slane %v1902, 4
    %v2761 = vrot.slane %v1901, 4
    %v2762 = vsel %vm364, %v2755, %v2761
    %v2763 = vrot.slane %v1899, 4
    %v2764 = vsel %vm364, %v2756, %v2763
    %v2765 = vrot.slane %v1897, 4
    %v2766 = vsel %vm364, %v2757, %v2765
    %v2767 = vrot.slane %v1895, 4
    %v2768 = vsel %vm364, %v2758, %v2767
    %v2769 = vrot.slane %v1893, 4
    %v2770 = vsel %vm364, %v2759, %v2769
    %v2771 = vrot.slane %v1903, 4
    %v2772 = vsel %vm364, %v2760, %v2771
    %v2797 = vrot.slane %v1973, 4
    %v2798 = vrot.slane %v1971, 4
    %v2799 = vrot.slane %v1969, 4
    %v2800 = vrot.slane %v1967, 4
    %v2801 = vrot.slane %v1965, 4
    %v2802 = vrot.slane %v1975, 4
    %v2803 = vrot.slane %v1974, 4
    %v2804 = vsel %vm364, %v2797, %v2803
    %v2805 = vrot.slane %v1972, 4
    %v2806 = vsel %vm364, %v2798, %v2805
    %v2807 = vrot.slane %v1970, 4
    %v2808 = vsel %vm364, %v2799, %v2807
    %v2809 = vrot.slane %v1968, 4
    %v2810 = vsel %vm364, %v2800, %v2809
    %v2811 = vrot.slane %v1966, 4
    %v2812 = vsel %vm364, %v2801, %v2811
    %v2813 = vrot.slane %v1976, 4
    %v2814 = vsel %vm364, %v2802, %v2813
    %v2839 = vrot.slane %v2045, 4
    %v2840 = vrot.slane %v2043, 4
    %v2841 = vrot.slane %v2041, 4
    %v2842 = vrot.slane %v2039, 4
    %v2843 = vrot.slane %v2037, 4
    %v2844 = vrot.slane %v2047, 4
    %v2845 = vrot.slane %v2046, 4
    %v2846 = vsel %vm364, %v2839, %v2845
    %v2847 = vrot.slane %v2044, 4
    %v2848 = vsel %vm364, %v2840, %v2847
    %v2849 = vrot.slane %v2042, 4
    %v2850 = vsel %vm364, %v2841, %v2849
    %v2851 = vrot.slane %v2040, 4
    %v2852 = vsel %vm364, %v2842, %v2851
    %v2853 = vrot.slane %v2038, 4
    %v2854 = vsel %vm364, %v2843, %v2853
    %v2855 = vrot.slane %v2048, 4
    %v2856 = vsel %vm364, %v2844, %v2855
    %v2881 = vrot.slane %v2117, 4
    %v2882 = vrot.slane %v2115, 4
    %v2883 = vrot.slane %v2113, 4
    %v2884 = vrot.slane %v2111, 4
    %v2885 = vrot.slane %v2109, 4
    %v2886 = vrot.slane %v2119, 4
    %v2887 = vrot.slane %v2118, 4
    %v2888 = vsel %vm364, %v2881, %v2887
    %v2889 = vrot.slane %v2116, 4
    %v2890 = vsel %vm364, %v2882, %v2889
    %v2891 = vrot.slane %v2114, 4
    %v2892 = vsel %vm364, %v2883, %v2891
    %v2893 = vrot.slane %v2112, 4
    %v2894 = vsel %vm364, %v2884, %v2893
    %v2895 = vrot.slane %v2110, 4
    %v2896 = vsel %vm364, %v2885, %v2895
    %v2897 = vrot.slane %v2120, 4
    %v2898 = vsel %vm364, %v2886, %v2897
    %v2923 = vrot.slane %v2191, 4
    %v2924 = vrot.slane %v2189, 4
    %v2925 = vrot.slane %v2187, 4
    %v2926 = vrot.slane %v2185, 4
    %v2927 = vrot.slane %v2183, 4
    %v2928 = vrot.slane %v2193, 4
    %v2929 = vrot.slane %v2192, 4
    %v2930 = vsel %vm364, %v2923, %v2929
    %v2931 = vrot.slane %v2190, 4
    %v2932 = vsel %vm364, %v2924, %v2931
    %v2933 = vrot.slane %v2188, 4
    %v2934 = vsel %vm364, %v2925, %v2933
    %v2935 = vrot.slane %v2186, 4
    %v2936 = vsel %vm364, %v2926, %v2935
    %v2937 = vrot.slane %v2184, 4
    %v2938 = vsel %vm364, %v2927, %v2937
    %v2939 = vrot.slane %v2194, 4
    %v2940 = vsel %vm364, %v2928, %v2939
    %v2965 = vrot.slane %v2263, 4
    %v2966 = vrot.slane %v2261, 4
    %v2967 = vrot.slane %v2259, 4
    %v2968 = vrot.slane %v2257, 4
    %v2969 = vrot.slane %v2255, 4
    %v2970 = vrot.slane %v2265, 4
    %v2971 = vrot.slane %v2264, 4
    %v2972 = vsel %vm364, %v2965, %v2971
    %v2973 = vrot.slane %v2262, 4
    %v2974 = vsel %vm364, %v2966, %v2973
    %v2975 = vrot.slane %v2260, 4
    %v2976 = vsel %vm364, %v2967, %v2975
    %v2977 = vrot.slane %v2258, 4
    %v2978 = vsel %vm364, %v2968, %v2977
    %v2979 = vrot.slane %v2256, 4
    %v2980 = vsel %vm364, %v2969, %v2979
    %v2981 = vrot.slane %v2266, 4
    %v2982 = vsel %vm364, %v2970, %v2981
    %v3007 = vrot.slane %v2336, 4
    %v3008 = vrot.slane %v2334, 4
    %v3009 = vrot.slane %v2332, 4
    %v3010 = vrot.slane %v2330, 4
    %v3011 = vrot.slane %v2328, 4
    %v3012 = vrot.slane %v2338, 4
    %v3013 = vrot.slane %v2337, 4
    %v3014 = vsel %vm364, %v3007, %v3013
    %v3015 = vrot.slane %v2335, 4
    %v3016 = vsel %vm364, %v3008, %v3015
    %v3017 = vrot.slane %v2333, 4
    %v3018 = vsel %vm364, %v3009, %v3017
    %v3019 = vrot.slane %v2331, 4
    %v3020 = vsel %vm364, %v3010, %v3019
    %v3021 = vrot.slane %v2329, 4
    %v3022 = vsel %vm364, %v3011, %v3021
    %v3023 = vrot.slane %v2339, 4
    %v3024 = vsel %vm364, %v3012, %v3023
    %v3049 = vrot.slane %v2409, 4
    %v3050 = vrot.slane %v2407, 4
    %v3051 = vrot.slane %v2405, 4
    %v3052 = vrot.slane %v2403, 4
    %v3053 = vrot.slane %v2401, 4
    %v3054 = vrot.slane %v2411, 4
    %v3055 = vrot.slane %v2410, 4
    %v3056 = vsel %vm364, %v3049, %v3055
    %v3057 = vrot.slane %v2408, 4
    %v3058 = vsel %vm364, %v3050, %v3057
    %v3059 = vrot.slane %v2406, 4
    %v3060 = vsel %vm364, %v3051, %v3059
    %v3061 = vrot.slane %v2404, 4
    %v3062 = vsel %vm364, %v3052, %v3061
    %v3063 = vrot.slane %v2402, 4
    %v3064 = vsel %vm364, %v3053, %v3063
    %v3065 = vrot.slane %v2412, 4
    %v3066 = vsel %vm364, %v3054, %v3065
    %v3079 = vsel %vm364, %v1867, %v2755
    %v3080 = vsel %vm364, %v1865, %v2756
    %v3081 = vsel %vm364, %v1863, %v2757
    %v3082 = vsel %vm364, %v1861, %v2758
    %v3083 = vsel %vm364, %v1859, %v2759
    %v3084 = vsel %vm364, %v1857, %v2760
    %v3085 = vsel %vm364, %v1937, %v2797
    %v3086 = vsel %vm364, %v1935, %v2798
    %v3087 = vsel %vm364, %v1933, %v2799
    %v3088 = vsel %vm364, %v1931, %v2800
    %v3089 = vsel %vm364, %v1929, %v2801
    %v3090 = vsel %vm364, %v1939, %v2802
    %v3091 = vsel %vm364, %v2010, %v2839
    %v3092 = vsel %vm364, %v2008, %v2840
    %v3093 = vsel %vm364, %v2006, %v2841
    %v3094 = vsel %vm364, %v2004, %v2842
    %v3095 = vsel %vm364, %v2002, %v2843
    %v3096 = vsel %vm364, %v2012, %v2844
    %v3097 = vsel %vm364, %v2082, %v2881
    %v3098 = vsel %vm364, %v2080, %v2882
    %v3099 = vsel %vm364, %v2078, %v2883
    %v3100 = vsel %vm364, %v2076, %v2884
    %v3101 = vsel %vm364, %v2074, %v2885
    %v3102 = vsel %vm364, %v2084, %v2886
    %v3103 = vsel %vm364, %v2155, %v2923
    %v3104 = vsel %vm364, %v2153, %v2924
    %v3105 = vsel %vm364, %v2151, %v2925
    %v3106 = vsel %vm364, %v2149, %v2926
    %v3107 = vsel %vm364, %v2147, %v2927
    %v3108 = vsel %vm364, %v2157, %v2928
    %v3109 = vsel %vm364, %v2228, %v2965
    %v3110 = vsel %vm364, %v2226, %v2966
    %v3111 = vsel %vm364, %v2224, %v2967
    %v3112 = vsel %vm364, %v2222, %v2968
    %v3113 = vsel %vm364, %v2220, %v2969
    %v3114 = vsel %vm364, %v2230, %v2970
    %v3115 = vsel %vm364, %v2300, %v3007
    %v3116 = vsel %vm364, %v2298, %v3008
    %v3117 = vsel %vm364, %v2296, %v3009
    %v3118 = vsel %vm364, %v2294, %v3010
    %v3119 = vsel %vm364, %v2292, %v3011
    %v3120 = vsel %vm364, %v2302, %v3012
    %v3121 = vsel %vm364, %v2373, %v3049
    %v3122 = vsel %vm364, %v2371, %v3050
    %v3123 = vsel %vm364, %v2369, %v3051
    %v3124 = vsel %vm364, %v2367, %v3052
    %v3125 = vsel %vm364, %v2365, %v3053
    %v3126 = vsel %vm364, %v2375, %v3054
    %v3139 = vrot.slane %v2483, 4
    %v3140 = vrot.slane %v2481, 4
    %v3141 = vrot.slane %v2479, 4
    %v3142 = vrot.slane %v2477, 4
    %v3143 = vrot.slane %v2475, 4
    %v3144 = vrot.slane %v2485, 4
    %v3145 = vrot.slane %v2484, 4
    %v3146 = vsel %vm364, %v3139, %v3145
    %v3147 = vrot.slane %v2482, 4
    %v3148 = vsel %vm364, %v3140, %v3147
    %v3149 = vrot.slane %v2480, 4
    %v3150 = vsel %vm364, %v3141, %v3149
    %v3151 = vrot.slane %v2478, 4
    %v3152 = vsel %vm364, %v3142, %v3151
    %v3153 = vrot.slane %v2476, 4
    %v3154 = vsel %vm364, %v3143, %v3153
    %v3155 = vrot.slane %v2486, 4
    %v3156 = vsel %vm364, %v3144, %v3155
    %v3181 = vrot.slane %v2557, 4
    %v3182 = vrot.slane %v2555, 4
    %v3183 = vrot.slane %v2553, 4
    %v3184 = vrot.slane %v2551, 4
    %v3185 = vrot.slane %v2549, 4
    %v3186 = vrot.slane %v2559, 4
    %v3187 = vrot.slane %v2558, 4
    %v3188 = vsel %vm364, %v3181, %v3187
    %v3189 = vrot.slane %v2556, 4
    %v3190 = vsel %vm364, %v3182, %v3189
    %v3191 = vrot.slane %v2554, 4
    %v3192 = vsel %vm364, %v3183, %v3191
    %v3193 = vrot.slane %v2552, 4
    %v3194 = vsel %vm364, %v3184, %v3193
    %v3195 = vrot.slane %v2550, 4
    %v3196 = vsel %vm364, %v3185, %v3195
    %v3197 = vrot.slane %v2560, 4
    %v3198 = vsel %vm364, %v3186, %v3197
    %v3223 = vrot.slane %v2630, 4
    %v3224 = vrot.slane %v2628, 4
    %v3225 = vrot.slane %v2626, 4
    %v3226 = vrot.slane %v2624, 4
    %v3227 = vrot.slane %v2622, 4
    %v3228 = vrot.slane %v2632, 4
    %v3229 = vrot.slane %v2631, 4
    %v3230 = vsel %vm364, %v3223, %v3229
    %v3231 = vrot.slane %v2629, 4
    %v3232 = vsel %vm364, %v3224, %v3231
    %v3233 = vrot.slane %v2627, 4
    %v3234 = vsel %vm364, %v3225, %v3233
    %v3235 = vrot.slane %v2625, 4
    %v3236 = vsel %vm364, %v3226, %v3235
    %v3237 = vrot.slane %v2623, 4
    %v3238 = vsel %vm364, %v3227, %v3237
    %v3239 = vrot.slane %v2633, 4
    %v3240 = vsel %vm364, %v3228, %v3239
    %v3265 = vrot.slane %v2703, 4
    %v3266 = vrot.slane %v2701, 4
    %v3267 = vrot.slane %v2699, 4
    %v3268 = vrot.slane %v2697, 4
    %v3269 = vrot.slane %v2695, 4
    %v3270 = vrot.slane %v2705, 4
    %v3271 = vrot.slane %v2704, 4
    %v3272 = vsel %vm364, %v3265, %v3271
    %v3273 = vrot.slane %v2702, 4
    %v3274 = vsel %vm364, %v3266, %v3273
    %v3275 = vrot.slane %v2700, 4
    %v3276 = vsel %vm364, %v3267, %v3275
    %v3277 = vrot.slane %v2698, 4
    %v3278 = vsel %vm364, %v3268, %v3277
    %v3279 = vrot.slane %v2696, 4
    %v3280 = vsel %vm364, %v3269, %v3279
    %v3281 = vrot.slane %v2706, 4
    %v3282 = vsel %vm364, %v3270, %v3281
    %v3295 = vsel %vm364, %v2447, %v3139
    %v3296 = vsel %vm364, %v2445, %v3140
    %v3297 = vsel %vm364, %v2443, %v3141
    %v3298 = vsel %vm364, %v2441, %v3142
    %v3299 = vsel %vm364, %v2439, %v3143
    %v3300 = vsel %vm364, %v2449, %v3144
    %v3301 = vsel %vm364, %v2521, %v3181
    %v3302 = vsel %vm364, %v2519, %v3182
    %v3303 = vsel %vm364, %v2517, %v3183
    %v3304 = vsel %vm364, %v2515, %v3184
    %v3305 = vsel %vm364, %v2513, %v3185
    %v3306 = vsel %vm364, %v2523, %v3186
    %v3307 = vsel %vm364, %v2594, %v3223
    %v3308 = vsel %vm364, %v2592, %v3224
    %v3309 = vsel %vm364, %v2590, %v3225
    %v3310 = vsel %vm364, %v2588, %v3226
    %v3311 = vsel %vm364, %v2586, %v3227
    %v3312 = vsel %vm364, %v2596, %v3228
    %v3313 = vsel %vm364, %v2667, %v3265
    %v3314 = vsel %vm364, %v2665, %v3266
    %v3315 = vsel %vm364, %v2663, %v3267
    %v3316 = vsel %vm364, %v2661, %v3268
    %v3317 = vsel %vm364, %v2659, %v3269
    %v3318 = vsel %vm364, %v2669, %v3270
    %s3319 = scalar_lea.vmem [#allocation2], 192
    %v3320 = vld [vmem:[%s3319] sm:$0xff]
    %v3321 = vld [vmem:[%s3319 + $0x8] sm:$0xff]
    %v3322 = vld [vmem:[%s3319 + $0x10] sm:$0xff]
    %v3323 = vld [vmem:[%s3319 + $0x18] sm:$0xff]
    %v3324 = vld [vmem:[%s3319 + $0x20] sm:$0xff]
    %v3325 = vld [vmem:[%s3319 + $0x28] sm:$0xff]
    %3327 = vset.pattern.permute.xlu0 44
    %3328 = vperm.xlu0 %3327, %v3322
    %v3329 = vpop.permute.xlu0 %3328
    %3332 = vset.pattern.permute.xlu0 44
    %3333 = vperm.xlu0 %3332, %v3325
    %v3334 = vpop.permute.xlu0 %3333
    %vm3336 = vcmask 359424
    %v3337 = vsel %vm3336, %v3322, 0
    %v3339 = vsel %vm3336, %v3325, 0
    %v3342 = vsel %vm364, %v2740, 0
    %v3345 = vsel %vm364, %v2738, 0
    %v3348 = vsel %vm364, %v2736, 0
    %v3351 = vsel %vm364, %v2734, 0
    %v3354 = vsel %vm364, %v2732, 0
    %v3357 = vsel %vm364, %v2742, 0
    %3359 = vmatprep.subr.mxu0 %v1864
    %3360 = vmatpush1.msra.mxu0 %v1866
    %3361 = vmatprep.subr.mxu0 %v3080
    %3362 = vmatpush1.msra.mxu0 %v3079
    %3363 = vmatprep.subr.mxu0 %v2764
    %3364 = vmatpush1.msra.mxu0 %v2762
    %3365 = vmatprep.subr.mxu0 %v1934
    %3366 = vmatpush1.msra.mxu0 %v1936
    %3367 = vmatprep.subr.mxu0 %v3086
    %3368 = vmatpush1.msra.mxu0 %v3085
    %3369 = vmatprep.subr.mxu0 %v2806
    %3370 = vmatpush1.msra.mxu0 %v2804
    %3371 = vmatprep.subr.mxu0 %v2007
    %3372 = vmatpush1.msra.mxu0 %v2009
    %3373 = vmatprep.subr.mxu0 %v3092
    %3374 = vmatpush1.msra.mxu0 %v3091
    %3375 = vmatprep.subr.mxu0 %v2848
    %3376 = vmatpush1.msra.mxu0 %v2846
    %3377 = vmatprep.subr.mxu0 %v2079
    %3378 = vmatpush1.msra.mxu0 %v2081
    %3379 = vmatprep.subr.mxu0 %v3098
    %3380 = vmatpush1.msra.mxu0 %v3097
    %3381 = vmatprep.subr.mxu0 %v2890
    %3382 = vmatpush1.msra.mxu0 %v2888
    %3383 = vmatprep.subr.mxu0 %v2152
    %3384 = vmatpush1.msra.mxu0 %v2154
    %3385 = vmatprep.subr.mxu0 %v3104
    %3386 = vmatpush1.msra.mxu0 %v3103
    %3387 = vmatprep.subr.mxu0 %v2932
    %3388 = vmatpush1.msra.mxu0 %v2930
    %3389 = vmatprep.subr.mxu0 %v2225
    %3390 = vmatpush1.msra.mxu0 %v2227
    %3391 = vmatprep.subr.mxu0 %v3110
    %3392 = vmatpush1.msra.mxu0 %v3109
    %3393 = vmatprep.subr.mxu0 %v2974
    %3394 = vmatpush1.msra.mxu0 %v2972
    %3395 = vmatprep.subr.mxu0 %v2297
    %3396 = vmatpush1.msra.mxu0 %v2299
    %3397 = vmatprep.subr.mxu0 %v3116
    %3398 = vmatpush1.msra.mxu0 %v3115
    %3399 = vmatprep.subr.mxu0 %v3016
    %3400 = vmatpush1.msra.mxu0 %v3014
    %3401 = vmatprep.subr.mxu0 %v2370
    %3402 = vmatpush1.msra.mxu0 %v2372
    %3403 = vmatprep.subr.mxu0 %v3122
    %3404 = vmatpush1.msra.mxu0 %v3121
    %3405 = vmatprep.subr.mxu0 %v3058
    %3406 = vmatpush1.msra.mxu0 %v3056
    %3407 = vmatprep.subr.mxu0 %v2444
    %3408 = vmatpush1.msra.mxu0 %v2446
    %3409 = vmatprep.subr.mxu0 %v3296
    %3410 = vmatpush1.msra.mxu0 %v3295
    %3411 = vmatprep.subr.mxu0 %v3148
    %3412 = vmatpush1.msra.mxu0 %v3146
    %3413 = vmatprep.subr.mxu0 %v2518
    %3414 = vmatpush1.msra.mxu0 %v2520
    %3415 = vmatprep.subr.mxu0 %v3302
    %3416 = vmatpush1.msra.mxu0 %v3301
    %3417 = vmatprep.subr.mxu0 %v3190
    %3418 = vmatpush1.msra.mxu0 %v3188
    %3419 = vmatprep.subr.mxu0 %v2591
    %3420 = vmatpush1.msra.mxu0 %v2593
    %3421 = vmatprep.subr.mxu0 %v3308
    %3422 = vmatpush1.msra.mxu0 %v3307
    %3423 = vmatprep.mubr.f32.mxu0 %v3321
    %3424 = vmatmul.mubr.f32.gmra.mrb[0].mxu0 %v3320
    %v3425 = vpop.f32.mrb[0].mxu0
    %v3426 = vadd.f32 %v3329, %v3425
    %v3427 = vpop.f32.mrb[0].mxu0
    %v3428 = vadd.f32 %v3329, %v3427
    %3429 = vmatprep.mubr.f32.mxu0 %v3324
    %3430 = vmatmul.mubr.f32.gmra.mrb[0].mxu0 %v3323
    %v3431 = vpop.f32.mrb[0].mxu0
    %v3432 = vadd.f32 %v3334, %v3431
    %v3433 = vpop.f32.mrb[0].mxu0
    %v3434 = vadd.f32 %v3334, %v3433
    %3435 = vdwg.mxu0
    %3436 = vmatprep.subr.mxu0 %v3232
    %3437 = vmatpush1.msra.mxu0 %v3230
    %3438 = vmatprep.subr.mxu0 %v2664
    %3439 = vmatpush1.msra.mxu0 %v2666
    %3440 = vmatprep.subr.mxu0 %v3314
    %3441 = vmatpush1.msra.mxu0 %v3313
    %3442 = vmatprep.subr.mxu0 %v3274
    %3443 = vmatpush1.msra.mxu0 %v3272
    %3444 = vmatprep.subr.mxu0 %v2737
    %3445 = vmatpush1.msra.mxu0 %v2739
    %3446 = vmatprep.subr.mxu0 %v3345
    %3447 = vmatpush1.msra.mxu0 %v3342
    %3448 = vmatprep.subr.mxu0 0.0
    %3449 = vmatpush1.msra.mxu0 0.0
    %3450 = vmatprep.subr.mxu0 0.0
    %3451 = vmatpush1.msra.mxu0 0.0
    %3452 = vmatprep.subr.mxu0 0.0
    %3453 = vmatpush1.msra.mxu0 0.0
    %3454 = vmatprep.subr.mxu0 0.0
    %3455 = vmatpush1.msra.mxu0 0.0
    %3456 = vmatprep.subr.mxu0 0.0
    %3457 = vmatpush1.msra.mxu0 0.0
    %3458 = vmatprep.subr.mxu0 0.0
    %3459 = vmatpush1.msra.mxu0 0.0
    %3460 = vmatprep.subr.mxu0 0.0
    %3461 = vmatpush1.msra.mxu0 0.0
    %3462 = vmatprep.subr.mxu0 0.0
    %3463 = vmatpush1.msra.mxu0 0.0
    %3464 = vmatprep.subr.mxu0 0.0
    %3465 = vmatpush1.msra.mxu0 0.0
    %3466 = vmatprep.subr.mxu0 0.0
    %3467 = vmatpush1.msra.mxu0 0.0
    %3468 = vmatprep.subr.mxu0 0.0
    %3469 = vmatpush1.msra.mxu0 0.0
    %3470 = vmatprep.subr.mxu0 0.0
    %3471 = vmatpush1.msra.mxu0 0.0
    %3472 = vmatprep.subr.mxu0 0.0
    %3473 = vmatpush1.msra.mxu0 0.0
    %3474 = vmatprep.subr.mxu0 0.0
    %3475 = vmatpush1.msra.mxu0 0.0
    %3476 = vmatprep.subr.mxu0 0.0
    %3477 = vmatpush1.msra.mxu0 0.0
    %3478 = vmatprep.subr.mxu0 0.0
    %3479 = vmatpush1.msra.mxu0 0.0
    %3480 = vmatprep.subr.mxu0 0.0
    %3481 = vmatpush1.msra.mxu0 0.0
    %3482 = vmatprep.subr.mxu0 0.0
    %3483 = vmatpush1.msra.mxu0 0.0
    %3484 = vmatprep.subr.mxu0 0.0
    %3485 = vmatpush1.msra.mxu0 0.0
    %3486 = vmatprep.subr.mxu0 0.0
    %3487 = vmatpush1.msra.mxu0 0.0
    %3488 = vmatprep.subr.mxu0 0.0
    %3489 = vmatpush1.msra.mxu0 0.0
    %3490 = vmatprep.subr.mxu0 0.0
    %3491 = vmatpush1.msra.mxu0 0.0
    %3492 = vmatprep.subr.mxu0 0.0
    %3493 = vmatpush1.msra.mxu0 0.0
    %3494 = vmatprep.subr.mxu0 0.0
    %3495 = vmatpush1.msra.mxu0 0.0
    %3496 = vmatprep.subr.mxu0 0.0
    %3497 = vmatpush1.msra.mxu0 0.0
    %3498 = vmatprep.subr.mxu0 0.0
    %3499 = vmatpush1.msra.mxu0 0.0
    %3500 = vmatprep.mubr.f32.mxu0 0.0
    %3501 = vmatmul.mubr.f32.gmra.mrb[0].mxu0 %v3337
    %v3502 = vpop.f32.mrb[0].mxu0
    %v3503 = vadd.f32 %v3426, %v3502
    %v3504 = vpop.f32.mrb[0].mxu0
    %v3505 = vadd.f32 %v3428, %v3504
    %3506 = vmatprep.mubr.f32.mxu0 0.0
    %3507 = vmatmul.mubr.f32.gmra.mrb[0].mxu0 %v3339
    %v3508 = vpop.f32.mrb[0].mxu0
    %v3509 = vadd.f32 %v3432, %v3508
    %v3510 = vpop.f32.mrb[0].mxu0
    %v3511 = vadd.f32 %v3434, %v3510
    %3512 = vdwg.mxu0
    %3513 = vmatprep.subr.mxu0 %v1860
    %3514 = vmatpush1.msra.mxu0 %v1862
    %3515 = vmatprep.subr.mxu0 %v3082
    %3516 = vmatpush1.msra.mxu0 %v3081
    %3517 = vmatprep.subr.mxu0 %v2768
    %3518 = vmatpush1.msra.mxu0 %v2766
    %3519 = vmatprep.subr.mxu0 %v1930
    %3520 = vmatpush1.msra.mxu0 %v1932
    %3521 = vmatprep.subr.mxu0 %v3088
    %3522 = vmatpush1.msra.mxu0 %v3087
    %3523 = vmatprep.subr.mxu0 %v2810
    %3524 = vmatpush1.msra.mxu0 %v2808
    %3525 = vmatprep.subr.mxu0 %v2003
    %3526 = vmatpush1.msra.mxu0 %v2005
    %3527 = vmatprep.subr.mxu0 %v3094
    %3528 = vmatpush1.msra.mxu0 %v3093
    %3529 = vmatprep.subr.mxu0 %v2852
    %3530 = vmatpush1.msra.mxu0 %v2850
    %3531 = vmatprep.subr.mxu0 %v2075
    %3532 = vmatpush1.msra.mxu0 %v2077
    %3533 = vmatprep.subr.mxu0 %v3100
    %3534 = vmatpush1.msra.mxu0 %v3099
    %3535 = vmatprep.subr.mxu0 %v2894
    %3536 = vmatpush1.msra.mxu0 %v2892
    %3537 = vmatprep.subr.mxu0 %v2148
    %3538 = vmatpush1.msra.mxu0 %v2150
    %3539 = vmatprep.subr.mxu0 %v3106
    %3540 = vmatpush1.msra.mxu0 %v3105
    %3541 = vmatprep.subr.mxu0 %v2936
    %3542 = vmatpush1.msra.mxu0 %v2934
    %3543 = vmatprep.subr.mxu0 %v2221
    %3544 = vmatpush1.msra.mxu0 %v2223
    %3545 = vmatprep.subr.mxu0 %v3112
    %3546 = vmatpush1.msra.mxu0 %v3111
    %3547 = vmatprep.subr.mxu0 %v2978
    %3548 = vmatpush1.msra.mxu0 %v2976
    %3549 = vmatprep.subr.mxu0 %v2293
    %3550 = vmatpush1.msra.mxu0 %v2295
    %3551 = vmatprep.subr.mxu0 %v3118
    %3552 = vmatpush1.msra.mxu0 %v3117
    %3553 = vmatprep.subr.mxu0 %v3020
    %3554 = vmatpush1.msra.mxu0 %v3018
    %3555 = vmatprep.subr.mxu0 %v2366
    %3556 = vmatpush1.msra.mxu0 %v2368
    %3557 = vmatprep.subr.mxu0 %v3124
    %3558 = vmatpush1.msra.mxu0 %v3123
    %3559 = vmatprep.subr.mxu0 %v3062
    %3560 = vmatpush1.msra.mxu0 %v3060
    %3561 = vmatprep.subr.mxu0 %v2440
    %3562 = vmatpush1.msra.mxu0 %v2442
    %3563 = vmatprep.subr.mxu0 %v3298
    %3564 = vmatpush1.msra.mxu0 %v3297
    %3565 = vmatprep.subr.mxu0 %v3152
    %3566 = vmatpush1.msra.mxu0 %v3150
    %3567 = vmatprep.subr.mxu0 %v2514
    %3568 = vmatpush1.msra.mxu0 %v2516
    %3569 = vmatprep.subr.mxu0 %v3304
    %3570 = vmatpush1.msra.mxu0 %v3303
    %3571 = vmatprep.subr.mxu0 %v3194
    %3572 = vmatpush1.msra.mxu0 %v3192
    %3573 = vmatprep.subr.mxu0 %v2587
    %3574 = vmatpush1.msra.mxu0 %v2589
    %3575 = vmatprep.subr.mxu0 %v3310
    %3576 = vmatpush1.msra.mxu0 %v3309
    %3577 = vmatprep.mubr.f32.mxu0 %v3321
    %3578 = vmatmul.mubr.f32.gmra.mrb[0].mxu0 %v3320
    %v3579 = vpop.f32.mrb[0].mxu0
    %v3580 = vadd.f32 %v3329, %v3579
    %v3581 = vpop.f32.mrb[0].mxu0
    %v3582 = vadd.f32 %v3329, %v3581
    %3583 = vmatprep.mubr.f32.mxu0 %v3324
    %3584 = vmatmul.mubr.f32.gmra.mrb[0].mxu0 %v3323
    %v3585 = vpop.f32.mrb[0].mxu0
    %v3586 = vadd.f32 %v3334, %v3585
    %v3587 = vpop.f32.mrb[0].mxu0
    %v3588 = vadd.f32 %v3334, %v3587
    %3589 = vdwg.mxu0
    %3590 = vmatprep.subr.mxu0 %v3236
    %3591 = vmatpush1.msra.mxu0 %v3234
    %3592 = vmatprep.subr.mxu0 %v2660
    %3593 = vmatpush1.msra.mxu0 %v2662
    %3594 = vmatprep.subr.mxu0 %v3316
    %3595 = vmatpush1.msra.mxu0 %v3315
    %3596 = vmatprep.subr.mxu0 %v3278
    %3597 = vmatpush1.msra.mxu0 %v3276
    %3598 = vmatprep.subr.mxu0 %v2733
    %3599 = vmatpush1.msra.mxu0 %v2735
    %3600 = vmatprep.subr.mxu0 %v3351
    %3601 = vmatpush1.msra.mxu0 %v3348
    %3602 = vmatprep.subr.mxu0 0.0
    %3603 = vmatpush1.msra.mxu0 0.0
    %3604 = vmatprep.subr.mxu0 0.0
    %3605 = vmatpush1.msra.mxu0 0.0
    %3606 = vmatprep.subr.mxu0 0.0
    %3607 = vmatpush1.msra.mxu0 0.0
    %3608 = vmatprep.subr.mxu0 0.0
    %3609 = vmatpush1.msra.mxu0 0.0
    %3610 = vmatprep.subr.mxu0 0.0
    %3611 = vmatpush1.msra.mxu0 0.0
    %3612 = vmatprep.subr.mxu0 0.0
    %3613 = vmatpush1.msra.mxu0 0.0
    %3614 = vmatprep.subr.mxu0 0.0
    %3615 = vmatpush1.msra.mxu0 0.0
    %3616 = vmatprep.subr.mxu0 0.0
    %3617 = vmatpush1.msra.mxu0 0.0
    %3618 = vmatprep.subr.mxu0 0.0
    %3619 = vmatpush1.msra.mxu0 0.0
    %3620 = vmatprep.subr.mxu0 0.0
    %3621 = vmatpush1.msra.mxu0 0.0
    %3622 = vmatprep.subr.mxu0 0.0
    %3623 = vmatpush1.msra.mxu0 0.0
    %3624 = vmatprep.subr.mxu0 0.0
    %3625 = vmatpush1.msra.mxu0 0.0
    %3626 = vmatprep.subr.mxu0 0.0
    %3627 = vmatpush1.msra.mxu0 0.0
    %3628 = vmatprep.subr.mxu0 0.0
    %3629 = vmatpush1.msra.mxu0 0.0
    %3630 = vmatprep.subr.mxu0 0.0
    %3631 = vmatpush1.msra.mxu0 0.0
    %3632 = vmatprep.subr.mxu0 0.0
    %3633 = vmatpush1.msra.mxu0 0.0
    %3634 = vmatprep.subr.mxu0 0.0
    %3635 = vmatpush1.msra.mxu0 0.0
    %3636 = vmatprep.subr.mxu0 0.0
    %3637 = vmatpush1.msra.mxu0 0.0
    %3638 = vmatprep.subr.mxu0 0.0
    %3639 = vmatpush1.msra.mxu0 0.0
    %3640 = vmatprep.subr.mxu0 0.0
    %3641 = vmatpush1.msra.mxu0 0.0
    %3642 = vmatprep.subr.mxu0 0.0
    %3643 = vmatpush1.msra.mxu0 0.0
    %3644 = vmatprep.subr.mxu0 0.0
    %3645 = vmatpush1.msra.mxu0 0.0
    %3646 = vmatprep.subr.mxu0 0.0
    %3647 = vmatpush1.msra.mxu0 0.0
    %3648 = vmatprep.subr.mxu0 0.0
    %3649 = vmatpush1.msra.mxu0 0.0
    %3650 = vmatprep.subr.mxu0 0.0
    %3651 = vmatpush1.msra.mxu0 0.0
    %3652 = vmatprep.subr.mxu0 0.0
    %3653 = vmatpush1.msra.mxu0 0.0
    %3654 = vmatprep.mubr.f32.mxu0 0.0
    %3655 = vmatmul.mubr.f32.gmra.mrb[0].mxu0 %v3337
    %v3656 = vpop.f32.mrb[0].mxu0
    %v3657 = vadd.f32 %v3580, %v3656
    %v3658 = vpop.f32.mrb[0].mxu0
    %v3659 = vadd.f32 %v3582, %v3658
    %3660 = vmatprep.mubr.f32.mxu0 0.0
    %3661 = vmatmul.mubr.f32.gmra.mrb[0].mxu0 %v3339
    %v3662 = vpop.f32.mrb[0].mxu0
    %v3663 = vadd.f32 %v3586, %v3662
    %v3664 = vpop.f32.mrb[0].mxu0
    %v3665 = vadd.f32 %v3588, %v3664
    %3666 = vdwg.mxu0
    %3667 = vmatprep.subr.mxu0 %v1856
    %3668 = vmatpush1.msra.mxu0 %v1858
    %3669 = vmatprep.subr.mxu0 %v3084
    %3670 = vmatpush1.msra.mxu0 %v3083
    %3671 = vmatprep.subr.mxu0 %v2772
    %3672 = vmatpush1.msra.mxu0 %v2770
    %3673 = vmatprep.subr.mxu0 %v1938
    %3674 = vmatpush1.msra.mxu0 %v1928
    %3675 = vmatprep.subr.mxu0 %v3090
    %3676 = vmatpush1.msra.mxu0 %v3089
    %3677 = vmatprep.subr.mxu0 %v2814
    %3678 = vmatpush1.msra.mxu0 %v2812
    %3679 = vmatprep.subr.mxu0 %v2011
    %3680 = vmatpush1.msra.mxu0 %v2001
    %3681 = vmatprep.subr.mxu0 %v3096
    %3682 = vmatpush1.msra.mxu0 %v3095
    %3683 = vmatprep.subr.mxu0 %v2856
    %3684 = vmatpush1.msra.mxu0 %v2854
    %3685 = vmatprep.subr.mxu0 %v2083
    %3686 = vmatpush1.msra.mxu0 %v2073
    %3687 = vmatprep.subr.mxu0 %v3102
    %3688 = vmatpush1.msra.mxu0 %v3101
    %3689 = vmatprep.subr.mxu0 %v2898
    %3690 = vmatpush1.msra.mxu0 %v2896
    %3691 = vmatprep.subr.mxu0 %v2156
    %3692 = vmatpush1.msra.mxu0 %v2146
    %3693 = vmatprep.subr.mxu0 %v3108
    %3694 = vmatpush1.msra.mxu0 %v3107
    %3695 = vmatprep.subr.mxu0 %v2940
    %3696 = vmatpush1.msra.mxu0 %v2938
    %3697 = vmatprep.subr.mxu0 %v2229
    %3698 = vmatpush1.msra.mxu0 %v2219
    %3699 = vmatprep.subr.mxu0 %v3114
    %3700 = vmatpush1.msra.mxu0 %v3113
    %3701 = vmatprep.subr.mxu0 %v2982
    %3702 = vmatpush1.msra.mxu0 %v2980
    %3703 = vmatprep.subr.mxu0 %v2301
    %3704 = vmatpush1.msra.mxu0 %v2291
    %3705 = vmatprep.subr.mxu0 %v3120
    %3706 = vmatpush1.msra.mxu0 %v3119
    %3707 = vmatprep.subr.mxu0 %v3024
    %3708 = vmatpush1.msra.mxu0 %v3022
    %3709 = vmatprep.subr.mxu0 %v2374
    %3710 = vmatpush1.msra.mxu0 %v2364
    %3711 = vmatprep.subr.mxu0 %v3126
    %3712 = vmatpush1.msra.mxu0 %v3125
    %3713 = vmatprep.subr.mxu0 %v3066
    %3714 = vmatpush1.msra.mxu0 %v3064
    %3715 = vmatprep.subr.mxu0 %v2448
    %3716 = vmatpush1.msra.mxu0 %v2438
    %3717 = vmatprep.subr.mxu0 %v3300
    %3718 = vmatpush1.msra.mxu0 %v3299
    %3719 = vmatprep.subr.mxu0 %v3156
    %3720 = vmatpush1.msra.mxu0 %v3154
    %3721 = vmatprep.subr.mxu0 %v2522
    %3722 = vmatpush1.msra.mxu0 %v2512
    %3723 = vmatprep.subr.mxu0 %v3306
    %3724 = vmatpush1.msra.mxu0 %v3305
    %3725 = vmatprep.subr.mxu0 %v3198
    %3726 = vmatpush1.msra.mxu0 %v3196
    %3727 = vmatprep.subr.mxu0 %v2595
    %3728 = vmatpush1.msra.mxu0 %v2585
    %3729 = vmatprep.subr.mxu0 %v3312
    %3730 = vmatpush1.msra.mxu0 %v3311
    %3731 = vmatprep.mubr.f32.mxu0 %v3321
    %3732 = vmatmul.mubr.f32.gmra.mrb[0].mxu0 %v3320
    %v3733 = vpop.f32.mrb[0].mxu0
    %v3734 = vadd.f32 %v3329, %v3733
    %v3735 = vpop.f32.mrb[0].mxu0
    %v3736 = vadd.f32 %v3329, %v3735
    %3737 = vmatprep.mubr.f32.mxu0 %v3324
    %3738 = vmatmul.mubr.f32.gmra.mrb[0].mxu0 %v3323
    %v3739 = vpop.f32.mrb[0].mxu0
    %v3740 = vadd.f32 %v3334, %v3739
    %v3741 = vpop.f32.mrb[0].mxu0
    %v3742 = vadd.f32 %v3334, %v3741
    %3743 = vdwg.mxu0
    %3744 = vmatprep.subr.mxu0 %v3240
    %3745 = vmatpush1.msra.mxu0 %v3238
    %3746 = vmatprep.subr.mxu0 %v2668
    %3747 = vmatpush1.msra.mxu0 %v2658
    %3748 = vmatprep.subr.mxu0 %v3318
    %3749 = vmatpush1.msra.mxu0 %v3317
    %3750 = vmatprep.subr.mxu0 %v3282
    %3751 = vmatpush1.msra.mxu0 %v3280
    %3752 = vmatprep.subr.mxu0 %v2741
    %3753 = vmatpush1.msra.mxu0 %v2731
    %3754 = vmatprep.subr.mxu0 %v3357
    %3755 = vmatpush1.msra.mxu0 %v3354
    %3756 = vmatprep.subr.mxu0 0.0
    %3757 = vmatpush1.msra.mxu0 0.0
    %3758 = vmatprep.subr.mxu0 0.0
    %3759 = vmatpush1.msra.mxu0 0.0
    %3760 = vmatprep.subr.mxu0 0.0
    %3761 = vmatpush1.msra.mxu0 0.0
    %3762 = vmatprep.subr.mxu0 0.0
    %3763 = vmatpush1.msra.mxu0 0.0
    %3764 = vmatprep.subr.mxu0 0.0
    %3765 = vmatpush1.msra.mxu0 0.0
    %3766 = vmatprep.subr.mxu0 0.0
    %3767 = vmatpush1.msra.mxu0 0.0
    %3768 = vmatprep.subr.mxu0 0.0
    %3769 = vmatpush1.msra.mxu0 0.0
    %3770 = vmatprep.subr.mxu0 0.0
    %3771 = vmatpush1.msra.mxu0 0.0
    %3772 = vmatprep.subr.mxu0 0.0
    %3773 = vmatpush1.msra.mxu0 0.0
    %3774 = vmatprep.subr.mxu0 0.0
    %3775 = vmatpush1.msra.mxu0 0.0
    %3776 = vmatprep.subr.mxu0 0.0
    %3777 = vmatpush1.msra.mxu0 0.0
    %3778 = vmatprep.subr.mxu0 0.0
    %3779 = vmatpush1.msra.mxu0 0.0
    %3780 = vmatprep.subr.mxu0 0.0
    %3781 = vmatpush1.msra.mxu0 0.0
    %3782 = vmatprep.subr.mxu0 0.0
    %3783 = vmatpush1.msra.mxu0 0.0
    %3784 = vmatprep.subr.mxu0 0.0
    %3785 = vmatpush1.msra.mxu0 0.0
    %3786 = vmatprep.subr.mxu0 0.0
    %3787 = vmatpush1.msra.mxu0 0.0
    %3788 = vmatprep.subr.mxu0 0.0
    %3789 = vmatpush1.msra.mxu0 0.0
    %3790 = vmatprep.subr.mxu0 0.0
    %3791 = vmatpush1.msra.mxu0 0.0
    %3792 = vmatprep.subr.mxu0 0.0
    %3793 = vmatpush1.msra.mxu0 0.0
    %3794 = vmatprep.subr.mxu0 0.0
    %3795 = vmatpush1.msra.mxu0 0.0
    %3796 = vmatprep.subr.mxu0 0.0
    %3797 = vmatpush1.msra.mxu0 0.0
    %3798 = vmatprep.subr.mxu0 0.0
    %3799 = vmatpush1.msra.mxu0 0.0
    %3800 = vmatprep.subr.mxu0 0.0
    %3801 = vmatpush1.msra.mxu0 0.0
    %3802 = vmatprep.subr.mxu0 0.0
    %3803 = vmatpush1.msra.mxu0 0.0
    %3804 = vmatprep.subr.mxu0 0.0
    %3805 = vmatpush1.msra.mxu0 0.0
    %3806 = vmatprep.subr.mxu0 0.0
    %3807 = vmatpush1.msra.mxu0 0.0
    %3808 = vmatprep.mubr.f32.mxu0 0.0
    %3809 = vmatmul.mubr.f32.gmra.mrb[0].mxu0 %v3337
    %v3810 = vpop.f32.mrb[0].mxu0
    %v3811 = vadd.f32 %v3734, %v3810
    %v3812 = vpop.f32.mrb[0].mxu0
    %v3813 = vadd.f32 %v3736, %v3812
    %3814 = vmatprep.mubr.f32.mxu0 0.0
    %3815 = vmatmul.mubr.f32.gmra.mrb[0].mxu0 %v3339
    %v3816 = vpop.f32.mrb[0].mxu0
    %v3817 = vadd.f32 %v3740, %v3816
    %v3818 = vpop.f32.mrb[0].mxu0
    %v3819 = vadd.f32 %v3742, %v3818
    %3820 = vdwg.mxu0
    %v3821 = vmax.f32 %v3503, 0.0
    %v3822 = vmax.f32 %v3505, 0.0
    %v3823 = vmax.f32 %v3657, 0.0
    %v3824 = vmax.f32 %v3659, 0.0
    %v3825 = vmax.f32 %v3811, 0.0
    %v3826 = vmax.f32 %v3813, 0.0
    %v3827 = vmax.f32 %v3509, 0.0
    %v3828 = vmax.f32 %v3511, 0.0
    %v3829 = vmax.f32 %v3663, 0.0
    %v3830 = vmax.f32 %v3665, 0.0
    %v3831 = vmax.f32 %v3817, 0.0
    %v3832 = vmax.f32 %v3819, 0.0
    %v3833 = vlaneseq
    %v3834 = vshrl.u32 %v3833, 7
    %v3835 = vsub.s32 1, %v3834
    %v3836 = vrot.slane %v29, %v3835
    %v3837 = vlaneseq
    %v3838 = vshrl.u32 %v3837, 7
    %v3839 = vsub.s32 5, %v3838
    %v3840 = vrot.slane %v29, %v3839
    %v3841 = vlaneseq
    %v3842 = vshrl.u32 %v3841, 7
    %v3843 = vsub.s32 1, %v3842
    %v3844 = vrot.slane %v30, %v3843
    %v3845 = vlaneseq
    %v3846 = vshrl.u32 %v3845, 7
    %v3847 = vsub.s32 5, %v3846
    %v3848 = vrot.slane %v30, %v3847
    %v3849 = vlaneseq
    %v3850 = vshrl.u32 %v3849, 7
    %v3851 = vsub.s32 1, %v3850
    %v3852 = vrot.slane %v31, %v3851
    %v3853 = vlaneseq
    %v3854 = vshrl.u32 %v3853, 7
    %v3855 = vsub.s32 5, %v3854
    %v3856 = vrot.slane %v31, %v3855
    %v3863 = vlaneseq
    %v3864 = vshrl.u32 %v3863, 7
    %v3865 = vsub.s32 1, %v3864
    %v3866 = vrot.slane %v3836, %v3865
    %v3867 = vlaneseq
    %v3868 = vshrl.u32 %v3867, 7
    %v3869 = vsub.s32 1, %v3868
    %v3870 = vrot.slane %v3840, %v3869
    %v3871 = vlaneseq
    %v3872 = vshrl.u32 %v3871, 7
    %v3873 = vsub.s32 1, %v3872
    %v3874 = vrot.slane %v3844, %v3873
    %v3875 = vlaneseq
    %v3876 = vshrl.u32 %v3875, 7
    %v3877 = vsub.s32 1, %v3876
    %v3878 = vrot.slane %v3848, %v3877
    %v3879 = vlaneseq
    %v3880 = vshrl.u32 %v3879, 7
    %v3881 = vsub.s32 1, %v3880
    %v3882 = vrot.slane %v3852, %v3881
    %v3883 = vlaneseq
    %v3884 = vshrl.u32 %v3883, 7
    %v3885 = vsub.s32 1, %v3884
    %v3886 = vrot.slane %v3856, %v3885
    %v3887 = vmul.f32 %v3821, %v3866
    %v3888 = vmul.f32 %v3822, %v3870
    %v3889 = vmul.f32 %v3823, %v3874
    %v3890 = vmul.f32 %v3824, %v3878
    %v3891 = vmul.f32 %v3825, %v3882
    %v3892 = vmul.f32 %v3826, %v3886
    %v3893 = vmul.f32 %v3827, %v3866
    %v3894 = vmul.f32 %v3828, %v3870
    %v3895 = vmul.f32 %v3829, %v3874
    %v3896 = vmul.f32 %v3830, %v3878
    %v3897 = vmul.f32 %v3831, %v3882
    %v3898 = vmul.f32 %v3832, %v3886
    %3899 = vrot.lane.b32.xlu0 %v3887, 57
    %v3900 = vpop.permute.xlu0 %3899
    %3901 = vrot.lane.b32.xlu0 %v3893, 57
    %v3902 = vpop.permute.xlu0 %3901
    %3903 = vrot.lane.b32.xlu0 %v3888, 57
    %v3904 = vpop.permute.xlu0 %3903
    %3905 = vrot.lane.b32.xlu0 %v3894, 57
    %v3906 = vpop.permute.xlu0 %3905
    %3907 = vrot.lane.b32.xlu0 %v3889, 57
    %v3908 = vpop.permute.xlu0 %3907
    %3909 = vrot.lane.b32.xlu0 %v3895, 57
    %v3910 = vpop.permute.xlu0 %3909
    %3911 = vrot.lane.b32.xlu0 %v3890, 57
    %v3912 = vpop.permute.xlu0 %3911
    %3913 = vrot.lane.b32.xlu0 %v3896, 57
    %v3914 = vpop.permute.xlu0 %3913
    %3915 = vrot.lane.b32.xlu0 %v3891, 57
    %v3916 = vpop.permute.xlu0 %3915
    %3917 = vrot.lane.b32.xlu0 %v3897, 57
    %v3918 = vpop.permute.xlu0 %3917
    %3919 = vrot.lane.b32.xlu0 %v3892, 57
    %v3920 = vpop.permute.xlu0 %3919
    %3921 = vrot.lane.b32.xlu0 %v3898, 57
    %v3922 = vpop.permute.xlu0 %3921
    %vm3923 = vcmp.lt.s32.totalorder %v76, 57
    %v3924 = vsel %vm3923, %v3916, %v3920
    %v3925 = vsel %vm3923, %v3918, %v3922
    %v3926 = vsel %vm3923, %v3912, %v3916
    %v3927 = vsel %vm3923, %v3914, %v3918
    %v3928 = vsel %vm3923, %v3908, %v3912
    %v3929 = vsel %vm3923, %v3910, %v3914
    %v3930 = vsel %vm3923, %v3904, %v3908
    %v3931 = vsel %vm3923, %v3906, %v3910
    %v3932 = vsel %vm3923, %v3900, %v3904
    %v3933 = vsel %vm3923, %v3902, %v3906
    %v3934 = vsel %vm3923, %v3920, %v3900
    %v3935 = vsel %vm3923, %v3922, %v3902
    %3936 = vrot.lane.b32.xlu0 %v3934, 127
    %v3937 = vpop.permute.xlu0 %3936
    %3938 = vrot.lane.b32.xlu0 %v3935, 127
    %v3939 = vpop.permute.xlu0 %3938
    %3940 = vrot.lane.b32.xlu0 %v3932, 127
    %v3941 = vpop.permute.xlu0 %3940
    %3942 = vrot.lane.b32.xlu0 %v3933, 127
    %v3943 = vpop.permute.xlu0 %3942
    %3944 = vrot.lane.b32.xlu0 %v3930, 127
    %v3945 = vpop.permute.xlu0 %3944
    %3946 = vrot.lane.b32.xlu0 %v3931, 127
    %v3947 = vpop.permute.xlu0 %3946
    %3948 = vrot.lane.b32.xlu0 %v3928, 127
    %v3949 = vpop.permute.xlu0 %3948
    %3950 = vrot.lane.b32.xlu0 %v3929, 127
    %v3951 = vpop.permute.xlu0 %3950
    %3952 = vrot.lane.b32.xlu0 %v3926, 127
    %v3953 = vpop.permute.xlu0 %3952
    %3954 = vrot.lane.b32.xlu0 %v3927, 127
    %v3955 = vpop.permute.xlu0 %3954
    %3956 = vrot.lane.b32.xlu0 %v3924, 127
    %v3957 = vpop.permute.xlu0 %3956
    %3958 = vrot.lane.b32.xlu0 %v3925, 127
    %v3959 = vpop.permute.xlu0 %3958
    %v3960 = vsel %vm77, %v3953, %v3957
    %v3961 = vsel %vm77, %v3955, %v3959
    %v3962 = vsel %vm77, %v3949, %v3953
    %v3963 = vsel %vm77, %v3951, %v3955
    %v3964 = vsel %vm77, %v3945, %v3949
    %v3965 = vsel %vm77, %v3947, %v3951
    %v3966 = vsel %vm77, %v3941, %v3945
    %v3967 = vsel %vm77, %v3943, %v3947
    %v3968 = vsel %vm77, %v3937, %v3941
    %v3969 = vsel %vm77, %v3939, %v3943
    %v3970 = vsel %vm77, %v3957, %v3937
    %v3971 = vsel %vm77, %v3959, %v3939
    %3972 = vrot.lane.b32.xlu0 %v3934, 126
    %v3973 = vpop.permute.xlu0 %3972
    %3974 = vrot.lane.b32.xlu0 %v3935, 126
    %v3975 = vpop.permute.xlu0 %3974
    %3976 = vrot.lane.b32.xlu0 %v3932, 126
    %v3977 = vpop.permute.xlu0 %3976
    %3978 = vrot.lane.b32.xlu0 %v3933, 126
    %v3979 = vpop.permute.xlu0 %3978
    %3980 = vrot.lane.b32.xlu0 %v3930, 126
    %v3981 = vpop.permute.xlu0 %3980
    %3982 = vrot.lane.b32.xlu0 %v3931, 126
    %v3983 = vpop.permute.xlu0 %3982
    %3984 = vrot.lane.b32.xlu0 %v3928, 126
    %v3985 = vpop.permute.xlu0 %3984
    %3986 = vrot.lane.b32.xlu0 %v3929, 126
    %v3987 = vpop.permute.xlu0 %3986
    %3988 = vrot.lane.b32.xlu0 %v3926, 126
    %v3989 = vpop.permute.xlu0 %3988
    %3990 = vrot.lane.b32.xlu0 %v3927, 126
    %v3991 = vpop.permute.xlu0 %3990
    %3992 = vrot.lane.b32.xlu0 %v3924, 126
    %v3993 = vpop.permute.xlu0 %3992
    %3994 = vrot.lane.b32.xlu0 %v3925, 126
    %v3995 = vpop.permute.xlu0 %3994
    %v3996 = vsel %vm96, %v3989, %v3993
    %v3997 = vsel %vm96, %v3991, %v3995
    %v3998 = vsel %vm96, %v3985, %v3989
    %v3999 = vsel %vm96, %v3987, %v3991
    %v4000 = vsel %vm96, %v3981, %v3985
    %v4001 = vsel %vm96, %v3983, %v3987
    %v4002 = vsel %vm96, %v3977, %v3981
    %v4003 = vsel %vm96, %v3979, %v3983
    %v4004 = vsel %vm96, %v3973, %v3977
    %v4005 = vsel %vm96, %v3975, %v3979
    %v4006 = vsel %vm96, %v3993, %v3973
    %v4007 = vsel %vm96, %v3995, %v3975
    %4008 = vrot.lane.b32.xlu0 %v3934, 125
    %v4009 = vpop.permute.xlu0 %4008
    %4010 = vrot.lane.b32.xlu0 %v3935, 125
    %v4011 = vpop.permute.xlu0 %4010
    %4012 = vrot.lane.b32.xlu0 %v3932, 125
    %v4013 = vpop.permute.xlu0 %4012
    %4014 = vrot.lane.b32.xlu0 %v3933, 125
    %v4015 = vpop.permute.xlu0 %4014
    %4016 = vrot.lane.b32.xlu0 %v3930, 125
    %v4017 = vpop.permute.xlu0 %4016
    %4018 = vrot.lane.b32.xlu0 %v3931, 125
    %v4019 = vpop.permute.xlu0 %4018
    %4020 = vrot.lane.b32.xlu0 %v3928, 125
    %v4021 = vpop.permute.xlu0 %4020
    %4022 = vrot.lane.b32.xlu0 %v3929, 125
    %v4023 = vpop.permute.xlu0 %4022
    %4024 = vrot.lane.b32.xlu0 %v3926, 125
    %v4025 = vpop.permute.xlu0 %4024
    %4026 = vrot.lane.b32.xlu0 %v3927, 125
    %v4027 = vpop.permute.xlu0 %4026
    %4028 = vrot.lane.b32.xlu0 %v3924, 125
    %v4029 = vpop.permute.xlu0 %4028
    %4030 = vrot.lane.b32.xlu0 %v3925, 125
    %v4031 = vpop.permute.xlu0 %4030
    %v4032 = vsel %vm1964, %v4025, %v4029
    %v4033 = vsel %vm1964, %v4027, %v4031
    %v4034 = vsel %vm1964, %v4021, %v4025
    %v4035 = vsel %vm1964, %v4023, %v4027
    %v4036 = vsel %vm1964, %v4017, %v4021
    %v4037 = vsel %vm1964, %v4019, %v4023
    %v4038 = vsel %vm1964, %v4013, %v4017
    %v4039 = vsel %vm1964, %v4015, %v4019
    %v4040 = vsel %vm1964, %v4009, %v4013
    %v4041 = vsel %vm1964, %v4011, %v4015
    %v4042 = vsel %vm1964, %v4029, %v4009
    %v4043 = vsel %vm1964, %v4031, %v4011
    %4044 = vrot.lane.b32.xlu0 %v3934, 110
    %v4045 = vpop.permute.xlu0 %4044
    %4046 = vrot.lane.b32.xlu0 %v3935, 110
    %v4047 = vpop.permute.xlu0 %4046
    %4048 = vrot.lane.b32.xlu0 %v3932, 110
    %v4049 = vpop.permute.xlu0 %4048
    %4050 = vrot.lane.b32.xlu0 %v3933, 110
    %v4051 = vpop.permute.xlu0 %4050
    %4052 = vrot.lane.b32.xlu0 %v3930, 110
    %v4053 = vpop.permute.xlu0 %4052
    %4054 = vrot.lane.b32.xlu0 %v3931, 110
    %v4055 = vpop.permute.xlu0 %4054
    %4056 = vrot.lane.b32.xlu0 %v3928, 110
    %v4057 = vpop.permute.xlu0 %4056
    %4058 = vrot.lane.b32.xlu0 %v3929, 110
    %v4059 = vpop.permute.xlu0 %4058
    %4060 = vrot.lane.b32.xlu0 %v3926, 110
    %v4061 = vpop.permute.xlu0 %4060
    %4062 = vrot.lane.b32.xlu0 %v3927, 110
    %v4063 = vpop.permute.xlu0 %4062
    %4064 = vrot.lane.b32.xlu0 %v3924, 110
    %v4065 = vpop.permute.xlu0 %4064
    %4066 = vrot.lane.b32.xlu0 %v3925, 110
    %v4067 = vpop.permute.xlu0 %4066
    %v4068 = vsel %vm115, %v4061, %v4065
    %v4069 = vsel %vm115, %v4063, %v4067
    %v4070 = vsel %vm115, %v4057, %v4061
    %v4071 = vsel %vm115, %v4059, %v4063
    %v4072 = vsel %vm115, %v4053, %v4057
    %v4073 = vsel %vm115, %v4055, %v4059
    %v4074 = vsel %vm115, %v4049, %v4053
    %v4075 = vsel %vm115, %v4051, %v4055
    %v4076 = vsel %vm115, %v4045, %v4049
    %v4077 = vsel %vm115, %v4047, %v4051
    %v4078 = vsel %vm115, %v4065, %v4045
    %v4079 = vsel %vm115, %v4067, %v4047
    %4080 = vrot.lane.b32.xlu0 %v3934, 109
    %v4081 = vpop.permute.xlu0 %4080
    %4082 = vrot.lane.b32.xlu0 %v3935, 109
    %v4083 = vpop.permute.xlu0 %4082
    %4084 = vrot.lane.b32.xlu0 %v3932, 109
    %v4085 = vpop.permute.xlu0 %4084
    %4086 = vrot.lane.b32.xlu0 %v3933, 109
    %v4087 = vpop.permute.xlu0 %4086
    %4088 = vrot.lane.b32.xlu0 %v3930, 109
    %v4089 = vpop.permute.xlu0 %4088
    %4090 = vrot.lane.b32.xlu0 %v3931, 109
    %v4091 = vpop.permute.xlu0 %4090
    %4092 = vrot.lane.b32.xlu0 %v3928, 109
    %v4093 = vpop.permute.xlu0 %4092
    %4094 = vrot.lane.b32.xlu0 %v3929, 109
    %v4095 = vpop.permute.xlu0 %4094
    %4096 = vrot.lane.b32.xlu0 %v3926, 109
    %v4097 = vpop.permute.xlu0 %4096
    %4098 = vrot.lane.b32.xlu0 %v3927, 109
    %v4099 = vpop.permute.xlu0 %4098
    %4100 = vrot.lane.b32.xlu0 %v3924, 109
    %v4101 = vpop.permute.xlu0 %4100
    %4102 = vrot.lane.b32.xlu0 %v3925, 109
    %v4103 = vpop.permute.xlu0 %4102
    %v4104 = vsel %vm134, %v4097, %v4101
    %v4105 = vsel %vm134, %v4099, %v4103
    %v4106 = vsel %vm134, %v4093, %v4097
    %v4107 = vsel %vm134, %v4095, %v4099
    %v4108 = vsel %vm134, %v4089, %v4093
    %v4109 = vsel %vm134, %v4091, %v4095
    %v4110 = vsel %vm134, %v4085, %v4089
    %v4111 = vsel %vm134, %v4087, %v4091
    %v4112 = vsel %vm134, %v4081, %v4085
    %v4113 = vsel %vm134, %v4083, %v4087
    %v4114 = vsel %vm134, %v4101, %v4081
    %v4115 = vsel %vm134, %v4103, %v4083
    %4116 = vrot.lane.b32.xlu0 %v3934, 108
    %v4117 = vpop.permute.xlu0 %4116
    %4118 = vrot.lane.b32.xlu0 %v3935, 108
    %v4119 = vpop.permute.xlu0 %4118
    %4120 = vrot.lane.b32.xlu0 %v3932, 108
    %v4121 = vpop.permute.xlu0 %4120
    %4122 = vrot.lane.b32.xlu0 %v3933, 108
    %v4123 = vpop.permute.xlu0 %4122
    %4124 = vrot.lane.b32.xlu0 %v3930, 108
    %v4125 = vpop.permute.xlu0 %4124
    %4126 = vrot.lane.b32.xlu0 %v3931, 108
    %v4127 = vpop.permute.xlu0 %4126
    %4128 = vrot.lane.b32.xlu0 %v3928, 108
    %v4129 = vpop.permute.xlu0 %4128
    %4130 = vrot.lane.b32.xlu0 %v3929, 108
    %v4131 = vpop.permute.xlu0 %4130
    %4132 = vrot.lane.b32.xlu0 %v3926, 108
    %v4133 = vpop.permute.xlu0 %4132
    %4134 = vrot.lane.b32.xlu0 %v3927, 108
    %v4135 = vpop.permute.xlu0 %4134
    %4136 = vrot.lane.b32.xlu0 %v3924, 108
    %v4137 = vpop.permute.xlu0 %4136
    %4138 = vrot.lane.b32.xlu0 %v3925, 108
    %v4139 = vpop.permute.xlu0 %4138
    %v4140 = vsel %vm153, %v4133, %v4137
    %v4141 = vsel %vm153, %v4135, %v4139
    %v4142 = vsel %vm153, %v4129, %v4133
    %v4143 = vsel %vm153, %v4131, %v4135
    %v4144 = vsel %vm153, %v4125, %v4129
    %v4145 = vsel %vm153, %v4127, %v4131
    %v4146 = vsel %vm153, %v4121, %v4125
    %v4147 = vsel %vm153, %v4123, %v4127
    %v4148 = vsel %vm153, %v4117, %v4121
    %v4149 = vsel %vm153, %v4119, %v4123
    %v4150 = vsel %vm153, %v4137, %v4117
    %v4151 = vsel %vm153, %v4139, %v4119
    %4152 = vrot.lane.b32.xlu0 %v3934, 107
    %v4153 = vpop.permute.xlu0 %4152
    %4154 = vrot.lane.b32.xlu0 %v3935, 107
    %v4155 = vpop.permute.xlu0 %4154
    %4156 = vrot.lane.b32.xlu0 %v3932, 107
    %v4157 = vpop.permute.xlu0 %4156
    %4158 = vrot.lane.b32.xlu0 %v3933, 107
    %v4159 = vpop.permute.xlu0 %4158
    %4160 = vrot.lane.b32.xlu0 %v3930, 107
    %v4161 = vpop.permute.xlu0 %4160
    %4162 = vrot.lane.b32.xlu0 %v3931, 107
    %v4163 = vpop.permute.xlu0 %4162
    %4164 = vrot.lane.b32.xlu0 %v3928, 107
    %v4165 = vpop.permute.xlu0 %4164
    %4166 = vrot.lane.b32.xlu0 %v3929, 107
    %v4167 = vpop.permute.xlu0 %4166
    %4168 = vrot.lane.b32.xlu0 %v3926, 107
    %v4169 = vpop.permute.xlu0 %4168
    %4170 = vrot.lane.b32.xlu0 %v3927, 107
    %v4171 = vpop.permute.xlu0 %4170
    %4172 = vrot.lane.b32.xlu0 %v3924, 107
    %v4173 = vpop.permute.xlu0 %4172
    %4174 = vrot.lane.b32.xlu0 %v3925, 107
    %v4175 = vpop.permute.xlu0 %4174
    %v4176 = vsel %vm2145, %v4169, %v4173
    %v4177 = vsel %vm2145, %v4171, %v4175
    %v4178 = vsel %vm2145, %v4165, %v4169
    %v4179 = vsel %vm2145, %v4167, %v4171
    %v4180 = vsel %vm2145, %v4161, %v4165
    %v4181 = vsel %vm2145, %v4163, %v4167
    %v4182 = vsel %vm2145, %v4157, %v4161
    %v4183 = vsel %vm2145, %v4159, %v4163
    %v4184 = vsel %vm2145, %v4153, %v4157
    %v4185 = vsel %vm2145, %v4155, %v4159
    %v4186 = vsel %vm2145, %v4173, %v4153
    %v4187 = vsel %vm2145, %v4175, %v4155
    %4188 = vrot.lane.b32.xlu0 %v3934, 92
    %v4189 = vpop.permute.xlu0 %4188
    %4190 = vrot.lane.b32.xlu0 %v3935, 92
    %v4191 = vpop.permute.xlu0 %4190
    %4192 = vrot.lane.b32.xlu0 %v3932, 92
    %v4193 = vpop.permute.xlu0 %4192
    %4194 = vrot.lane.b32.xlu0 %v3933, 92
    %v4195 = vpop.permute.xlu0 %4194
    %4196 = vrot.lane.b32.xlu0 %v3930, 92
    %v4197 = vpop.permute.xlu0 %4196
    %4198 = vrot.lane.b32.xlu0 %v3931, 92
    %v4199 = vpop.permute.xlu0 %4198
    %4200 = vrot.lane.b32.xlu0 %v3928, 92
    %v4201 = vpop.permute.xlu0 %4200
    %4202 = vrot.lane.b32.xlu0 %v3929, 92
    %v4203 = vpop.permute.xlu0 %4202
    %4204 = vrot.lane.b32.xlu0 %v3926, 92
    %v4205 = vpop.permute.xlu0 %4204
    %4206 = vrot.lane.b32.xlu0 %v3927, 92
    %v4207 = vpop.permute.xlu0 %4206
    %4208 = vrot.lane.b32.xlu0 %v3924, 92
    %v4209 = vpop.permute.xlu0 %4208
    %4210 = vrot.lane.b32.xlu0 %v3925, 92
    %v4211 = vpop.permute.xlu0 %4210
    %v4212 = vsel %vm172, %v4205, %v4209
    %v4213 = vsel %vm172, %v4207, %v4211
    %v4214 = vsel %vm172, %v4201, %v4205
    %v4215 = vsel %vm172, %v4203, %v4207
    %v4216 = vsel %vm172, %v4197, %v4201
    %v4217 = vsel %vm172, %v4199, %v4203
    %v4218 = vsel %vm172, %v4193, %v4197
    %v4219 = vsel %vm172, %v4195, %v4199
    %v4220 = vsel %vm172, %v4189, %v4193
    %v4221 = vsel %vm172, %v4191, %v4195
    %v4222 = vsel %vm172, %v4209, %v4189
    %v4223 = vsel %vm172, %v4211, %v4191
    %4224 = vrot.lane.b32.xlu0 %v3934, 91
    %v4225 = vpop.permute.xlu0 %4224
    %4226 = vrot.lane.b32.xlu0 %v3935, 91
    %v4227 = vpop.permute.xlu0 %4226
    %4228 = vrot.lane.b32.xlu0 %v3932, 91
    %v4229 = vpop.permute.xlu0 %4228
    %4230 = vrot.lane.b32.xlu0 %v3933, 91
    %v4231 = vpop.permute.xlu0 %4230
    %4232 = vrot.lane.b32.xlu0 %v3930, 91
    %v4233 = vpop.permute.xlu0 %4232
    %4234 = vrot.lane.b32.xlu0 %v3931, 91
    %v4235 = vpop.permute.xlu0 %4234
    %4236 = vrot.lane.b32.xlu0 %v3928, 91
    %v4237 = vpop.permute.xlu0 %4236
    %4238 = vrot.lane.b32.xlu0 %v3929, 91
    %v4239 = vpop.permute.xlu0 %4238
    %4240 = vrot.lane.b32.xlu0 %v3926, 91
    %v4241 = vpop.permute.xlu0 %4240
    %4242 = vrot.lane.b32.xlu0 %v3927, 91
    %v4243 = vpop.permute.xlu0 %4242
    %4244 = vrot.lane.b32.xlu0 %v3924, 91
    %v4245 = vpop.permute.xlu0 %4244
    %4246 = vrot.lane.b32.xlu0 %v3925, 91
    %v4247 = vpop.permute.xlu0 %4246
    %v4248 = vsel %vm191, %v4241, %v4245
    %v4249 = vsel %vm191, %v4243, %v4247
    %v4250 = vsel %vm191, %v4237, %v4241
    %v4251 = vsel %vm191, %v4239, %v4243
    %v4252 = vsel %vm191, %v4233, %v4237
    %v4253 = vsel %vm191, %v4235, %v4239
    %v4254 = vsel %vm191, %v4229, %v4233
    %v4255 = vsel %vm191, %v4231, %v4235
    %v4256 = vsel %vm191, %v4225, %v4229
    %v4257 = vsel %vm191, %v4227, %v4231
    %v4258 = vsel %vm191, %v4245, %v4225
    %v4259 = vsel %vm191, %v4247, %v4227
    %4260 = vrot.lane.b32.xlu0 %v3934, 90
    %v4261 = vpop.permute.xlu0 %4260
    %4262 = vrot.lane.b32.xlu0 %v3935, 90
    %v4263 = vpop.permute.xlu0 %4262
    %4264 = vrot.lane.b32.xlu0 %v3932, 90
    %v4265 = vpop.permute.xlu0 %4264
    %4266 = vrot.lane.b32.xlu0 %v3933, 90
    %v4267 = vpop.permute.xlu0 %4266
    %4268 = vrot.lane.b32.xlu0 %v3930, 90
    %v4269 = vpop.permute.xlu0 %4268
    %4270 = vrot.lane.b32.xlu0 %v3931, 90
    %v4271 = vpop.permute.xlu0 %4270
    %4272 = vrot.lane.b32.xlu0 %v3928, 90
    %v4273 = vpop.permute.xlu0 %4272
    %4274 = vrot.lane.b32.xlu0 %v3929, 90
    %v4275 = vpop.permute.xlu0 %4274
    %4276 = vrot.lane.b32.xlu0 %v3926, 90
    %v4277 = vpop.permute.xlu0 %4276
    %4278 = vrot.lane.b32.xlu0 %v3927, 90
    %v4279 = vpop.permute.xlu0 %4278
    %4280 = vrot.lane.b32.xlu0 %v3924, 90
    %v4281 = vpop.permute.xlu0 %4280
    %4282 = vrot.lane.b32.xlu0 %v3925, 90
    %v4283 = vpop.permute.xlu0 %4282
    %v4284 = vsel %vm210, %v4277, %v4281
    %v4285 = vsel %vm210, %v4279, %v4283
    %v4286 = vsel %vm210, %v4273, %v4277
    %v4287 = vsel %vm210, %v4275, %v4279
    %v4288 = vsel %vm210, %v4269, %v4273
    %v4289 = vsel %vm210, %v4271, %v4275
    %v4290 = vsel %vm210, %v4265, %v4269
    %v4291 = vsel %vm210, %v4267, %v4271
    %v4292 = vsel %vm210, %v4261, %v4265
    %v4293 = vsel %vm210, %v4263, %v4267
    %v4294 = vsel %vm210, %v4281, %v4261
    %v4295 = vsel %vm210, %v4283, %v4263
    %4296 = vrot.lane.b32.xlu0 %v3934, 89
    %v4297 = vpop.permute.xlu0 %4296
    %4298 = vrot.lane.b32.xlu0 %v3935, 89
    %v4299 = vpop.permute.xlu0 %4298
    %4300 = vrot.lane.b32.xlu0 %v3932, 89
    %v4301 = vpop.permute.xlu0 %4300
    %4302 = vrot.lane.b32.xlu0 %v3933, 89
    %v4303 = vpop.permute.xlu0 %4302
    %4304 = vrot.lane.b32.xlu0 %v3930, 89
    %v4305 = vpop.permute.xlu0 %4304
    %4306 = vrot.lane.b32.xlu0 %v3931, 89
    %v4307 = vpop.permute.xlu0 %4306
    %4308 = vrot.lane.b32.xlu0 %v3928, 89
    %v4309 = vpop.permute.xlu0 %4308
    %4310 = vrot.lane.b32.xlu0 %v3929, 89
    %v4311 = vpop.permute.xlu0 %4310
    %4312 = vrot.lane.b32.xlu0 %v3926, 89
    %v4313 = vpop.permute.xlu0 %4312
    %4314 = vrot.lane.b32.xlu0 %v3927, 89
    %v4315 = vpop.permute.xlu0 %4314
    %4316 = vrot.lane.b32.xlu0 %v3924, 89
    %v4317 = vpop.permute.xlu0 %4316
    %4318 = vrot.lane.b32.xlu0 %v3925, 89
    %v4319 = vpop.permute.xlu0 %4318
    %v4320 = vsel %vm2327, %v4313, %v4317
    %v4321 = vsel %vm2327, %v4315, %v4319
    %v4322 = vsel %vm2327, %v4309, %v4313
    %v4323 = vsel %vm2327, %v4311, %v4315
    %v4324 = vsel %vm2327, %v4305, %v4309
    %v4325 = vsel %vm2327, %v4307, %v4311
    %v4326 = vsel %vm2327, %v4301, %v4305
    %v4327 = vsel %vm2327, %v4303, %v4307
    %v4328 = vsel %vm2327, %v4297, %v4301
    %v4329 = vsel %vm2327, %v4299, %v4303
    %v4330 = vsel %vm2327, %v4317, %v4297
    %v4331 = vsel %vm2327, %v4319, %v4299
    %4332 = vrot.lane.b32.xlu0 %v3934, 74
    %v4333 = vpop.permute.xlu0 %4332
    %4334 = vrot.lane.b32.xlu0 %v3935, 74
    %v4335 = vpop.permute.xlu0 %4334
    %4336 = vrot.lane.b32.xlu0 %v3932, 74
    %v4337 = vpop.permute.xlu0 %4336
    %4338 = vrot.lane.b32.xlu0 %v3933, 74
    %v4339 = vpop.permute.xlu0 %4338
    %4340 = vrot.lane.b32.xlu0 %v3930, 74
    %v4341 = vpop.permute.xlu0 %4340
    %4342 = vrot.lane.b32.xlu0 %v3931, 74
    %v4343 = vpop.permute.xlu0 %4342
    %4344 = vrot.lane.b32.xlu0 %v3928, 74
    %v4345 = vpop.permute.xlu0 %4344
    %4346 = vrot.lane.b32.xlu0 %v3929, 74
    %v4347 = vpop.permute.xlu0 %4346
    %4348 = vrot.lane.b32.xlu0 %v3926, 74
    %v4349 = vpop.permute.xlu0 %4348
    %4350 = vrot.lane.b32.xlu0 %v3927, 74
    %v4351 = vpop.permute.xlu0 %4350
    %4352 = vrot.lane.b32.xlu0 %v3924, 74
    %v4353 = vpop.permute.xlu0 %4352
    %4354 = vrot.lane.b32.xlu0 %v3925, 74
    %v4355 = vpop.permute.xlu0 %4354
    %v4356 = vsel %vm2400, %v4349, %v4353
    %v4357 = vsel %vm2400, %v4351, %v4355
    %v4358 = vsel %vm2400, %v4345, %v4349
    %v4359 = vsel %vm2400, %v4347, %v4351
    %v4360 = vsel %vm2400, %v4341, %v4345
    %v4361 = vsel %vm2400, %v4343, %v4347
    %v4362 = vsel %vm2400, %v4337, %v4341
    %v4363 = vsel %vm2400, %v4339, %v4343
    %v4364 = vsel %vm2400, %v4333, %v4337
    %v4365 = vsel %vm2400, %v4335, %v4339
    %v4366 = vsel %vm2400, %v4353, %v4333
    %v4367 = vsel %vm2400, %v4355, %v4335
    %4368 = vrot.lane.b32.xlu0 %v3934, 73
    %v4369 = vpop.permute.xlu0 %4368
    %4370 = vrot.lane.b32.xlu0 %v3935, 73
    %v4371 = vpop.permute.xlu0 %4370
    %4372 = vrot.lane.b32.xlu0 %v3932, 73
    %v4373 = vpop.permute.xlu0 %4372
    %4374 = vrot.lane.b32.xlu0 %v3933, 73
    %v4375 = vpop.permute.xlu0 %4374
    %4376 = vrot.lane.b32.xlu0 %v3930, 73
    %v4377 = vpop.permute.xlu0 %4376
    %4378 = vrot.lane.b32.xlu0 %v3931, 73
    %v4379 = vpop.permute.xlu0 %4378
    %4380 = vrot.lane.b32.xlu0 %v3928, 73
    %v4381 = vpop.permute.xlu0 %4380
    %4382 = vrot.lane.b32.xlu0 %v3929, 73
    %v4383 = vpop.permute.xlu0 %4382
    %4384 = vrot.lane.b32.xlu0 %v3926, 73
    %v4385 = vpop.permute.xlu0 %4384
    %4386 = vrot.lane.b32.xlu0 %v3927, 73
    %v4387 = vpop.permute.xlu0 %4386
    %4388 = vrot.lane.b32.xlu0 %v3924, 73
    %v4389 = vpop.permute.xlu0 %4388
    %4390 = vrot.lane.b32.xlu0 %v3925, 73
    %v4391 = vpop.permute.xlu0 %4390
    %v4392 = vsel %vm2437, %v4385, %v4389
    %v4393 = vsel %vm2437, %v4387, %v4391
    %v4394 = vsel %vm2437, %v4381, %v4385
    %v4395 = vsel %vm2437, %v4383, %v4387
    %v4396 = vsel %vm2437, %v4377, %v4381
    %v4397 = vsel %vm2437, %v4379, %v4383
    %v4398 = vsel %vm2437, %v4373, %v4377
    %v4399 = vsel %vm2437, %v4375, %v4379
    %v4400 = vsel %vm2437, %v4369, %v4373
    %v4401 = vsel %vm2437, %v4371, %v4375
    %v4402 = vsel %vm2437, %v4389, %v4369
    %v4403 = vsel %vm2437, %v4391, %v4371
    %4404 = vrot.lane.b32.xlu0 %v3934, 72
    %v4405 = vpop.permute.xlu0 %4404
    %4406 = vrot.lane.b32.xlu0 %v3935, 72
    %v4407 = vpop.permute.xlu0 %4406
    %4408 = vrot.lane.b32.xlu0 %v3932, 72
    %v4409 = vpop.permute.xlu0 %4408
    %4410 = vrot.lane.b32.xlu0 %v3933, 72
    %v4411 = vpop.permute.xlu0 %4410
    %4412 = vrot.lane.b32.xlu0 %v3930, 72
    %v4413 = vpop.permute.xlu0 %4412
    %4414 = vrot.lane.b32.xlu0 %v3931, 72
    %v4415 = vpop.permute.xlu0 %4414
    %4416 = vrot.lane.b32.xlu0 %v3928, 72
    %v4417 = vpop.permute.xlu0 %4416
    %4418 = vrot.lane.b32.xlu0 %v3929, 72
    %v4419 = vpop.permute.xlu0 %4418
    %4420 = vrot.lane.b32.xlu0 %v3926, 72
    %v4421 = vpop.permute.xlu0 %4420
    %4422 = vrot.lane.b32.xlu0 %v3927, 72
    %v4423 = vpop.permute.xlu0 %4422
    %4424 = vrot.lane.b32.xlu0 %v3924, 72
    %v4425 = vpop.permute.xlu0 %4424
    %4426 = vrot.lane.b32.xlu0 %v3925, 72
    %v4427 = vpop.permute.xlu0 %4426
    %v4428 = vsel %vm2474, %v4421, %v4425
    %v4429 = vsel %vm2474, %v4423, %v4427
    %v4430 = vsel %vm2474, %v4417, %v4421
    %v4431 = vsel %vm2474, %v4419, %v4423
    %v4432 = vsel %vm2474, %v4413, %v4417
    %v4433 = vsel %vm2474, %v4415, %v4419
    %v4434 = vsel %vm2474, %v4409, %v4413
    %v4435 = vsel %vm2474, %v4411, %v4415
    %v4436 = vsel %vm2474, %v4405, %v4409
    %v4437 = vsel %vm2474, %v4407, %v4411
    %v4438 = vsel %vm2474, %v4425, %v4405
    %v4439 = vsel %vm2474, %v4427, %v4407
    %4440 = vrot.lane.b32.xlu0 %v3934, 71
    %v4441 = vpop.permute.xlu0 %4440
    %4442 = vrot.lane.b32.xlu0 %v3935, 71
    %v4443 = vpop.permute.xlu0 %4442
    %4444 = vrot.lane.b32.xlu0 %v3932, 71
    %v4445 = vpop.permute.xlu0 %4444
    %4446 = vrot.lane.b32.xlu0 %v3933, 71
    %v4447 = vpop.permute.xlu0 %4446
    %4448 = vrot.lane.b32.xlu0 %v3930, 71
    %v4449 = vpop.permute.xlu0 %4448
    %4450 = vrot.lane.b32.xlu0 %v3931, 71
    %v4451 = vpop.permute.xlu0 %4450
    %4452 = vrot.lane.b32.xlu0 %v3928, 71
    %v4453 = vpop.permute.xlu0 %4452
    %4454 = vrot.lane.b32.xlu0 %v3929, 71
    %v4455 = vpop.permute.xlu0 %4454
    %4456 = vrot.lane.b32.xlu0 %v3926, 71
    %v4457 = vpop.permute.xlu0 %4456
    %4458 = vrot.lane.b32.xlu0 %v3927, 71
    %v4459 = vpop.permute.xlu0 %4458
    %4460 = vrot.lane.b32.xlu0 %v3924, 71
    %v4461 = vpop.permute.xlu0 %4460
    %4462 = vrot.lane.b32.xlu0 %v3925, 71
    %v4463 = vpop.permute.xlu0 %4462
    %v4464 = vsel %vm2511, %v4457, %v4461
    %v4465 = vsel %vm2511, %v4459, %v4463
    %v4466 = vsel %vm2511, %v4453, %v4457
    %v4467 = vsel %vm2511, %v4455, %v4459
    %v4468 = vsel %vm2511, %v4449, %v4453
    %v4469 = vsel %vm2511, %v4451, %v4455
    %v4470 = vsel %vm2511, %v4445, %v4449
    %v4471 = vsel %vm2511, %v4447, %v4451
    %v4472 = vsel %vm2511, %v4441, %v4445
    %v4473 = vsel %vm2511, %v4443, %v4447
    %v4474 = vsel %vm2511, %v4461, %v4441
    %v4475 = vsel %vm2511, %v4463, %v4443
    %v4488 = vrot.slane %v3968, 4
    %v4489 = vrot.slane %v3966, 4
    %v4490 = vrot.slane %v3964, 4
    %v4491 = vrot.slane %v3962, 4
    %v4492 = vrot.slane %v3960, 4
    %v4493 = vrot.slane %v3970, 4
    %v4494 = vrot.slane %v3969, 4
    %v4495 = vsel %vm364, %v4488, %v4494
    %v4496 = vrot.slane %v3967, 4
    %v4497 = vsel %vm364, %v4489, %v4496
    %v4498 = vrot.slane %v3965, 4
    %v4499 = vsel %vm364, %v4490, %v4498
    %v4500 = vrot.slane %v3963, 4
    %v4501 = vsel %vm364, %v4491, %v4500
    %v4502 = vrot.slane %v3961, 4
    %v4503 = vsel %vm364, %v4492, %v4502
    %v4504 = vrot.slane %v3971, 4
    %v4505 = vsel %vm364, %v4493, %v4504
    %v4530 = vrot.slane %v4040, 4
    %v4531 = vrot.slane %v4038, 4
    %v4532 = vrot.slane %v4036, 4
    %v4533 = vrot.slane %v4034, 4
    %v4534 = vrot.slane %v4032, 4
    %v4535 = vrot.slane %v4042, 4
    %v4536 = vrot.slane %v4041, 4
    %v4537 = vsel %vm364, %v4530, %v4536
    %v4538 = vrot.slane %v4039, 4
    %v4539 = vsel %vm364, %v4531, %v4538
    %v4540 = vrot.slane %v4037, 4
    %v4541 = vsel %vm364, %v4532, %v4540
    %v4542 = vrot.slane %v4035, 4
    %v4543 = vsel %vm364, %v4533, %v4542
    %v4544 = vrot.slane %v4033, 4
    %v4545 = vsel %vm364, %v4534, %v4544
    %v4546 = vrot.slane %v4043, 4
    %v4547 = vsel %vm364, %v4535, %v4546
    %v4572 = vrot.slane %v4112, 4
    %v4573 = vrot.slane %v4110, 4
    %v4574 = vrot.slane %v4108, 4
    %v4575 = vrot.slane %v4106, 4
    %v4576 = vrot.slane %v4104, 4
    %v4577 = vrot.slane %v4114, 4
    %v4578 = vrot.slane %v4113, 4
    %v4579 = vsel %vm364, %v4572, %v4578
    %v4580 = vrot.slane %v4111, 4
    %v4581 = vsel %vm364, %v4573, %v4580
    %v4582 = vrot.slane %v4109, 4
    %v4583 = vsel %vm364, %v4574, %v4582
    %v4584 = vrot.slane %v4107, 4
    %v4585 = vsel %vm364, %v4575, %v4584
    %v4586 = vrot.slane %v4105, 4
    %v4587 = vsel %vm364, %v4576, %v4586
    %v4588 = vrot.slane %v4115, 4
    %v4589 = vsel %vm364, %v4577, %v4588
    %v4614 = vrot.slane %v4184, 4
    %v4615 = vrot.slane %v4182, 4
    %v4616 = vrot.slane %v4180, 4
    %v4617 = vrot.slane %v4178, 4
    %v4618 = vrot.slane %v4176, 4
    %v4619 = vrot.slane %v4186, 4
    %v4620 = vrot.slane %v4185, 4
    %v4621 = vsel %vm364, %v4614, %v4620
    %v4622 = vrot.slane %v4183, 4
    %v4623 = vsel %vm364, %v4615, %v4622
    %v4624 = vrot.slane %v4181, 4
    %v4625 = vsel %vm364, %v4616, %v4624
    %v4626 = vrot.slane %v4179, 4
    %v4627 = vsel %vm364, %v4617, %v4626
    %v4628 = vrot.slane %v4177, 4
    %v4629 = vsel %vm364, %v4618, %v4628
    %v4630 = vrot.slane %v4187, 4
    %v4631 = vsel %vm364, %v4619, %v4630
    %v4656 = vrot.slane %v4256, 4
    %v4657 = vrot.slane %v4254, 4
    %v4658 = vrot.slane %v4252, 4
    %v4659 = vrot.slane %v4250, 4
    %v4660 = vrot.slane %v4248, 4
    %v4661 = vrot.slane %v4258, 4
    %v4662 = vrot.slane %v4257, 4
    %v4663 = vsel %vm364, %v4656, %v4662
    %v4664 = vrot.slane %v4255, 4
    %v4665 = vsel %vm364, %v4657, %v4664
    %v4666 = vrot.slane %v4253, 4
    %v4667 = vsel %vm364, %v4658, %v4666
    %v4668 = vrot.slane %v4251, 4
    %v4669 = vsel %vm364, %v4659, %v4668
    %v4670 = vrot.slane %v4249, 4
    %v4671 = vsel %vm364, %v4660, %v4670
    %v4672 = vrot.slane %v4259, 4
    %v4673 = vsel %vm364, %v4661, %v4672
    %v4698 = vrot.slane %v4328, 4
    %v4699 = vrot.slane %v4326, 4
    %v4700 = vrot.slane %v4324, 4
    %v4701 = vrot.slane %v4322, 4
    %v4702 = vrot.slane %v4320, 4
    %v4703 = vrot.slane %v4330, 4
    %v4704 = vrot.slane %v4329, 4
    %v4705 = vsel %vm364, %v4698, %v4704
    %v4706 = vrot.slane %v4327, 4
    %v4707 = vsel %vm364, %v4699, %v4706
    %v4708 = vrot.slane %v4325, 4
    %v4709 = vsel %vm364, %v4700, %v4708
    %v4710 = vrot.slane %v4323, 4
    %v4711 = vsel %vm364, %v4701, %v4710
    %v4712 = vrot.slane %v4321, 4
    %v4713 = vsel %vm364, %v4702, %v4712
    %v4714 = vrot.slane %v4331, 4
    %v4715 = vsel %vm364, %v4703, %v4714
    %v4740 = vrot.slane %v4400, 4
    %v4741 = vrot.slane %v4398, 4
    %v4742 = vrot.slane %v4396, 4
    %v4743 = vrot.slane %v4394, 4
    %v4744 = vrot.slane %v4392, 4
    %v4745 = vrot.slane %v4402, 4
    %v4746 = vrot.slane %v4401, 4
    %v4747 = vsel %vm364, %v4740, %v4746
    %v4748 = vrot.slane %v4399, 4
    %v4749 = vsel %vm364, %v4741, %v4748
    %v4750 = vrot.slane %v4397, 4
    %v4751 = vsel %vm364, %v4742, %v4750
    %v4752 = vrot.slane %v4395, 4
    %v4753 = vsel %vm364, %v4743, %v4752
    %v4754 = vrot.slane %v4393, 4
    %v4755 = vsel %vm364, %v4744, %v4754
    %v4756 = vrot.slane %v4403, 4
    %v4757 = vsel %vm364, %v4745, %v4756
    %v4782 = vrot.slane %v4472, 4
    %v4783 = vrot.slane %v4470, 4
    %v4784 = vrot.slane %v4468, 4
    %v4785 = vrot.slane %v4466, 4
    %v4786 = vrot.slane %v4464, 4
    %v4787 = vrot.slane %v4474, 4
    %v4788 = vrot.slane %v4473, 4
    %v4789 = vsel %vm364, %v4782, %v4788
    %v4790 = vrot.slane %v4471, 4
    %v4791 = vsel %vm364, %v4783, %v4790
    %v4792 = vrot.slane %v4469, 4
    %v4793 = vsel %vm364, %v4784, %v4792
    %v4794 = vrot.slane %v4467, 4
    %v4795 = vsel %vm364, %v4785, %v4794
    %v4796 = vrot.slane %v4465, 4
    %v4797 = vsel %vm364, %v4786, %v4796
    %v4798 = vrot.slane %v4475, 4
    %v4799 = vsel %vm364, %v4787, %v4798
    %v4812 = vsel %vm364, %v3935, %v4488
    %v4813 = vsel %vm364, %v3933, %v4489
    %v4814 = vsel %vm364, %v3931, %v4490
    %v4815 = vsel %vm364, %v3929, %v4491
    %v4816 = vsel %vm364, %v3927, %v4492
    %v4817 = vsel %vm364, %v3925, %v4493
    %v4818 = vsel %vm364, %v4005, %v4530
    %v4819 = vsel %vm364, %v4003, %v4531
    %v4820 = vsel %vm364, %v4001, %v4532
    %v4821 = vsel %vm364, %v3999, %v4533
    %v4822 = vsel %vm364, %v3997, %v4534
    %v4823 = vsel %vm364, %v4007, %v4535
    %v4824 = vsel %vm364, %v4077, %v4572
    %v4825 = vsel %vm364, %v4075, %v4573
    %v4826 = vsel %vm364, %v4073, %v4574
    %v4827 = vsel %vm364, %v4071, %v4575
    %v4828 = vsel %vm364, %v4069, %v4576
    %v4829 = vsel %vm364, %v4079, %v4577
    %v4830 = vsel %vm364, %v4149, %v4614
    %v4831 = vsel %vm364, %v4147, %v4615
    %v4832 = vsel %vm364, %v4145, %v4616
    %v4833 = vsel %vm364, %v4143, %v4617
    %v4834 = vsel %vm364, %v4141, %v4618
    %v4835 = vsel %vm364, %v4151, %v4619
    %v4836 = vsel %vm364, %v4221, %v4656
    %v4837 = vsel %vm364, %v4219, %v4657
    %v4838 = vsel %vm364, %v4217, %v4658
    %v4839 = vsel %vm364, %v4215, %v4659
    %v4840 = vsel %vm364, %v4213, %v4660
    %v4841 = vsel %vm364, %v4223, %v4661
    %v4842 = vsel %vm364, %v4293, %v4698
    %v4843 = vsel %vm364, %v4291, %v4699
    %v4844 = vsel %vm364, %v4289, %v4700
    %v4845 = vsel %vm364, %v4287, %v4701
    %v4846 = vsel %vm364, %v4285, %v4702
    %v4847 = vsel %vm364, %v4295, %v4703
    %v4848 = vsel %vm364, %v4365, %v4740
    %v4849 = vsel %vm364, %v4363, %v4741
    %v4850 = vsel %vm364, %v4361, %v4742
    %v4851 = vsel %vm364, %v4359, %v4743
    %v4852 = vsel %vm364, %v4357, %v4744
    %v4853 = vsel %vm364, %v4367, %v4745
    %v4854 = vsel %vm364, %v4437, %v4782
    %v4855 = vsel %vm364, %v4435, %v4783
    %v4856 = vsel %vm364, %v4433, %v4784
    %v4857 = vsel %vm364, %v4431, %v4785
    %v4858 = vsel %vm364, %v4429, %v4786
    %v4859 = vsel %vm364, %v4439, %v4787
    %s4860 = scalar_lea.vmem [#allocation2], 288
    %v4861 = vld [vmem:[%s4860] sm:$0xff]
    %v4862 = vld [vmem:[%s4860 + $0x8] sm:$0xff]
    %v4863 = vld [vmem:[%s4860 + $0x18] sm:$0xff]
    %v4864 = vld [vmem:[%s4860 + $0x20] sm:$0xff]
    %v4865 = vld [vmem:[%s4860 + $0x30] sm:$0xff]
    %v4866 = vld [vmem:[%s4860 + $0x38] sm:$0xff]
    %4868 = vset.pattern.permute.xlu0 64
    %4869 = vperm.xlu0 %4868, %v4862
    %v4870 = vpop.permute.xlu0 %4869
    %4873 = vset.pattern.permute.xlu0 64
    %4874 = vperm.xlu0 %4873, %v4864
    %v4875 = vpop.permute.xlu0 %4874
    %4878 = vset.pattern.permute.xlu0 64
    %4879 = vperm.xlu0 %4878, %v4866
    %v4880 = vpop.permute.xlu0 %4879
    %vm4882 = vcmask 523264
    %v4883 = vsel %vm4882, %v4862, 0
    %v4885 = vsel %vm4882, %v4864, 0
    %v4887 = vsel %vm4882, %v4866, 0
    %4889 = vmatprep.subr.mxu0 %v3932
    %4890 = vmatpush1.msra.mxu0 %v3934
    %4891 = vmatprep.subr.mxu0 %v4813
    %4892 = vmatpush1.msra.mxu0 %v4812
    %4893 = vmatprep.subr.mxu0 %v4497
    %4894 = vmatpush1.msra.mxu0 %v4495
    %4895 = vmatprep.subr.mxu0 %v4002
    %4896 = vmatpush1.msra.mxu0 %v4004
    %4897 = vmatprep.subr.mxu0 %v4819
    %4898 = vmatpush1.msra.mxu0 %v4818
    %4899 = vmatprep.subr.mxu0 %v4539
    %4900 = vmatpush1.msra.mxu0 %v4537
    %4901 = vmatprep.subr.mxu0 %v4074
    %4902 = vmatpush1.msra.mxu0 %v4076
    %4903 = vmatprep.subr.mxu0 %v4825
    %4904 = vmatpush1.msra.mxu0 %v4824
    %4905 = vmatprep.subr.mxu0 %v4581
    %4906 = vmatpush1.msra.mxu0 %v4579
    %4907 = vmatprep.subr.mxu0 %v4146
    %4908 = vmatpush1.msra.mxu0 %v4148
    %4909 = vmatprep.subr.mxu0 %v4831
    %4910 = vmatpush1.msra.mxu0 %v4830
    %4911 = vmatprep.subr.mxu0 %v4623
    %4912 = vmatpush1.msra.mxu0 %v4621
    %4913 = vmatprep.subr.mxu0 %v4218
    %4914 = vmatpush1.msra.mxu0 %v4220
    %4915 = vmatprep.subr.mxu0 %v4837
    %4916 = vmatpush1.msra.mxu0 %v4836
    %4917 = vmatprep.subr.mxu0 %v4665
    %4918 = vmatpush1.msra.mxu0 %v4663
    %4919 = vmatprep.subr.mxu0 %v4290
    %4920 = vmatpush1.msra.mxu0 %v4292
    %4921 = vmatprep.subr.mxu0 %v4843
    %4922 = vmatpush1.msra.mxu0 %v4842
    %4923 = vmatprep.subr.mxu0 %v4707
    %4924 = vmatpush1.msra.mxu0 %v4705
    %4925 = vmatprep.subr.mxu0 %v4362
    %4926 = vmatpush1.msra.mxu0 %v4364
    %4927 = vmatprep.subr.mxu0 %v4849
    %4928 = vmatpush1.msra.mxu0 %v4848
    %4929 = vmatprep.subr.mxu0 %v4749
    %4930 = vmatpush1.msra.mxu0 %v4747
    %4931 = vmatprep.subr.mxu0 %v4434
    %4932 = vmatpush1.msra.mxu0 %v4436
    %4933 = vmatprep.subr.mxu0 %v4855
    %4934 = vmatpush1.msra.mxu0 %v4854
    %4935 = vmatprep.subr.mxu0 %v4791
    %4936 = vmatpush1.msra.mxu0 %v4789
    %4937 = vmatprep.subr.mxu0 0.0
    %4938 = vmatpush1.msra.mxu0 0.0
    %4939 = vmatprep.subr.mxu0 0.0
    %4940 = vmatpush1.msra.mxu0 0.0
    %4941 = vmatprep.subr.mxu0 0.0
    %4942 = vmatpush1.msra.mxu0 0.0
    %4943 = vmatprep.subr.mxu0 0.0
    %4944 = vmatpush1.msra.mxu0 0.0
    %4945 = vmatprep.subr.mxu0 0.0
    %4946 = vmatpush1.msra.mxu0 0.0
    %4947 = vmatprep.subr.mxu0 0.0
    %4948 = vmatpush1.msra.mxu0 0.0
    %4949 = vmatprep.subr.mxu0 0.0
    %4950 = vmatpush1.msra.mxu0 0.0
    %4951 = vmatprep.subr.mxu0 0.0
    %4952 = vmatpush1.msra.mxu0 0.0
    %4953 = vmatprep.mubr.f32.mxu0 %v4883
    %4954 = vmatmul.mubr.f32.gmra.mrb[0].mxu0 %v4861
    %v4955 = vpop.f32.mrb[0].mxu0
    %v4956 = vadd.f32 %v4870, %v4955
    %v4957 = vpop.f32.mrb[0].mxu0
    %v4958 = vadd.f32 %v4870, %v4957
    %4959 = vmatprep.mubr.f32.mxu0 %v4885
    %4960 = vmatmul.mubr.f32.gmra.mrb[0].mxu0 %v4863
    %v4961 = vpop.f32.mrb[0].mxu0
    %v4962 = vadd.f32 %v4875, %v4961
    %v4963 = vpop.f32.mrb[0].mxu0
    %v4964 = vadd.f32 %v4875, %v4963
    %4965 = vmatprep.mubr.f32.mxu0 %v4887
    %4966 = vmatmul.mubr.f32.gmra.mrb[0].mxu0 %v4865
    %v4967 = vpop.f32.mrb[0].mxu0
    %v4968 = vadd.f32 %v4880, %v4967
    %v4969 = vpop.f32.mrb[0].mxu0
    %v4970 = vadd.f32 %v4880, %v4969
    %4971 = vdwg.mxu0
    %4972 = vmatprep.subr.mxu0 %v3928
    %4973 = vmatpush1.msra.mxu0 %v3930
    %4974 = vmatprep.subr.mxu0 %v4815
    %4975 = vmatpush1.msra.mxu0 %v4814
    %4976 = vmatprep.subr.mxu0 %v4501
    %4977 = vmatpush1.msra.mxu0 %v4499
    %4978 = vmatprep.subr.mxu0 %v3998
    %4979 = vmatpush1.msra.mxu0 %v4000
    %4980 = vmatprep.subr.mxu0 %v4821
    %4981 = vmatpush1.msra.mxu0 %v4820
    %4982 = vmatprep.subr.mxu0 %v4543
    %4983 = vmatpush1.msra.mxu0 %v4541
    %4984 = vmatprep.subr.mxu0 %v4070
    %4985 = vmatpush1.msra.mxu0 %v4072
    %4986 = vmatprep.subr.mxu0 %v4827
    %4987 = vmatpush1.msra.mxu0 %v4826
    %4988 = vmatprep.subr.mxu0 %v4585
    %4989 = vmatpush1.msra.mxu0 %v4583
    %4990 = vmatprep.subr.mxu0 %v4142
    %4991 = vmatpush1.msra.mxu0 %v4144
    %4992 = vmatprep.subr.mxu0 %v4833
    %4993 = vmatpush1.msra.mxu0 %v4832
    %4994 = vmatprep.subr.mxu0 %v4627
    %4995 = vmatpush1.msra.mxu0 %v4625
    %4996 = vmatprep.subr.mxu0 %v4214
    %4997 = vmatpush1.msra.mxu0 %v4216
    %4998 = vmatprep.subr.mxu0 %v4839
    %4999 = vmatpush1.msra.mxu0 %v4838
    %5000 = vmatprep.subr.mxu0 %v4669
    %5001 = vmatpush1.msra.mxu0 %v4667
    %5002 = vmatprep.subr.mxu0 %v4286
    %5003 = vmatpush1.msra.mxu0 %v4288
    %5004 = vmatprep.subr.mxu0 %v4845
    %5005 = vmatpush1.msra.mxu0 %v4844
    %5006 = vmatprep.subr.mxu0 %v4711
    %5007 = vmatpush1.msra.mxu0 %v4709
    %5008 = vmatprep.subr.mxu0 %v4358
    %5009 = vmatpush1.msra.mxu0 %v4360
    %5010 = vmatprep.subr.mxu0 %v4851
    %5011 = vmatpush1.msra.mxu0 %v4850
    %5012 = vmatprep.subr.mxu0 %v4753
    %5013 = vmatpush1.msra.mxu0 %v4751
    %5014 = vmatprep.subr.mxu0 %v4430
    %5015 = vmatpush1.msra.mxu0 %v4432
    %5016 = vmatprep.subr.mxu0 %v4857
    %5017 = vmatpush1.msra.mxu0 %v4856
    %5018 = vmatprep.subr.mxu0 %v4795
    %5019 = vmatpush1.msra.mxu0 %v4793
    %5020 = vmatprep.subr.mxu0 0.0
    %5021 = vmatpush1.msra.mxu0 0.0
    %5022 = vmatprep.subr.mxu0 0.0
    %5023 = vmatpush1.msra.mxu0 0.0
    %5024 = vmatprep.subr.mxu0 0.0
    %5025 = vmatpush1.msra.mxu0 0.0
    %5026 = vmatprep.subr.mxu0 0.0
    %5027 = vmatpush1.msra.mxu0 0.0
    %5028 = vmatprep.subr.mxu0 0.0
    %5029 = vmatpush1.msra.mxu0 0.0
    %5030 = vmatprep.subr.mxu0 0.0
    %5031 = vmatpush1.msra.mxu0 0.0
    %5032 = vmatprep.subr.mxu0 0.0
    %5033 = vmatpush1.msra.mxu0 0.0
    %5034 = vmatprep.subr.mxu0 0.0
    %5035 = vmatpush1.msra.mxu0 0.0
    %5036 = vmatprep.mubr.f32.mxu0 %v4883
    %5037 = vmatmul.mubr.f32.gmra.mrb[0].mxu0 %v4861
    %v5038 = vpop.f32.mrb[0].mxu0
    %v5039 = vadd.f32 %v4870, %v5038
    %v5040 = vpop.f32.mrb[0].mxu0
    %v5041 = vadd.f32 %v4870, %v5040
    %5042 = vmatprep.mubr.f32.mxu0 %v4885
    %5043 = vmatmul.mubr.f32.gmra.mrb[0].mxu0 %v4863
    %v5044 = vpop.f32.mrb[0].mxu0
    %v5045 = vadd.f32 %v4875, %v5044
    %v5046 = vpop.f32.mrb[0].mxu0
    %v5047 = vadd.f32 %v4875, %v5046
    %5048 = vmatprep.mubr.f32.mxu0 %v4887
    %5049 = vmatmul.mubr.f32.gmra.mrb[0].mxu0 %v4865
    %v5050 = vpop.f32.mrb[0].mxu0
    %v5051 = vadd.f32 %v4880, %v5050
    %v5052 = vpop.f32.mrb[0].mxu0
    %v5053 = vadd.f32 %v4880, %v5052
    %5054 = vdwg.mxu0
    %5055 = vmatprep.subr.mxu0 %v3924
    %5056 = vmatpush1.msra.mxu0 %v3926
    %5057 = vmatprep.subr.mxu0 %v4817
    %5058 = vmatpush1.msra.mxu0 %v4816
    %5059 = vmatprep.subr.mxu0 %v4505
    %5060 = vmatpush1.msra.mxu0 %v4503
    %5061 = vmatprep.subr.mxu0 %v4006
    %5062 = vmatpush1.msra.mxu0 %v3996
    %5063 = vmatprep.subr.mxu0 %v4823
    %5064 = vmatpush1.msra.mxu0 %v4822
    %5065 = vmatprep.subr.mxu0 %v4547
    %5066 = vmatpush1.msra.mxu0 %v4545
    %5067 = vmatprep.subr.mxu0 %v4078
    %5068 = vmatpush1.msra.mxu0 %v4068
    %5069 = vmatprep.subr.mxu0 %v4829
    %5070 = vmatpush1.msra.mxu0 %v4828
    %5071 = vmatprep.subr.mxu0 %v4589
    %5072 = vmatpush1.msra.mxu0 %v4587
    %5073 = vmatprep.subr.mxu0 %v4150
    %5074 = vmatpush1.msra.mxu0 %v4140
    %5075 = vmatprep.subr.mxu0 %v4835
    %5076 = vmatpush1.msra.mxu0 %v4834
    %5077 = vmatprep.subr.mxu0 %v4631
    %5078 = vmatpush1.msra.mxu0 %v4629
    %5079 = vmatprep.subr.mxu0 %v4222
    %5080 = vmatpush1.msra.mxu0 %v4212
    %5081 = vmatprep.subr.mxu0 %v4841
    %5082 = vmatpush1.msra.mxu0 %v4840
    %5083 = vmatprep.subr.mxu0 %v4673
    %5084 = vmatpush1.msra.mxu0 %v4671
    %5085 = vmatprep.subr.mxu0 %v4294
    %5086 = vmatpush1.msra.mxu0 %v4284
    %5087 = vmatprep.subr.mxu0 %v4847
    %5088 = vmatpush1.msra.mxu0 %v4846
    %5089 = vmatprep.subr.mxu0 %v4715
    %5090 = vmatpush1.msra.mxu0 %v4713
    %5091 = vmatprep.subr.mxu0 %v4366
    %5092 = vmatpush1.msra.mxu0 %v4356
    %5093 = vmatprep.subr.mxu0 %v4853
    %5094 = vmatpush1.msra.mxu0 %v4852
    %5095 = vmatprep.subr.mxu0 %v4757
    %5096 = vmatpush1.msra.mxu0 %v4755
    %5097 = vmatprep.subr.mxu0 %v4438
    %5098 = vmatpush1.msra.mxu0 %v4428
    %5099 = vmatprep.subr.mxu0 %v4859
    %5100 = vmatpush1.msra.mxu0 %v4858
    %5101 = vmatprep.subr.mxu0 %v4799
    %5102 = vmatpush1.msra.mxu0 %v4797
    %5103 = vmatprep.subr.mxu0 0.0
    %5104 = vmatpush1.msra.mxu0 0.0
    %5105 = vmatprep.subr.mxu0 0.0
    %5106 = vmatpush1.msra.mxu0 0.0
    %5107 = vmatprep.subr.mxu0 0.0
    %5108 = vmatpush1.msra.mxu0 0.0
    %5109 = vmatprep.subr.mxu0 0.0
    %5110 = vmatpush1.msra.mxu0 0.0
    %5111 = vmatprep.subr.mxu0 0.0
    %5112 = vmatpush1.msra.mxu0 0.0
    %5113 = vmatprep.subr.mxu0 0.0
    %5114 = vmatpush1.msra.mxu0 0.0
    %5115 = vmatprep.subr.mxu0 0.0
    %5116 = vmatpush1.msra.mxu0 0.0
    %5117 = vmatprep.subr.mxu0 0.0
    %5118 = vmatpush1.msra.mxu0 0.0
    %5119 = vmatprep.mubr.f32.mxu0 %v4883
    %5120 = vmatmul.mubr.f32.gmra.mrb[0].mxu0 %v4861
    %v5121 = vpop.f32.mrb[0].mxu0
    %v5122 = vadd.f32 %v4870, %v5121
    %v5123 = vpop.f32.mrb[0].mxu0
    %v5124 = vadd.f32 %v4870, %v5123
    %5125 = vmatprep.mubr.f32.mxu0 %v4885
    %5126 = vmatmul.mubr.f32.gmra.mrb[0].mxu0 %v4863
    %v5127 = vpop.f32.mrb[0].mxu0
    %v5128 = vadd.f32 %v4875, %v5127
    %v5129 = vpop.f32.mrb[0].mxu0
    %v5130 = vadd.f32 %v4875, %v5129
    %5131 = vmatprep.mubr.f32.mxu0 %v4887
    %5132 = vmatmul.mubr.f32.gmra.mrb[0].mxu0 %v4865
    %v5133 = vpop.f32.mrb[0].mxu0
    %v5134 = vadd.f32 %v4880, %v5133
    %v5135 = vpop.f32.mrb[0].mxu0
    %v5136 = vadd.f32 %v4880, %v5135
    %5137 = vdwg.mxu0
    %v5138 = vmax.f32 %v4956, 0.0
    %v5139 = vmax.f32 %v4958, 0.0
    %v5140 = vmax.f32 %v5039, 0.0
    %v5141 = vmax.f32 %v5041, 0.0
    %v5142 = vmax.f32 %v5122, 0.0
    %v5143 = vmax.f32 %v5124, 0.0
    %v5144 = vmax.f32 %v4962, 0.0
    %v5145 = vmax.f32 %v4964, 0.0
    %v5146 = vmax.f32 %v5045, 0.0
    %v5147 = vmax.f32 %v5047, 0.0
    %v5148 = vmax.f32 %v5128, 0.0
    %v5149 = vmax.f32 %v5130, 0.0
    %v5150 = vmax.f32 %v4968, 0.0
    %v5151 = vmax.f32 %v4970, 0.0
    %v5152 = vmax.f32 %v5051, 0.0
    %v5153 = vmax.f32 %v5053, 0.0
    %v5154 = vmax.f32 %v5134, 0.0
    %v5155 = vmax.f32 %v5136, 0.0
    %v5156 = vlaneseq
    %v5157 = vshrl.u32 %v5156, 7
    %v5158 = vsub.s32 2, %v5157
    %v5159 = vrot.slane %v29, %v5158
    %v5160 = vlaneseq
    %v5161 = vshrl.u32 %v5160, 7
    %v5162 = vsub.s32 6, %v5161
    %v5163 = vrot.slane %v29, %v5162
    %v5164 = vlaneseq
    %v5165 = vshrl.u32 %v5164, 7
    %v5166 = vsub.s32 2, %v5165
    %v5167 = vrot.slane %v30, %v5166
    %v5168 = vlaneseq
    %v5169 = vshrl.u32 %v5168, 7
    %v5170 = vsub.s32 6, %v5169
    %v5171 = vrot.slane %v30, %v5170
    %v5172 = vlaneseq
    %v5173 = vshrl.u32 %v5172, 7
    %v5174 = vsub.s32 2, %v5173
    %v5175 = vrot.slane %v31, %v5174
    %v5176 = vlaneseq
    %v5177 = vshrl.u32 %v5176, 7
    %v5178 = vsub.s32 6, %v5177
    %v5179 = vrot.slane %v31, %v5178
    %v5186 = vlaneseq
    %v5187 = vshrl.u32 %v5186, 7
    %v5188 = vsub.s32 2, %v5187
    %v5189 = vrot.slane %v5159, %v5188
    %v5190 = vlaneseq
    %v5191 = vshrl.u32 %v5190, 7
    %v5192 = vsub.s32 2, %v5191
    %v5193 = vrot.slane %v5163, %v5192
    %v5194 = vlaneseq
    %v5195 = vshrl.u32 %v5194, 7
    %v5196 = vsub.s32 2, %v5195
    %v5197 = vrot.slane %v5167, %v5196
    %v5198 = vlaneseq
    %v5199 = vshrl.u32 %v5198, 7
    %v5200 = vsub.s32 2, %v5199
    %v5201 = vrot.slane %v5171, %v5200
    %v5202 = vlaneseq
    %v5203 = vshrl.u32 %v5202, 7
    %v5204 = vsub.s32 2, %v5203
    %v5205 = vrot.slane %v5175, %v5204
    %v5206 = vlaneseq
    %v5207 = vshrl.u32 %v5206, 7
    %v5208 = vsub.s32 2, %v5207
    %v5209 = vrot.slane %v5179, %v5208
    %v5210 = vmul.f32 %v5138, %v5189
    %v5211 = vmul.f32 %v5139, %v5193
    %v5212 = vmul.f32 %v5140, %v5197
    %v5213 = vmul.f32 %v5141, %v5201
    %v5214 = vmul.f32 %v5142, %v5205
    %v5215 = vmul.f32 %v5143, %v5209
    %v5216 = vmul.f32 %v5144, %v5189
    %v5217 = vmul.f32 %v5145, %v5193
    %v5218 = vmul.f32 %v5146, %v5197
    %v5219 = vmul.f32 %v5147, %v5201
    %v5220 = vmul.f32 %v5148, %v5205
    %v5221 = vmul.f32 %v5149, %v5209
    %v5222 = vmul.f32 %v5150, %v5189
    %v5223 = vmul.f32 %v5151, %v5193
    %v5224 = vmul.f32 %v5152, %v5197
    %v5225 = vmul.f32 %v5153, %v5201
    %v5226 = vmul.f32 %v5154, %v5205
    %v5227 = vmul.f32 %v5155, %v5209
    %5228 = vrot.lane.b32.xlu0 %v5210, 38
    %v5229 = vpop.permute.xlu0 %5228
    %5230 = vrot.lane.b32.xlu0 %v5216, 38
    %v5231 = vpop.permute.xlu0 %5230
    %5232 = vrot.lane.b32.xlu0 %v5222, 38
    %v5233 = vpop.permute.xlu0 %5232
    %5234 = vrot.lane.b32.xlu0 %v5211, 38
    %v5235 = vpop.permute.xlu0 %5234
    %5236 = vrot.lane.b32.xlu0 %v5217, 38
    %v5237 = vpop.permute.xlu0 %5236
    %5238 = vrot.lane.b32.xlu0 %v5223, 38
    %v5239 = vpop.permute.xlu0 %5238
    %5240 = vrot.lane.b32.xlu0 %v5212, 38
    %v5241 = vpop.permute.xlu0 %5240
    %5242 = vrot.lane.b32.xlu0 %v5218, 38
    %v5243 = vpop.permute.xlu0 %5242
    %5244 = vrot.lane.b32.xlu0 %v5224, 38
    %v5245 = vpop.permute.xlu0 %5244
    %5246 = vrot.lane.b32.xlu0 %v5213, 38
    %v5247 = vpop.permute.xlu0 %5246
    %5248 = vrot.lane.b32.xlu0 %v5219, 38
    %v5249 = vpop.permute.xlu0 %5248
    %5250 = vrot.lane.b32.xlu0 %v5225, 38
    %v5251 = vpop.permute.xlu0 %5250
    %5252 = vrot.lane.b32.xlu0 %v5214, 38
    %v5253 = vpop.permute.xlu0 %5252
    %5254 = vrot.lane.b32.xlu0 %v5220, 38
    %v5255 = vpop.permute.xlu0 %5254
    %5256 = vrot.lane.b32.xlu0 %v5226, 38
    %v5257 = vpop.permute.xlu0 %5256
    %5258 = vrot.lane.b32.xlu0 %v5215, 38
    %v5259 = vpop.permute.xlu0 %5258
    %5260 = vrot.lane.b32.xlu0 %v5221, 38
    %v5261 = vpop.permute.xlu0 %5260
    %5262 = vrot.lane.b32.xlu0 %v5227, 38
    %v5263 = vpop.permute.xlu0 %5262
    %vm5264 = vcmp.lt.s32.totalorder %v76, 38
    %v5265 = vsel %vm5264, %v5253, %v5259
    %v5266 = vsel %vm5264, %v5255, %v5261
    %v5267 = vsel %vm5264, %v5257, %v5263
    %v5268 = vsel %vm5264, %v5247, %v5253
    %v5269 = vsel %vm5264, %v5249, %v5255
    %v5270 = vsel %vm5264, %v5251, %v5257
    %v5271 = vsel %vm5264, %v5241, %v5247
    %v5272 = vsel %vm5264, %v5243, %v5249
    %v5273 = vsel %vm5264, %v5245, %v5251
    %v5274 = vsel %vm5264, %v5235, %v5241
    %v5275 = vsel %vm5264, %v5237, %v5243
    %v5276 = vsel %vm5264, %v5239, %v5245
    %v5277 = vsel %vm5264, %v5229, %v5235
    %v5278 = vsel %vm5264, %v5231, %v5237
    %v5279 = vsel %vm5264, %v5233, %v5239
    %v5280 = vsel %vm5264, %v5259, %v5229
    %v5281 = vsel %vm5264, %v5261, %v5231
    %v5282 = vsel %vm5264, %v5263, %v5233
    %5283 = vrot.lane.b32.xlu0 %v5280, 127
    %v5284 = vpop.permute.xlu0 %5283
    %5285 = vrot.lane.b32.xlu0 %v5281, 127
    %v5286 = vpop.permute.xlu0 %5285
    %5287 = vrot.lane.b32.xlu0 %v5282, 127
    %v5288 = vpop.permute.xlu0 %5287
    %5289 = vrot.lane.b32.xlu0 %v5277, 127
    %v5290 = vpop.permute.xlu0 %5289
    %5291 = vrot.lane.b32.xlu0 %v5278, 127
    %v5292 = vpop.permute.xlu0 %5291
    %5293 = vrot.lane.b32.xlu0 %v5279, 127
    %v5294 = vpop.permute.xlu0 %5293
    %5295 = vrot.lane.b32.xlu0 %v5274, 127
    %v5296 = vpop.permute.xlu0 %5295
    %5297 = vrot.lane.b32.xlu0 %v5275, 127
    %v5298 = vpop.permute.xlu0 %5297
    %5299 = vrot.lane.b32.xlu0 %v5276, 127
    %v5300 = vpop.permute.xlu0 %5299
    %5301 = vrot.lane.b32.xlu0 %v5271, 127
    %v5302 = vpop.permute.xlu0 %5301
    %5303 = vrot.lane.b32.xlu0 %v5272, 127
    %v5304 = vpop.permute.xlu0 %5303
    %5305 = vrot.lane.b32.xlu0 %v5273, 127
    %v5306 = vpop.permute.xlu0 %5305
    %5307 = vrot.lane.b32.xlu0 %v5268, 127
    %v5308 = vpop.permute.xlu0 %5307
    %5309 = vrot.lane.b32.xlu0 %v5269, 127
    %v5310 = vpop.permute.xlu0 %5309
    %5311 = vrot.lane.b32.xlu0 %v5270, 127
    %v5312 = vpop.permute.xlu0 %5311
    %5313 = vrot.lane.b32.xlu0 %v5265, 127
    %v5314 = vpop.permute.xlu0 %5313
    %5315 = vrot.lane.b32.xlu0 %v5266, 127
    %v5316 = vpop.permute.xlu0 %5315
    %5317 = vrot.lane.b32.xlu0 %v5267, 127
    %v5318 = vpop.permute.xlu0 %5317
    %v5319 = vsel %vm77, %v5308, %v5314
    %v5320 = vsel %vm77, %v5310, %v5316
    %v5321 = vsel %vm77, %v5312, %v5318
    %v5322 = vsel %vm77, %v5302, %v5308
    %v5323 = vsel %vm77, %v5304, %v5310
    %v5324 = vsel %vm77, %v5306, %v5312
    %v5325 = vsel %vm77, %v5296, %v5302
    %v5326 = vsel %vm77, %v5298, %v5304
    %v5327 = vsel %vm77, %v5300, %v5306
    %v5328 = vsel %vm77, %v5290, %v5296
    %v5329 = vsel %vm77, %v5292, %v5298
    %v5330 = vsel %vm77, %v5294, %v5300
    %v5331 = vsel %vm77, %v5284, %v5290
    %v5332 = vsel %vm77, %v5286, %v5292
    %v5333 = vsel %vm77, %v5288, %v5294
    %v5334 = vsel %vm77, %v5314, %v5284
    %v5335 = vsel %vm77, %v5316, %v5286
    %v5336 = vsel %vm77, %v5318, %v5288
    %5337 = vrot.lane.b32.xlu0 %v5280, 126
    %v5338 = vpop.permute.xlu0 %5337
    %5339 = vrot.lane.b32.xlu0 %v5281, 126
    %v5340 = vpop.permute.xlu0 %5339
    %5341 = vrot.lane.b32.xlu0 %v5282, 126
    %v5342 = vpop.permute.xlu0 %5341
    %5343 = vrot.lane.b32.xlu0 %v5277, 126
    %v5344 = vpop.permute.xlu0 %5343
    %5345 = vrot.lane.b32.xlu0 %v5278, 126
    %v5346 = vpop.permute.xlu0 %5345
    %5347 = vrot.lane.b32.xlu0 %v5279, 126
    %v5348 = vpop.permute.xlu0 %5347
    %5349 = vrot.lane.b32.xlu0 %v5274, 126
    %v5350 = vpop.permute.xlu0 %5349
    %5351 = vrot.lane.b32.xlu0 %v5275, 126
    %v5352 = vpop.permute.xlu0 %5351
    %5353 = vrot.lane.b32.xlu0 %v5276, 126
    %v5354 = vpop.permute.xlu0 %5353
    %5355 = vrot.lane.b32.xlu0 %v5271, 126
    %v5356 = vpop.permute.xlu0 %5355
    %5357 = vrot.lane.b32.xlu0 %v5272, 126
    %v5358 = vpop.permute.xlu0 %5357
    %5359 = vrot.lane.b32.xlu0 %v5273, 126
    %v5360 = vpop.permute.xlu0 %5359
    %5361 = vrot.lane.b32.xlu0 %v5268, 126
    %v5362 = vpop.permute.xlu0 %5361
    %5363 = vrot.lane.b32.xlu0 %v5269, 126
    %v5364 = vpop.permute.xlu0 %5363
    %5365 = vrot.lane.b32.xlu0 %v5270, 126
    %v5366 = vpop.permute.xlu0 %5365
    %5367 = vrot.lane.b32.xlu0 %v5265, 126
    %v5368 = vpop.permute.xlu0 %5367
    %5369 = vrot.lane.b32.xlu0 %v5266, 126
    %v5370 = vpop.permute.xlu0 %5369
    %5371 = vrot.lane.b32.xlu0 %v5267, 126
    %v5372 = vpop.permute.xlu0 %5371
    %v5373 = vsel %vm96, %v5362, %v5368
    %v5374 = vsel %vm96, %v5364, %v5370
    %v5375 = vsel %vm96, %v5366, %v5372
    %v5376 = vsel %vm96, %v5356, %v5362
    %v5377 = vsel %vm96, %v5358, %v5364
    %v5378 = vsel %vm96, %v5360, %v5366
    %v5379 = vsel %vm96, %v5350, %v5356
    %v5380 = vsel %vm96, %v5352, %v5358
    %v5381 = vsel %vm96, %v5354, %v5360
    %v5382 = vsel %vm96, %v5344, %v5350
    %v5383 = vsel %vm96, %v5346, %v5352
    %v5384 = vsel %vm96, %v5348, %v5354
    %v5385 = vsel %vm96, %v5338, %v5344
    %v5386 = vsel %vm96, %v5340, %v5346
    %v5387 = vsel %vm96, %v5342, %v5348
    %v5388 = vsel %vm96, %v5368, %v5338
    %v5389 = vsel %vm96, %v5370, %v5340
    %v5390 = vsel %vm96, %v5372, %v5342
    %5391 = vrot.lane.b32.xlu0 %v5280, 110
    %v5392 = vpop.permute.xlu0 %5391
    %5393 = vrot.lane.b32.xlu0 %v5281, 110
    %v5394 = vpop.permute.xlu0 %5393
    %5395 = vrot.lane.b32.xlu0 %v5282, 110
    %v5396 = vpop.permute.xlu0 %5395
    %5397 = vrot.lane.b32.xlu0 %v5277, 110
    %v5398 = vpop.permute.xlu0 %5397
    %5399 = vrot.lane.b32.xlu0 %v5278, 110
    %v5400 = vpop.permute.xlu0 %5399
    %5401 = vrot.lane.b32.xlu0 %v5279, 110
    %v5402 = vpop.permute.xlu0 %5401
    %5403 = vrot.lane.b32.xlu0 %v5274, 110
    %v5404 = vpop.permute.xlu0 %5403
    %5405 = vrot.lane.b32.xlu0 %v5275, 110
    %v5406 = vpop.permute.xlu0 %5405
    %5407 = vrot.lane.b32.xlu0 %v5276, 110
    %v5408 = vpop.permute.xlu0 %5407
    %5409 = vrot.lane.b32.xlu0 %v5271, 110
    %v5410 = vpop.permute.xlu0 %5409
    %5411 = vrot.lane.b32.xlu0 %v5272, 110
    %v5412 = vpop.permute.xlu0 %5411
    %5413 = vrot.lane.b32.xlu0 %v5273, 110
    %v5414 = vpop.permute.xlu0 %5413
    %5415 = vrot.lane.b32.xlu0 %v5268, 110
    %v5416 = vpop.permute.xlu0 %5415
    %5417 = vrot.lane.b32.xlu0 %v5269, 110
    %v5418 = vpop.permute.xlu0 %5417
    %5419 = vrot.lane.b32.xlu0 %v5270, 110
    %v5420 = vpop.permute.xlu0 %5419
    %5421 = vrot.lane.b32.xlu0 %v5265, 110
    %v5422 = vpop.permute.xlu0 %5421
    %5423 = vrot.lane.b32.xlu0 %v5266, 110
    %v5424 = vpop.permute.xlu0 %5423
    %5425 = vrot.lane.b32.xlu0 %v5267, 110
    %v5426 = vpop.permute.xlu0 %5425
    %v5427 = vsel %vm115, %v5416, %v5422
    %v5428 = vsel %vm115, %v5418, %v5424
    %v5429 = vsel %vm115, %v5420, %v5426
    %v5430 = vsel %vm115, %v5410, %v5416
    %v5431 = vsel %vm115, %v5412, %v5418
    %v5432 = vsel %vm115, %v5414, %v5420
    %v5433 = vsel %vm115, %v5404, %v5410
    %v5434 = vsel %vm115, %v5406, %v5412
    %v5435 = vsel %vm115, %v5408, %v5414
    %v5436 = vsel %vm115, %v5398, %v5404
    %v5437 = vsel %vm115, %v5400, %v5406
    %v5438 = vsel %vm115, %v5402, %v5408
    %v5439 = vsel %vm115, %v5392, %v5398
    %v5440 = vsel %vm115, %v5394, %v5400
    %v5441 = vsel %vm115, %v5396, %v5402
    %v5442 = vsel %vm115, %v5422, %v5392
    %v5443 = vsel %vm115, %v5424, %v5394
    %v5444 = vsel %vm115, %v5426, %v5396
    %5445 = vrot.lane.b32.xlu0 %v5280, 109
    %v5446 = vpop.permute.xlu0 %5445
    %5447 = vrot.lane.b32.xlu0 %v5281, 109
    %v5448 = vpop.permute.xlu0 %5447
    %5449 = vrot.lane.b32.xlu0 %v5282, 109
    %v5450 = vpop.permute.xlu0 %5449
    %5451 = vrot.lane.b32.xlu0 %v5277, 109
    %v5452 = vpop.permute.xlu0 %5451
    %5453 = vrot.lane.b32.xlu0 %v5278, 109
    %v5454 = vpop.permute.xlu0 %5453
    %5455 = vrot.lane.b32.xlu0 %v5279, 109
    %v5456 = vpop.permute.xlu0 %5455
    %5457 = vrot.lane.b32.xlu0 %v5274, 109
    %v5458 = vpop.permute.xlu0 %5457
    %5459 = vrot.lane.b32.xlu0 %v5275, 109
    %v5460 = vpop.permute.xlu0 %5459
    %5461 = vrot.lane.b32.xlu0 %v5276, 109
    %v5462 = vpop.permute.xlu0 %5461
    %5463 = vrot.lane.b32.xlu0 %v5271, 109
    %v5464 = vpop.permute.xlu0 %5463
    %5465 = vrot.lane.b32.xlu0 %v5272, 109
    %v5466 = vpop.permute.xlu0 %5465
    %5467 = vrot.lane.b32.xlu0 %v5273, 109
    %v5468 = vpop.permute.xlu0 %5467
    %5469 = vrot.lane.b32.xlu0 %v5268, 109
    %v5470 = vpop.permute.xlu0 %5469
    %5471 = vrot.lane.b32.xlu0 %v5269, 109
    %v5472 = vpop.permute.xlu0 %5471
    %5473 = vrot.lane.b32.xlu0 %v5270, 109
    %v5474 = vpop.permute.xlu0 %5473
    %5475 = vrot.lane.b32.xlu0 %v5265, 109
    %v5476 = vpop.permute.xlu0 %5475
    %5477 = vrot.lane.b32.xlu0 %v5266, 109
    %v5478 = vpop.permute.xlu0 %5477
    %5479 = vrot.lane.b32.xlu0 %v5267, 109
    %v5480 = vpop.permute.xlu0 %5479
    %v5481 = vsel %vm134, %v5470, %v5476
    %v5482 = vsel %vm134, %v5472, %v5478
    %v5483 = vsel %vm134, %v5474, %v5480
    %v5484 = vsel %vm134, %v5464, %v5470
    %v5485 = vsel %vm134, %v5466, %v5472
    %v5486 = vsel %vm134, %v5468, %v5474
    %v5487 = vsel %vm134, %v5458, %v5464
    %v5488 = vsel %vm134, %v5460, %v5466
    %v5489 = vsel %vm134, %v5462, %v5468
    %v5490 = vsel %vm134, %v5452, %v5458
    %v5491 = vsel %vm134, %v5454, %v5460
    %v5492 = vsel %vm134, %v5456, %v5462
    %v5493 = vsel %vm134, %v5446, %v5452
    %v5494 = vsel %vm134, %v5448, %v5454
    %v5495 = vsel %vm134, %v5450, %v5456
    %v5496 = vsel %vm134, %v5476, %v5446
    %v5497 = vsel %vm134, %v5478, %v5448
    %v5498 = vsel %vm134, %v5480, %v5450
    %5499 = vrot.lane.b32.xlu0 %v5280, 108
    %v5500 = vpop.permute.xlu0 %5499
    %5501 = vrot.lane.b32.xlu0 %v5281, 108
    %v5502 = vpop.permute.xlu0 %5501
    %5503 = vrot.lane.b32.xlu0 %v5282, 108
    %v5504 = vpop.permute.xlu0 %5503
    %5505 = vrot.lane.b32.xlu0 %v5277, 108
    %v5506 = vpop.permute.xlu0 %5505
    %5507 = vrot.lane.b32.xlu0 %v5278, 108
    %v5508 = vpop.permute.xlu0 %5507
    %5509 = vrot.lane.b32.xlu0 %v5279, 108
    %v5510 = vpop.permute.xlu0 %5509
    %5511 = vrot.lane.b32.xlu0 %v5274, 108
    %v5512 = vpop.permute.xlu0 %5511
    %5513 = vrot.lane.b32.xlu0 %v5275, 108
    %v5514 = vpop.permute.xlu0 %5513
    %5515 = vrot.lane.b32.xlu0 %v5276, 108
    %v5516 = vpop.permute.xlu0 %5515
    %5517 = vrot.lane.b32.xlu0 %v5271, 108
    %v5518 = vpop.permute.xlu0 %5517
    %5519 = vrot.lane.b32.xlu0 %v5272, 108
    %v5520 = vpop.permute.xlu0 %5519
    %5521 = vrot.lane.b32.xlu0 %v5273, 108
    %v5522 = vpop.permute.xlu0 %5521
    %5523 = vrot.lane.b32.xlu0 %v5268, 108
    %v5524 = vpop.permute.xlu0 %5523
    %5525 = vrot.lane.b32.xlu0 %v5269, 108
    %v5526 = vpop.permute.xlu0 %5525
    %5527 = vrot.lane.b32.xlu0 %v5270, 108
    %v5528 = vpop.permute.xlu0 %5527
    %5529 = vrot.lane.b32.xlu0 %v5265, 108
    %v5530 = vpop.permute.xlu0 %5529
    %5531 = vrot.lane.b32.xlu0 %v5266, 108
    %v5532 = vpop.permute.xlu0 %5531
    %5533 = vrot.lane.b32.xlu0 %v5267, 108
    %v5534 = vpop.permute.xlu0 %5533
    %v5535 = vsel %vm153, %v5524, %v5530
    %v5536 = vsel %vm153, %v5526, %v5532
    %v5537 = vsel %vm153, %v5528, %v5534
    %v5538 = vsel %vm153, %v5518, %v5524
    %v5539 = vsel %vm153, %v5520, %v5526
    %v5540 = vsel %vm153, %v5522, %v5528
    %v5541 = vsel %vm153, %v5512, %v5518
    %v5542 = vsel %vm153, %v5514, %v5520
    %v5543 = vsel %vm153, %v5516, %v5522
    %v5544 = vsel %vm153, %v5506, %v5512
    %v5545 = vsel %vm153, %v5508, %v5514
    %v5546 = vsel %vm153, %v5510, %v5516
    %v5547 = vsel %vm153, %v5500, %v5506
    %v5548 = vsel %vm153, %v5502, %v5508
    %v5549 = vsel %vm153, %v5504, %v5510
    %v5550 = vsel %vm153, %v5530, %v5500
    %v5551 = vsel %vm153, %v5532, %v5502
    %v5552 = vsel %vm153, %v5534, %v5504
    %5553 = vrot.lane.b32.xlu0 %v5280, 92
    %v5554 = vpop.permute.xlu0 %5553
    %5555 = vrot.lane.b32.xlu0 %v5281, 92
    %v5556 = vpop.permute.xlu0 %5555
    %5557 = vrot.lane.b32.xlu0 %v5282, 92
    %v5558 = vpop.permute.xlu0 %5557
    %5559 = vrot.lane.b32.xlu0 %v5277, 92
    %v5560 = vpop.permute.xlu0 %5559
    %5561 = vrot.lane.b32.xlu0 %v5278, 92
    %v5562 = vpop.permute.xlu0 %5561
    %5563 = vrot.lane.b32.xlu0 %v5279, 92
    %v5564 = vpop.permute.xlu0 %5563
    %5565 = vrot.lane.b32.xlu0 %v5274, 92
    %v5566 = vpop.permute.xlu0 %5565
    %5567 = vrot.lane.b32.xlu0 %v5275, 92
    %v5568 = vpop.permute.xlu0 %5567
    %5569 = vrot.lane.b32.xlu0 %v5276, 92
    %v5570 = vpop.permute.xlu0 %5569
    %5571 = vrot.lane.b32.xlu0 %v5271, 92
    %v5572 = vpop.permute.xlu0 %5571
    %5573 = vrot.lane.b32.xlu0 %v5272, 92
    %v5574 = vpop.permute.xlu0 %5573
    %5575 = vrot.lane.b32.xlu0 %v5273, 92
    %v5576 = vpop.permute.xlu0 %5575
    %5577 = vrot.lane.b32.xlu0 %v5268, 92
    %v5578 = vpop.permute.xlu0 %5577
    %5579 = vrot.lane.b32.xlu0 %v5269, 92
    %v5580 = vpop.permute.xlu0 %5579
    %5581 = vrot.lane.b32.xlu0 %v5270, 92
    %v5582 = vpop.permute.xlu0 %5581
    %5583 = vrot.lane.b32.xlu0 %v5265, 92
    %v5584 = vpop.permute.xlu0 %5583
    %5585 = vrot.lane.b32.xlu0 %v5266, 92
    %v5586 = vpop.permute.xlu0 %5585
    %5587 = vrot.lane.b32.xlu0 %v5267, 92
    %v5588 = vpop.permute.xlu0 %5587
    %v5589 = vsel %vm172, %v5578, %v5584
    %v5590 = vsel %vm172, %v5580, %v5586
    %v5591 = vsel %vm172, %v5582, %v5588
    %v5592 = vsel %vm172, %v5572, %v5578
    %v5593 = vsel %vm172, %v5574, %v5580
    %v5594 = vsel %vm172, %v5576, %v5582
    %v5595 = vsel %vm172, %v5566, %v5572
    %v5596 = vsel %vm172, %v5568, %v5574
    %v5597 = vsel %vm172, %v5570, %v5576
    %v5598 = vsel %vm172, %v5560, %v5566
    %v5599 = vsel %vm172, %v5562, %v5568
    %v5600 = vsel %vm172, %v5564, %v5570
    %v5601 = vsel %vm172, %v5554, %v5560
    %v5602 = vsel %vm172, %v5556, %v5562
    %v5603 = vsel %vm172, %v5558, %v5564
    %v5604 = vsel %vm172, %v5584, %v5554
    %v5605 = vsel %vm172, %v5586, %v5556
    %v5606 = vsel %vm172, %v5588, %v5558
    %5607 = vrot.lane.b32.xlu0 %v5280, 91
    %v5608 = vpop.permute.xlu0 %5607
    %5609 = vrot.lane.b32.xlu0 %v5281, 91
    %v5610 = vpop.permute.xlu0 %5609
    %5611 = vrot.lane.b32.xlu0 %v5282, 91
    %v5612 = vpop.permute.xlu0 %5611
    %5613 = vrot.lane.b32.xlu0 %v5277, 91
    %v5614 = vpop.permute.xlu0 %5613
    %5615 = vrot.lane.b32.xlu0 %v5278, 91
    %v5616 = vpop.permute.xlu0 %5615
    %5617 = vrot.lane.b32.xlu0 %v5279, 91
    %v5618 = vpop.permute.xlu0 %5617
    %5619 = vrot.lane.b32.xlu0 %v5274, 91
    %v5620 = vpop.permute.xlu0 %5619
    %5621 = vrot.lane.b32.xlu0 %v5275, 91
    %v5622 = vpop.permute.xlu0 %5621
    %5623 = vrot.lane.b32.xlu0 %v5276, 91
    %v5624 = vpop.permute.xlu0 %5623
    %5625 = vrot.lane.b32.xlu0 %v5271, 91
    %v5626 = vpop.permute.xlu0 %5625
    %5627 = vrot.lane.b32.xlu0 %v5272, 91
    %v5628 = vpop.permute.xlu0 %5627
    %5629 = vrot.lane.b32.xlu0 %v5273, 91
    %v5630 = vpop.permute.xlu0 %5629
    %5631 = vrot.lane.b32.xlu0 %v5268, 91
    %v5632 = vpop.permute.xlu0 %5631
    %5633 = vrot.lane.b32.xlu0 %v5269, 91
    %v5634 = vpop.permute.xlu0 %5633
    %5635 = vrot.lane.b32.xlu0 %v5270, 91
    %v5636 = vpop.permute.xlu0 %5635
    %5637 = vrot.lane.b32.xlu0 %v5265, 91
    %v5638 = vpop.permute.xlu0 %5637
    %5639 = vrot.lane.b32.xlu0 %v5266, 91
    %v5640 = vpop.permute.xlu0 %5639
    %5641 = vrot.lane.b32.xlu0 %v5267, 91
    %v5642 = vpop.permute.xlu0 %5641
    %v5643 = vsel %vm191, %v5632, %v5638
    %v5644 = vsel %vm191, %v5634, %v5640
    %v5645 = vsel %vm191, %v5636, %v5642
    %v5646 = vsel %vm191, %v5626, %v5632
    %v5647 = vsel %vm191, %v5628, %v5634
    %v5648 = vsel %vm191, %v5630, %v5636
    %v5649 = vsel %vm191, %v5620, %v5626
    %v5650 = vsel %vm191, %v5622, %v5628
    %v5651 = vsel %vm191, %v5624, %v5630
    %v5652 = vsel %vm191, %v5614, %v5620
    %v5653 = vsel %vm191, %v5616, %v5622
    %v5654 = vsel %vm191, %v5618, %v5624
    %v5655 = vsel %vm191, %v5608, %v5614
    %v5656 = vsel %vm191, %v5610, %v5616
    %v5657 = vsel %vm191, %v5612, %v5618
    %v5658 = vsel %vm191, %v5638, %v5608
    %v5659 = vsel %vm191, %v5640, %v5610
    %v5660 = vsel %vm191, %v5642, %v5612
    %5661 = vrot.lane.b32.xlu0 %v5280, 90
    %v5662 = vpop.permute.xlu0 %5661
    %5663 = vrot.lane.b32.xlu0 %v5281, 90
    %v5664 = vpop.permute.xlu0 %5663
    %5665 = vrot.lane.b32.xlu0 %v5282, 90
    %v5666 = vpop.permute.xlu0 %5665
    %5667 = vrot.lane.b32.xlu0 %v5277, 90
    %v5668 = vpop.permute.xlu0 %5667
    %5669 = vrot.lane.b32.xlu0 %v5278, 90
    %v5670 = vpop.permute.xlu0 %5669
    %5671 = vrot.lane.b32.xlu0 %v5279, 90
    %v5672 = vpop.permute.xlu0 %5671
    %5673 = vrot.lane.b32.xlu0 %v5274, 90
    %v5674 = vpop.permute.xlu0 %5673
    %5675 = vrot.lane.b32.xlu0 %v5275, 90
    %v5676 = vpop.permute.xlu0 %5675
    %5677 = vrot.lane.b32.xlu0 %v5276, 90
    %v5678 = vpop.permute.xlu0 %5677
    %5679 = vrot.lane.b32.xlu0 %v5271, 90
    %v5680 = vpop.permute.xlu0 %5679
    %5681 = vrot.lane.b32.xlu0 %v5272, 90
    %v5682 = vpop.permute.xlu0 %5681
    %5683 = vrot.lane.b32.xlu0 %v5273, 90
    %v5684 = vpop.permute.xlu0 %5683
    %5685 = vrot.lane.b32.xlu0 %v5268, 90
    %v5686 = vpop.permute.xlu0 %5685
    %5687 = vrot.lane.b32.xlu0 %v5269, 90
    %v5688 = vpop.permute.xlu0 %5687
    %5689 = vrot.lane.b32.xlu0 %v5270, 90
    %v5690 = vpop.permute.xlu0 %5689
    %5691 = vrot.lane.b32.xlu0 %v5265, 90
    %v5692 = vpop.permute.xlu0 %5691
    %5693 = vrot.lane.b32.xlu0 %v5266, 90
    %v5694 = vpop.permute.xlu0 %5693
    %5695 = vrot.lane.b32.xlu0 %v5267, 90
    %v5696 = vpop.permute.xlu0 %5695
    %v5697 = vsel %vm210, %v5686, %v5692
    %v5698 = vsel %vm210, %v5688, %v5694
    %v5699 = vsel %vm210, %v5690, %v5696
    %v5700 = vsel %vm210, %v5680, %v5686
    %v5701 = vsel %vm210, %v5682, %v5688
    %v5702 = vsel %vm210, %v5684, %v5690
    %v5703 = vsel %vm210, %v5674, %v5680
    %v5704 = vsel %vm210, %v5676, %v5682
    %v5705 = vsel %vm210, %v5678, %v5684
    %v5706 = vsel %vm210, %v5668, %v5674
    %v5707 = vsel %vm210, %v5670, %v5676
    %v5708 = vsel %vm210, %v5672, %v5678
    %v5709 = vsel %vm210, %v5662, %v5668
    %v5710 = vsel %vm210, %v5664, %v5670
    %v5711 = vsel %vm210, %v5666, %v5672
    %v5712 = vsel %vm210, %v5692, %v5662
    %v5713 = vsel %vm210, %v5694, %v5664
    %v5714 = vsel %vm210, %v5696, %v5666
    %s5715 = scalar_lea.vmem [#allocation2], 384
    %v5716 = vld [vmem:[%s5715] sm:$0xff]
    %v5717 = vld [vmem:[%s5715 + $0x8] sm:$0xff]
    %5719 = vset.pattern.permute.xlu0 88
    %5720 = vperm.xlu0 %5719, %v5717
    %v5721 = vpop.permute.xlu0 %5720
    %v5723 = vsel %vm1370, %v5717, 0
    %5725 = vmatprep.subr.mxu0 %v5277
    %5726 = vmatpush1.msra.mxu0 %v5280
    %5727 = vmatprep.subr.mxu0 %v5278
    %5728 = vmatpush1.msra.mxu0 %v5281
    %5729 = vmatprep.subr.mxu0 %v5279
    %5730 = vmatpush1.msra.mxu0 %v5282
    %5731 = vmatprep.subr.mxu0 %v5328
    %5732 = vmatpush1.msra.mxu0 %v5331
    %5733 = vmatprep.subr.mxu0 %v5329
    %5734 = vmatpush1.msra.mxu0 %v5332
    %5735 = vmatprep.subr.mxu0 %v5330
    %5736 = vmatpush1.msra.mxu0 %v5333
    %5737 = vmatprep.subr.mxu0 %v5382
    %5738 = vmatpush1.msra.mxu0 %v5385
    %5739 = vmatprep.subr.mxu0 %v5383
    %5740 = vmatpush1.msra.mxu0 %v5386
    %5741 = vmatprep.subr.mxu0 %v5384
    %5742 = vmatpush1.msra.mxu0 %v5387
    %5743 = vmatprep.subr.mxu0 %v5436
    %5744 = vmatpush1.msra.mxu0 %v5439
    %5745 = vmatprep.subr.mxu0 %v5437
    %5746 = vmatpush1.msra.mxu0 %v5440
    %5747 = vmatprep.subr.mxu0 %v5438
    %5748 = vmatpush1.msra.mxu0 %v5441
    %5749 = vmatprep.subr.mxu0 %v5490
    %5750 = vmatpush1.msra.mxu0 %v5493
    %5751 = vmatprep.subr.mxu0 %v5491
    %5752 = vmatpush1.msra.mxu0 %v5494
    %5753 = vmatprep.subr.mxu0 %v5492
    %5754 = vmatpush1.msra.mxu0 %v5495
    %5755 = vmatprep.subr.mxu0 %v5544
    %5756 = vmatpush1.msra.mxu0 %v5547
    %5757 = vmatprep.subr.mxu0 %v5545
    %5758 = vmatpush1.msra.mxu0 %v5548
    %5759 = vmatprep.subr.mxu0 %v5546
    %5760 = vmatpush1.msra.mxu0 %v5549
    %5761 = vmatprep.subr.mxu0 %v5598
    %5762 = vmatpush1.msra.mxu0 %v5601
    %5763 = vmatprep.subr.mxu0 %v5599
    %5764 = vmatpush1.msra.mxu0 %v5602
    %5765 = vmatprep.subr.mxu0 %v5600
    %5766 = vmatpush1.msra.mxu0 %v5603
    %5767 = vmatprep.subr.mxu0 %v5652
    %5768 = vmatpush1.msra.mxu0 %v5655
    %5769 = vmatprep.subr.mxu0 %v5653
    %5770 = vmatpush1.msra.mxu0 %v5656
    %5771 = vmatprep.subr.mxu0 %v5654
    %5772 = vmatpush1.msra.mxu0 %v5657
    %5773 = vmatprep.subr.mxu0 %v5706
    %5774 = vmatpush1.msra.mxu0 %v5709
    %5775 = vmatprep.subr.mxu0 %v5707
    %5776 = vmatpush1.msra.mxu0 %v5710
    %5777 = vmatprep.subr.mxu0 %v5708
    %5778 = vmatpush1.msra.mxu0 %v5711
    %5779 = vmatprep.subr.mxu0 0.0
    %5780 = vmatpush1.msra.mxu0 0.0
    %5781 = vmatprep.subr.mxu0 0.0
    %5782 = vmatpush1.msra.mxu0 0.0
    %5783 = vmatprep.subr.mxu0 0.0
    %5784 = vmatpush1.msra.mxu0 0.0
    %5785 = vmatprep.subr.mxu0 0.0
    %5786 = vmatpush1.msra.mxu0 0.0
    %5787 = vmatprep.subr.mxu0 0.0
    %5788 = vmatpush1.msra.mxu0 0.0
    %5789 = vmatprep.mubr.f32.mxu0 %v5723
    %5790 = vmatmul.mubr.f32.gmra.mrb[0].mxu0 %v5716
    %v5791 = vpop.f32.mrb[0].mxu0
    %v5792 = vadd.f32 %v5721, %v5791
    %v5793 = vpop.f32.mrb[0].mxu0
    %v5794 = vadd.f32 %v5721, %v5793
    %5795 = vdwg.mxu0
    %5796 = vmatprep.subr.mxu0 %v5271
    %5797 = vmatpush1.msra.mxu0 %v5274
    %5798 = vmatprep.subr.mxu0 %v5272
    %5799 = vmatpush1.msra.mxu0 %v5275
    %5800 = vmatprep.subr.mxu0 %v5273
    %5801 = vmatpush1.msra.mxu0 %v5276
    %5802 = vmatprep.subr.mxu0 %v5322
    %5803 = vmatpush1.msra.mxu0 %v5325
    %5804 = vmatprep.subr.mxu0 %v5323
    %5805 = vmatpush1.msra.mxu0 %v5326
    %5806 = vmatprep.subr.mxu0 %v5324
    %5807 = vmatpush1.msra.mxu0 %v5327
    %5808 = vmatprep.subr.mxu0 %v5376
    %5809 = vmatpush1.msra.mxu0 %v5379
    %5810 = vmatprep.subr.mxu0 %v5377
    %5811 = vmatpush1.msra.mxu0 %v5380
    %5812 = vmatprep.subr.mxu0 %v5378
    %5813 = vmatpush1.msra.mxu0 %v5381
    %5814 = vmatprep.subr.mxu0 %v5430
    %5815 = vmatpush1.msra.mxu0 %v5433
    %5816 = vmatprep.subr.mxu0 %v5431
    %5817 = vmatpush1.msra.mxu0 %v5434
    %5818 = vmatprep.subr.mxu0 %v5432
    %5819 = vmatpush1.msra.mxu0 %v5435
    %5820 = vmatprep.subr.mxu0 %v5484
    %5821 = vmatpush1.msra.mxu0 %v5487
    %5822 = vmatprep.subr.mxu0 %v5485
    %5823 = vmatpush1.msra.mxu0 %v5488
    %5824 = vmatprep.subr.mxu0 %v5486
    %5825 = vmatpush1.msra.mxu0 %v5489
    %5826 = vmatprep.subr.mxu0 %v5538
    %5827 = vmatpush1.msra.mxu0 %v5541
    %5828 = vmatprep.subr.mxu0 %v5539
    %5829 = vmatpush1.msra.mxu0 %v5542
    %5830 = vmatprep.subr.mxu0 %v5540
    %5831 = vmatpush1.msra.mxu0 %v5543
    %5832 = vmatprep.subr.mxu0 %v5592
    %5833 = vmatpush1.msra.mxu0 %v5595
    %5834 = vmatprep.subr.mxu0 %v5593
    %5835 = vmatpush1.msra.mxu0 %v5596
    %5836 = vmatprep.subr.mxu0 %v5594
    %5837 = vmatpush1.msra.mxu0 %v5597
    %5838 = vmatprep.subr.mxu0 %v5646
    %5839 = vmatpush1.msra.mxu0 %v5649
    %5840 = vmatprep.subr.mxu0 %v5647
    %5841 = vmatpush1.msra.mxu0 %v5650
    %5842 = vmatprep.subr.mxu0 %v5648
    %5843 = vmatpush1.msra.mxu0 %v5651
    %5844 = vmatprep.subr.mxu0 %v5700
    %5845 = vmatpush1.msra.mxu0 %v5703
    %5846 = vmatprep.subr.mxu0 %v5701
    %5847 = vmatpush1.msra.mxu0 %v5704
    %5848 = vmatprep.subr.mxu0 %v5702
    %5849 = vmatpush1.msra.mxu0 %v5705
    %5850 = vmatprep.subr.mxu0 0.0
    %5851 = vmatpush1.msra.mxu0 0.0
    %5852 = vmatprep.subr.mxu0 0.0
    %5853 = vmatpush1.msra.mxu0 0.0
    %5854 = vmatprep.subr.mxu0 0.0
    %5855 = vmatpush1.msra.mxu0 0.0
    %5856 = vmatprep.subr.mxu0 0.0
    %5857 = vmatpush1.msra.mxu0 0.0
    %5858 = vmatprep.subr.mxu0 0.0
    %5859 = vmatpush1.msra.mxu0 0.0
    %5860 = vmatprep.mubr.f32.mxu0 %v5723
    %5861 = vmatmul.mubr.f32.gmra.mrb[0].mxu0 %v5716
    %v5862 = vpop.f32.mrb[0].mxu0
    %v5863 = vadd.f32 %v5721, %v5862
    %v5864 = vpop.f32.mrb[0].mxu0
    %v5865 = vadd.f32 %v5721, %v5864
    %5866 = vdwg.mxu0
    %5867 = vmatprep.subr.mxu0 %v5265
    %5868 = vmatpush1.msra.mxu0 %v5268
    %5869 = vmatprep.subr.mxu0 %v5266
    %5870 = vmatpush1.msra.mxu0 %v5269
    %5871 = vmatprep.subr.mxu0 %v5267
    %5872 = vmatpush1.msra.mxu0 %v5270
    %5873 = vmatprep.subr.mxu0 %v5334
    %5874 = vmatpush1.msra.mxu0 %v5319
    %5875 = vmatprep.subr.mxu0 %v5335
    %5876 = vmatpush1.msra.mxu0 %v5320
    %5877 = vmatprep.subr.mxu0 %v5336
    %5878 = vmatpush1.msra.mxu0 %v5321
    %5879 = vmatprep.subr.mxu0 %v5388
    %5880 = vmatpush1.msra.mxu0 %v5373
    %5881 = vmatprep.subr.mxu0 %v5389
    %5882 = vmatpush1.msra.mxu0 %v5374
    %5883 = vmatprep.subr.mxu0 %v5390
    %5884 = vmatpush1.msra.mxu0 %v5375
    %5885 = vmatprep.subr.mxu0 %v5442
    %5886 = vmatpush1.msra.mxu0 %v5427
    %5887 = vmatprep.subr.mxu0 %v5443
    %5888 = vmatpush1.msra.mxu0 %v5428
    %5889 = vmatprep.subr.mxu0 %v5444
    %5890 = vmatpush1.msra.mxu0 %v5429
    %5891 = vmatprep.subr.mxu0 %v5496
    %5892 = vmatpush1.msra.mxu0 %v5481
    %5893 = vmatprep.subr.mxu0 %v5497
    %5894 = vmatpush1.msra.mxu0 %v5482
    %5895 = vmatprep.subr.mxu0 %v5498
    %5896 = vmatpush1.msra.mxu0 %v5483
    %5897 = vmatprep.subr.mxu0 %v5550
    %5898 = vmatpush1.msra.mxu0 %v5535
    %5899 = vmatprep.subr.mxu0 %v5551
    %5900 = vmatpush1.msra.mxu0 %v5536
    %5901 = vmatprep.subr.mxu0 %v5552
    %5902 = vmatpush1.msra.mxu0 %v5537
    %5903 = vmatprep.subr.mxu0 %v5604
    %5904 = vmatpush1.msra.mxu0 %v5589
    %5905 = vmatprep.subr.mxu0 %v5605
    %5906 = vmatpush1.msra.mxu0 %v5590
    %5907 = vmatprep.subr.mxu0 %v5606
    %5908 = vmatpush1.msra.mxu0 %v5591
    %5909 = vmatprep.subr.mxu0 %v5658
    %5910 = vmatpush1.msra.mxu0 %v5643
    %5911 = vmatprep.subr.mxu0 %v5659
    %5912 = vmatpush1.msra.mxu0 %v5644
    %5913 = vmatprep.subr.mxu0 %v5660
    %5914 = vmatpush1.msra.mxu0 %v5645
    %5915 = vmatprep.subr.mxu0 %v5712
    %5916 = vmatpush1.msra.mxu0 %v5697
    %5917 = vmatprep.subr.mxu0 %v5713
    %5918 = vmatpush1.msra.mxu0 %v5698
    %5919 = vmatprep.subr.mxu0 %v5714
    %5920 = vmatpush1.msra.mxu0 %v5699
    %5921 = vmatprep.subr.mxu0 0.0
    %5922 = vmatpush1.msra.mxu0 0.0
    %5923 = vmatprep.subr.mxu0 0.0
    %5924 = vmatpush1.msra.mxu0 0.0
    %5925 = vmatprep.subr.mxu0 0.0
    %5926 = vmatpush1.msra.mxu0 0.0
    %5927 = vmatprep.subr.mxu0 0.0
    %5928 = vmatpush1.msra.mxu0 0.0
    %5929 = vmatprep.subr.mxu0 0.0
    %5930 = vmatpush1.msra.mxu0 0.0
    %5931 = vmatprep.mubr.f32.mxu0 %v5723
    %5932 = vmatmul.mubr.f32.gmra.mrb[0].mxu0 %v5716
    %v5933 = vpop.f32.mrb[0].mxu0
    %v5934 = vadd.f32 %v5721, %v5933
    %v5935 = vpop.f32.mrb[0].mxu0
    %v5936 = vadd.f32 %v5721, %v5935
    %5937 = vdwg.mxu0
    %v5938 = vtanh.pop %v5792
    %v5939 = vtanh.pop %v5794
    %v5940 = vtanh.pop %v5863
    %v5941 = vtanh.pop %v5865
    %v5942 = vtanh.pop %v5934
    %v5943 = vtanh.pop %v5936
    %v5950 = vcombine.low %v5938, %v5939
    %v5951 = vcombine.low %v5940, %v5941
    %v5952 = vcombine.low %v5942, %v5943
    %v5954 = vunpack.c.l.s4 1966171168
    %v5955 = vunpack.c.0.s8 %v5954
    %v5956 = vlaneseq
    %v5957 = vshrl.u32 %v5956, 7
    %v5958 = vsub.s32 %v5955, %v5957
    %v5959 = vrot.slane %v5950, %v5958
    %v5961 = vunpack.c.l.s4 1966171168
    %v5962 = vunpack.c.0.s8 %v5961
    %v5963 = vlaneseq
    %v5964 = vshrl.u32 %v5963, 7
    %v5965 = vsub.s32 %v5962, %v5964
    %v5966 = vrot.slane %v5951, %v5965
    %v5968 = vunpack.c.l.s4 1966171168
    %v5969 = vunpack.c.0.s8 %v5968
    %v5970 = vlaneseq
    %v5971 = vshrl.u32 %v5970, 7
    %v5972 = vsub.s32 %v5969, %v5971
    %v5973 = vrot.slane %v5952, %v5972
    %v5974 = vcombine.low %v5959, %v5966
    %v5976 = vunpack.c.l.s4 1966171168
    %v5977 = vunpack.c.0.s8 %v5976
    %v5978 = vlaneseq
    %v5979 = vshrl.u32 %v5978, 7
    %v5980 = vsub.s32 %v5977, %v5979
    %v5981 = vrot.slane %v5974, %v5980
    %v5983 = vunpack.c.l.s4 1966171168
    %v5984 = vunpack.c.0.s8 %v5983
    %v5985 = vlaneseq
    %v5986 = vshrl.u32 %v5985, 7
    %v5987 = vsub.s32 %v5984, %v5986
    %v5988 = vrot.slane %v5973, %v5987
    %v5989 = vcombine.low %v5981, %v5988
    %v5991 = vlaneseq
    %vm5992 = vcmp.ge.s32.totalorder %v5991, 0
    %vm5993 = vcmp.lt.s32.totalorder %v5991, 768
    %vm5994 = vmand %vm5992, %vm5993
    %5995 = vst.msk [vmem:[%s3] sm:$0x3f] %vm5994, %v5989
    // Predicated region
    $region18: #{mnist_ae_forward.1} parent=1 // pred_check
      _
    $region19: #{mnist_ae_forward.1} parent=1 // pred_check_branch
      %5997 = sbr.rel (0) target = $region21
    $region20: #{mnist_ae_forward.1} parent=1 // pred_region
      _
    $region21: #{mnist_ae_forward.1} parent=1 // pred_fallthru
      _
    // Predicated region
    $region22: #{mnist_ae_forward.1} parent=1 // pred_check
      _
    $region23: #{mnist_ae_forward.1} parent=1 // pred_check_branch
      %5999 = sbr.rel (0) target = $region25
    $region24: #{mnist_ae_forward.1} parent=1 // pred_region
      _
    $region25: #{mnist_ae_forward.1} parent=1 // pred_fallthru
      _
    %6000 = vsyncpa [#allocation3], 1

</llo_original>
